<compile_context>
chip_gen: v6e
topology: v6e:2x2x1
jax: 0.10.0
libtpu: 0.0.40
codegen_flags: <defaults>
</compile_context>

<pallas_src>
import jax
import jax.numpy as jnp
from jax.experimental import pallas as pl
from jax.experimental.pallas import tpu as pltpu

CONTEXT = 4  # CBOW window (fixed by the module: linear1 input = 4 * embed_dim)


def _make_w2v_kernel(nv: int, tile_v: int):
    """Builds the kernel for a fixed number of vocab tiles (nv) of width tile_v."""

    def kernel(ctx_ref,        # SMEM (B, 4) int32 (scalar prefetch)
               emb_hbm,        # HBM  (V, E) f32   (pl.ANY, manual DMA gather)
               w1_ref,         # VMEM (4E, H) bf16 (resident)
               b1_ref,         # VMEM (1, H)  f32  (resident)
               w2_ref,         # VMEM (H, tile_v) bf16 tile (streamed once)
               b2_ref,         # VMEM (1, tile_v) f32 tile
               out_ref,        # VMEM (B, V) f32   resident output block
               gbuf,           # VMEM (4B, E) f32  gathered embedding rows
               gsem,           # DMA semaphore (1,) shared by all gather copies
               hid_ref,        # VMEM (B, H) bf16  hidden activations
               m_ref,          # VMEM (B, 1) f32   running max
               l_ref):         # VMEM (B, 1) f32   running sum-exp
        j = pl.program_id(0)
        V, E = emb_hbm.shape
        B, H = hid_ref.shape

        # -----------------------------------------------------------------
        # First grid step only: DMA-gather the 4*B embedding rows from HBM,
        # run linear1 + ReLU once, init the streaming log-softmax stats.
        # -----------------------------------------------------------------
        @pl.when(j == 0)
        def _prologue():
            # One shared DMA semaphore: every copy is the same size, so one
            # wait per issued copy consumes exactly all the signals.
            copies = []
            for c in range(CONTEXT):
                for b in range(B):
                    r = c * B + b          # gbuf[c*B:(c+1)*B] == emb[ctx[:, c]]
                    # NOTE: clip remaps out-of-range ids to a valid row instead
                    # of raising like nn.Embedding (DMA has no bounds check).
                    idx = jnp.clip(ctx_ref[b, c], 0, V - 1)
                    cp = pltpu.make_async_copy(
                        emb_hbm.at[pl.ds(idx, 1), :],
                        gbuf.at[pl.ds(r, 1), :],
                        gsem.at[0])
                    cp.start()
                    copies.append(cp)
            for cp in copies:
                cp.wait()

            # linear1: concat_c(emb[ctx[:, c]]) @ W1
            #        == sum_c emb[ctx[:, c]] @ W1[c*E:(c+1)*E]   (static slices)
            acc = b1_ref[...] + jnp.zeros((B, H), jnp.float32)
            for c in range(CONTEXT):
                g_c = gbuf[pl.ds(c * B, B), :].astype(jnp.bfloat16)       # (B, E)
                acc = acc + jnp.dot(g_c, w1_ref[pl.ds(c * E, E), :],
                                    preferred_element_type=jnp.float32)   # (B, H)
            hid_ref[...] = jnp.maximum(acc, 0.0).astype(hid_ref.dtype)    # ReLU

            m_ref[...] = jnp.full_like(m_ref, -jnp.inf)
            l_ref[...] = jnp.zeros_like(l_ref)

        # -----------------------------------------------------------------
        # Every step: logits tile -> resident output slab + online softmax
        # statistics (running max / sum-exp), all in f32.
        # -----------------------------------------------------------------
        logits = jnp.dot(hid_ref[...], w2_ref[...],
                         preferred_element_type=jnp.float32) + b2_ref[...]   # (B, tile_v)

        # Static, 128-aligned per-tile stores (one predicated store per tile
        # index) instead of a dynamic lane-offset store.
        for t in range(nv):
            @pl.when(j == t)
            def _store(t=t):
                out_ref[:, t * tile_v:(t + 1) * tile_v] = logits

        m_prev = m_ref[...]
        m_new = jnp.maximum(m_prev, jnp.max(logits, axis=-1, keepdims=True))
        l_ref[...] = (l_ref[...] * jnp.exp(m_prev - m_new)
                      + jnp.sum(jnp.exp(logits - m_new), axis=-1, keepdims=True))
        m_ref[...] = m_new

        # -----------------------------------------------------------------
        # Last step: normalize the resident block in place with the final
        # logsumexp (matches F.log_softmax over dim=1).  Static slices only.
        # -----------------------------------------------------------------
        @pl.when(j == nv - 1)
        def _finalize():
            lse = m_ref[...] + jnp.log(l_ref[...])        # (B, 1)
            for t in range(nv):
                sl = pl.ds(t * tile_v, tile_v)            # static offsets
                out_ref[:, sl] = out_ref[:, sl] - lse

    return kernel


def _ceil_to(x, m):
    return -(-x // m) * m


def _padded_bytes(shape, itemsize):
    """Bytes of a VMEM block after (8, 128) sublane/lane padding."""
    dims = list(shape)
    dims[-1] = _ceil_to(dims[-1], 128)
    if len(dims) >= 2:
        dims[-2] = _ceil_to(dims[-2], 8)
    n = 1
    for d in dims:
        n *= int(d)
    return n * itemsize


def word2vec_forward(context, emb, w1, b1, w2, b2, *, tile_v=2048):
    """CBOW forward pass.

    context : (B, 4) int32
    emb     : (V, E) f32   embedding table
    w1      : (4E, H)      linear1 weight, pre-transposed to (in, out)
    b1      : (H,)
    w2      : (H, V)       linear2 weight, pre-transposed to (in, out)
    b2      : (V,)
    Returns (B, V) float32 log-probabilities (log_softmax over dim=1).
    """
    B, C = context.shape
    assert C == CONTEXT
    V, E = emb.shape
    H = w1.shape[1]
    assert w1.shape == (CONTEXT * E, H) and w2.shape == (H, V)
    assert B % 8 == 0, "pad the batch to a sublane multiple"
    assert E % 8 == 0

    tile_v = min(tile_v, V)
    assert tile_v % 128 == 0 and V % tile_v == 0, "vocab tiles must be lane-dense"
    nv = V // tile_v

    context = context.astype(jnp.int32)
    emb = emb.astype(jnp.float32)
    w1_bf = w1.astype(jnp.bfloat16)          # bf16 weights: half the HBM bytes
    w2_bf = w2.astype(jnp.bfloat16)
    b1 = jnp.asarray(b1, jnp.float32).reshape(1, H)
    b2 = jnp.asarray(b2, jnp.float32).reshape(1, V)

    grid_spec = pltpu.PrefetchScalarGridSpec(
        num_scalar_prefetch=1,               # context indices -> SMEM scalar path
        grid=(nv,),                          # single pass over vocab tiles
        in_specs=[
            pl.BlockSpec(memory_space=pl.ANY),                          # emb stays in HBM
            pl.BlockSpec((CONTEXT * E, H), lambda j, ctx: (0, 0)),      # w1 resident
            pl.BlockSpec((1, H), lambda j, ctx: (0, 0)),                # b1 resident
            pl.BlockSpec((H, tile_v), lambda j, ctx: (0, j)),           # w2 streamed once
            pl.BlockSpec((1, tile_v), lambda j, ctx: (0, j)),           # b2 streamed once
        ],
        # Resident (B, V) output accumulator: written tile-by-tile, normalized
        # in place on the last step, copied back to HBM once at the end.
        out_specs=pl.BlockSpec((B, V), lambda j, ctx: (0, 0)),
        scratch_shapes=[
            pltpu.VMEM((CONTEXT * B, E), jnp.float32),   # gathered embedding rows
            pltpu.SemaphoreType.DMA((1,)),               # one shared gather semaphore
            pltpu.VMEM((B, H), jnp.bfloat16),            # hidden activations
            pltpu.VMEM((B, 1), jnp.float32),             # running max
            pltpu.VMEM((B, 1), jnp.float32),             # running sum-exp
        ],
    )

    # Explicit VMEM budget (scoped defaults: 16 MiB v5e, 32 MiB v6e/v7x).
    vmem_est = (
        2 * (_padded_bytes((H, tile_v), 2) + _padded_bytes((1, tile_v), 4))    # w2/b2 x2 bufs
        + 2 * _padded_bytes((B, V), 4)                                          # resident out
        + 2 * (_padded_bytes((CONTEXT * E, H), 2) + _padded_bytes((1, H), 4))   # w1/b1
        + _padded_bytes((CONTEXT * B, E), 4)                                    # gathered rows
        + _padded_bytes((B, H), 2)                                              # hidden
        + 2 * _padded_bytes((B, 1), 4)                                          # m, l
    )
    vmem_limit = max(int(1.4 * vmem_est) + (4 << 20), 32 << 20)

    flops = 2 * B * (CONTEXT * E * H + H * V) + 8 * B * V
    transcendentals = B * V + B * nv
    bytes_accessed = (w1_bf.size * 2 + w2_bf.size * 2 + (b1.size + b2.size) * 4
                      + B * CONTEXT * (E * 4 + 4) + B * V * 4)

    return pl.pallas_call(
        _make_w2v_kernel(nv, tile_v),
        out_shape=jax.ShapeDtypeStruct((B, V), jnp.float32),
        grid_spec=grid_spec,
        compiler_params=pltpu.CompilerParams(
            # Single sequential axis: it carries the online-softmax reduction
            # and the resident output block (see megacore TODO in the header).
            dimension_semantics=("arbitrary",),
            vmem_limit_bytes=vmem_limit,
        ),
        cost_estimate=pl.CostEstimate(flops=flops, transcendentals=transcendentals,
                                      bytes_accessed=bytes_accessed),
    )(context, emb, w1_bf, b1, w2_bf, b2)


def reference_forward(context, emb, w1, b1, w2, b2, *, bf16_weights=False):
    """Pure-JAX reference matching the PyTorch forward (dim=1 log_softmax)."""
    b1 = jnp.asarray(b1, jnp.float32).reshape(1, -1)
    b2 = jnp.asarray(b2, jnp.float32).reshape(1, -1)
    cast = (lambda x: x.astype(jnp.bfloat16).astype(jnp.float32)) if bf16_weights \
        else (lambda x: x)
    embedded = jnp.take(emb, context, axis=0).reshape(context.shape[0], -1)
    if bf16_weights:
        embedded = cast(embedded)
    hid = jnp.maximum(embedded @ cast(w1) + b1, 0.0)
    if bf16_weights:
        hid = cast(hid)
    out = hid @ cast(w2) + b2
    return jax.nn.log_softmax(out, axis=-1)


def _run_case(vocab_size, embed_dim, batch, tile_v):
    hidden = 128  # fixed by the module: linear1 = Linear(4*embed_dim, 128)
    key = jax.random.PRNGKey(0)
    k_ctx, k_emb, k_w1, k_b1, k_w2, k_b2 = jax.random.split(key, 6)

    context = jax.random.randint(k_ctx, (batch, CONTEXT), 0, vocab_size,
                                 dtype=jnp.int32)
    emb = jax.random.normal(k_emb, (vocab_size, embed_dim), jnp.float32)
    # PyTorch nn.Linear stores weight as (out, in); we pass the transposed
    # (in, out) layout so the kernel computes x @ W directly.
    w1 = jax.random.normal(k_w1, (CONTEXT * embed_dim, hidden), jnp.float32) * 0.05
    b1 = jax.random.normal(k_b1, (hidden,), jnp.float32) * 0.05
    w2 = jax.random.normal(k_w2, (hidden, vocab_size), jnp.float32) * 0.05
    b2 = jax.random.normal(k_b2, (vocab_size,), jnp.float32) * 0.05

    log_probs = word2vec_forward(context, emb, w1, b1, w2, b2, tile_v=tile_v)
    jax.block_until_ready(log_probs)
    assert log_probs.shape == (batch, vocab_size)

    # Tight check vs a reference that applies the same bf16 weight rounding.
    ref_bf16 = reference_forward(context, emb, w1, b1, w2, b2, bf16_weights=True)
    assert jnp.allclose(log_probs, ref_bf16, atol=5e-3, rtol=5e-3), \
        float(jnp.max(jnp.abs(log_probs - ref_bf16)))

    # Loose check vs the exact f32 PyTorch semantics (bf16 weights relax tol).
    ref_f32 = reference_forward(context, emb, w1, b1, w2, b2, bf16_weights=False)
    assert jnp.allclose(log_probs, ref_f32, atol=6e-2, rtol=6e-2), \
        float(jnp.max(jnp.abs(log_probs - ref_f32)))


if __name__ == "__main__":
    # Small default config: tile_v is clamped to V (single resident vocab tile).
    _run_case(vocab_size=512, embed_dim=32, batch=8, tile_v=2048)
    # Multi-tile config: exercises streaming w2 and the online softmax across
    # 4 vocab tiles plus the in-place finalize of the resident output.
    _run_case(vocab_size=2048, embed_dim=32, batch=8, tile_v=512)
    print("KERNEL_OK")
</pallas_src>

<mosaic_0001>
module attributes {stable_mosaic.version = 11 : i64} {
  func.func @kernel(%arg0: i32, %arg1: memref<8x4xi32, #tpu.memory_space<smem>>, %arg2: memref<512x32xf32, #tpu.memory_space<any>>, %arg3: memref<128x128xbf16, #tpu.memory_space<vmem>>, %arg4: memref<1x128xf32, #tpu.memory_space<vmem>>, %arg5: memref<128x512xbf16, #tpu.memory_space<vmem>>, %arg6: memref<1x512xf32, #tpu.memory_space<vmem>>, %arg7: memref<8x512xf32, #tpu.memory_space<vmem>>, %arg8: memref<32x32xf32, #tpu.memory_space<vmem>>, %arg9: memref<1x!tpu.dma_semaphore, #tpu.memory_space<semaphore_mem>>, %arg10: memref<8x128xbf16, #tpu.memory_space<vmem>>, %arg11: memref<8x1xf32, #tpu.memory_space<vmem>>, %arg12: memref<8x1xf32, #tpu.memory_space<vmem>>) attributes {dimension_semantics = [#tpu.dimension_semantics<arbitrary>], iteration_bounds = array<i64: 1>, scalar_prefetch = 1 : i64, scratch_operands = 5 : i64, tpu.core_type = #tpu.core_type<tc>, window_params = [{}, {pipeline_mode = #tpu.pipeline_mode<synchronous>, transform_indices = @transform_1, window_bounds = array<i64: 128, 128>}, {pipeline_mode = #tpu.pipeline_mode<synchronous>, transform_indices = @transform_2, window_bounds = array<i64: 1, 128>}, {transform_indices = @transform_3, window_bounds = array<i64: 128, 512>}, {transform_indices = @transform_4, window_bounds = array<i64: 1, 512>}, {pipeline_mode = #tpu.pipeline_mode<synchronous>, transform_indices = @transform_5, window_bounds = array<i64: 8, 512>}]} {
    %c0_i32 = arith.constant 0 : i32
    %0 = arith.cmpi eq, %arg0, %c0_i32 : i32
    %1 = arith.extui %0 : i1 to i32
    %c0_i32_0 = arith.constant 0 : i32
    %2 = arith.cmpi ne, %1, %c0_i32_0 : i32
    scf.if %2 {
      %c0_20 = arith.constant 0 : index
      %c0_21 = arith.constant 0 : index
      %31 = memref.load %arg1[%c0_20, %c0_21] : memref<8x4xi32, #tpu.memory_space<smem>>
      %c0_i32_22 = arith.constant 0 : i32
      %c511_i32 = arith.constant 511 : i32
      %32 = arith.maxsi %c0_i32_22, %31 : i32
      %33 = arith.minsi %c511_i32, %32 : i32
      %c0_i32_23 = arith.constant 0 : i32
      %c0_i32_24 = arith.constant 0 : i32
      %34 = tpu.memref_slice %arg2[%33, %c0_i32_24] : memref<512x32xf32, #tpu.memory_space<any>> -> memref<1x32xf32, #tpu.memory_space<any>>
      %c0_i32_25 = arith.constant 0 : i32
      %c0_i32_26 = arith.constant 0 : i32
      %35 = tpu.memref_slice %arg8[%c0_i32_25, %c0_i32_26] : memref<32x32xf32, #tpu.memory_space<vmem>> -> memref<1x32xf32, #tpu.memory_space<vmem>>
      %36 = tpu.memref_slice %arg9[%c0_i32_23] : memref<1x!tpu.dma_semaphore, #tpu.memory_space<semaphore_mem>> -> memref<1x!tpu.dma_semaphore, #tpu.memory_space<semaphore_mem>>
      %37 = tpu.memref_squeeze %36 : memref<1x!tpu.dma_semaphore, #tpu.memory_space<semaphore_mem>> -> memref<!tpu.dma_semaphore, #tpu.memory_space<semaphore_mem>>
      tpu.enqueue_dma source(%34 : memref<1x32xf32, #tpu.memory_space<any>>) target(%35 : memref<1x32xf32, #tpu.memory_space<vmem>>) target_semaphore(%37 : memref<!tpu.dma_semaphore, #tpu.memory_space<semaphore_mem>>)
      %c1 = arith.constant 1 : index
      %c0_27 = arith.constant 0 : index
      %38 = memref.load %arg1[%c1, %c0_27] : memref<8x4xi32, #tpu.memory_space<smem>>
      %c0_i32_28 = arith.constant 0 : i32
      %c511_i32_29 = arith.constant 511 : i32
      %39 = arith.maxsi %c0_i32_28, %38 : i32
      %40 = arith.minsi %c511_i32_29, %39 : i32
      %c0_i32_30 = arith.constant 0 : i32
      %c0_i32_31 = arith.constant 0 : i32
      %41 = tpu.memref_slice %arg2[%40, %c0_i32_31] : memref<512x32xf32, #tpu.memory_space<any>> -> memref<1x32xf32, #tpu.memory_space<any>>
      %c1_i32 = arith.constant 1 : i32
      %c0_i32_32 = arith.constant 0 : i32
      %42 = tpu.memref_slice %arg8[%c1_i32, %c0_i32_32] : memref<32x32xf32, #tpu.memory_space<vmem>> -> memref<1x32xf32, #tpu.memory_space<vmem>>
      %43 = tpu.memref_slice %arg9[%c0_i32_30] : memref<1x!tpu.dma_semaphore, #tpu.memory_space<semaphore_mem>> -> memref<1x!tpu.dma_semaphore, #tpu.memory_space<semaphore_mem>>
      %44 = tpu.memref_squeeze %43 : memref<1x!tpu.dma_semaphore, #tpu.memory_space<semaphore_mem>> -> memref<!tpu.dma_semaphore, #tpu.memory_space<semaphore_mem>>
      tpu.enqueue_dma source(%41 : memref<1x32xf32, #tpu.memory_space<any>>) target(%42 : memref<1x32xf32, #tpu.memory_space<vmem>>) target_semaphore(%44 : memref<!tpu.dma_semaphore, #tpu.memory_space<semaphore_mem>>)
      %c2 = arith.constant 2 : index
      %c0_33 = arith.constant 0 : index
      %45 = memref.load %arg1[%c2, %c0_33] : memref<8x4xi32, #tpu.memory_space<smem>>
      %c0_i32_34 = arith.constant 0 : i32
      %c511_i32_35 = arith.constant 511 : i32
      %46 = arith.maxsi %c0_i32_34, %45 : i32
      %47 = arith.minsi %c511_i32_35, %46 : i32
      %c0_i32_36 = arith.constant 0 : i32
      %c0_i32_37 = arith.constant 0 : i32
      %48 = tpu.memref_slice %arg2[%47, %c0_i32_37] : memref<512x32xf32, #tpu.memory_space<any>> -> memref<1x32xf32, #tpu.memory_space<any>>
      %c2_i32 = arith.constant 2 : i32
      %c0_i32_38 = arith.constant 0 : i32
      %49 = tpu.memref_slice %arg8[%c2_i32, %c0_i32_38] : memref<32x32xf32, #tpu.memory_space<vmem>> -> memref<1x32xf32, #tpu.memory_space<vmem>>
      %50 = tpu.memref_slice %arg9[%c0_i32_36] : memref<1x!tpu.dma_semaphore, #tpu.memory_space<semaphore_mem>> -> memref<1x!tpu.dma_semaphore, #tpu.memory_space<semaphore_mem>>
      %51 = tpu.memref_squeeze %50 : memref<1x!tpu.dma_semaphore, #tpu.memory_space<semaphore_mem>> -> memref<!tpu.dma_semaphore, #tpu.memory_space<semaphore_mem>>
      tpu.enqueue_dma source(%48 : memref<1x32xf32, #tpu.memory_space<any>>) target(%49 : memref<1x32xf32, #tpu.memory_space<vmem>>) target_semaphore(%51 : memref<!tpu.dma_semaphore, #tpu.memory_space<semaphore_mem>>)
      %c3 = arith.constant 3 : index
      %c0_39 = arith.constant 0 : index
      %52 = memref.load %arg1[%c3, %c0_39] : memref<8x4xi32, #tpu.memory_space<smem>>
      %c0_i32_40 = arith.constant 0 : i32
      %c511_i32_41 = arith.constant 511 : i32
      %53 = arith.maxsi %c0_i32_40, %52 : i32
      %54 = arith.minsi %c511_i32_41, %53 : i32
      %c0_i32_42 = arith.constant 0 : i32
      %c0_i32_43 = arith.constant 0 : i32
      %55 = tpu.memref_slice %arg2[%54, %c0_i32_43] : memref<512x32xf32, #tpu.memory_space<any>> -> memref<1x32xf32, #tpu.memory_space<any>>
      %c3_i32 = arith.constant 3 : i32
      %c0_i32_44 = arith.constant 0 : i32
      %56 = tpu.memref_slice %arg8[%c3_i32, %c0_i32_44] : memref<32x32xf32, #tpu.memory_space<vmem>> -> memref<1x32xf32, #tpu.memory_space<vmem>>
      %57 = tpu.memref_slice %arg9[%c0_i32_42] : memref<1x!tpu.dma_semaphore, #tpu.memory_space<semaphore_mem>> -> memref<1x!tpu.dma_semaphore, #tpu.memory_space<semaphore_mem>>
      %58 = tpu.memref_squeeze %57 : memref<1x!tpu.dma_semaphore, #tpu.memory_space<semaphore_mem>> -> memref<!tpu.dma_semaphore, #tpu.memory_space<semaphore_mem>>
      tpu.enqueue_dma source(%55 : memref<1x32xf32, #tpu.memory_space<any>>) target(%56 : memref<1x32xf32, #tpu.memory_space<vmem>>) target_semaphore(%58 : memref<!tpu.dma_semaphore, #tpu.memory_space<semaphore_mem>>)
      %c4 = arith.constant 4 : index
      %c0_45 = arith.constant 0 : index
      %59 = memref.load %arg1[%c4, %c0_45] : memref<8x4xi32, #tpu.memory_space<smem>>
      %c0_i32_46 = arith.constant 0 : i32
      %c511_i32_47 = arith.constant 511 : i32
      %60 = arith.maxsi %c0_i32_46, %59 : i32
      %61 = arith.minsi %c511_i32_47, %60 : i32
      %c0_i32_48 = arith.constant 0 : i32
      %c0_i32_49 = arith.constant 0 : i32
      %62 = tpu.memref_slice %arg2[%61, %c0_i32_49] : memref<512x32xf32, #tpu.memory_space<any>> -> memref<1x32xf32, #tpu.memory_space<any>>
      %c4_i32 = arith.constant 4 : i32
      %c0_i32_50 = arith.constant 0 : i32
      %63 = tpu.memref_slice %arg8[%c4_i32, %c0_i32_50] : memref<32x32xf32, #tpu.memory_space<vmem>> -> memref<1x32xf32, #tpu.memory_space<vmem>>
      %64 = tpu.memref_slice %arg9[%c0_i32_48] : memref<1x!tpu.dma_semaphore, #tpu.memory_space<semaphore_mem>> -> memref<1x!tpu.dma_semaphore, #tpu.memory_space<semaphore_mem>>
      %65 = tpu.memref_squeeze %64 : memref<1x!tpu.dma_semaphore, #tpu.memory_space<semaphore_mem>> -> memref<!tpu.dma_semaphore, #tpu.memory_space<semaphore_mem>>
      tpu.enqueue_dma source(%62 : memref<1x32xf32, #tpu.memory_space<any>>) target(%63 : memref<1x32xf32, #tpu.memory_space<vmem>>) target_semaphore(%65 : memref<!tpu.dma_semaphore, #tpu.memory_space<semaphore_mem>>)
      %c5 = arith.constant 5 : index
      %c0_51 = arith.constant 0 : index
      %66 = memref.load %arg1[%c5, %c0_51] : memref<8x4xi32, #tpu.memory_space<smem>>
      %c0_i32_52 = arith.constant 0 : i32
      %c511_i32_53 = arith.constant 511 : i32
      %67 = arith.maxsi %c0_i32_52, %66 : i32
      %68 = arith.minsi %c511_i32_53, %67 : i32
      %c0_i32_54 = arith.constant 0 : i32
      %c0_i32_55 = arith.constant 0 : i32
      %69 = tpu.memref_slice %arg2[%68, %c0_i32_55] : memref<512x32xf32, #tpu.memory_space<any>> -> memref<1x32xf32, #tpu.memory_space<any>>
      %c5_i32 = arith.constant 5 : i32
      %c0_i32_56 = arith.constant 0 : i32
      %70 = tpu.memref_slice %arg8[%c5_i32, %c0_i32_56] : memref<32x32xf32, #tpu.memory_space<vmem>> -> memref<1x32xf32, #tpu.memory_space<vmem>>
      %71 = tpu.memref_slice %arg9[%c0_i32_54] : memref<1x!tpu.dma_semaphore, #tpu.memory_space<semaphore_mem>> -> memref<1x!tpu.dma_semaphore, #tpu.memory_space<semaphore_mem>>
      %72 = tpu.memref_squeeze %71 : memref<1x!tpu.dma_semaphore, #tpu.memory_space<semaphore_mem>> -> memref<!tpu.dma_semaphore, #tpu.memory_space<semaphore_mem>>
      tpu.enqueue_dma source(%69 : memref<1x32xf32, #tpu.memory_space<any>>) target(%70 : memref<1x32xf32, #tpu.memory_space<vmem>>) target_semaphore(%72 : memref<!tpu.dma_semaphore, #tpu.memory_space<semaphore_mem>>)
      %c6 = arith.constant 6 : index
      %c0_57 = arith.constant 0 : index
      %73 = memref.load %arg1[%c6, %c0_57] : memref<8x4xi32, #tpu.memory_space<smem>>
      %c0_i32_58 = arith.constant 0 : i32
      %c511_i32_59 = arith.constant 511 : i32
      %74 = arith.maxsi %c0_i32_58, %73 : i32
      %75 = arith.minsi %c511_i32_59, %74 : i32
      %c0_i32_60 = arith.constant 0 : i32
      %c0_i32_61 = arith.constant 0 : i32
      %76 = tpu.memref_slice %arg2[%75, %c0_i32_61] : memref<512x32xf32, #tpu.memory_space<any>> -> memref<1x32xf32, #tpu.memory_space<any>>
      %c6_i32 = arith.constant 6 : i32
      %c0_i32_62 = arith.constant 0 : i32
      %77 = tpu.memref_slice %arg8[%c6_i32, %c0_i32_62] : memref<32x32xf32, #tpu.memory_space<vmem>> -> memref<1x32xf32, #tpu.memory_space<vmem>>
      %78 = tpu.memref_slice %arg9[%c0_i32_60] : memref<1x!tpu.dma_semaphore, #tpu.memory_space<semaphore_mem>> -> memref<1x!tpu.dma_semaphore, #tpu.memory_space<semaphore_mem>>
      %79 = tpu.memref_squeeze %78 : memref<1x!tpu.dma_semaphore, #tpu.memory_space<semaphore_mem>> -> memref<!tpu.dma_semaphore, #tpu.memory_space<semaphore_mem>>
      tpu.enqueue_dma source(%76 : memref<1x32xf32, #tpu.memory_space<any>>) target(%77 : memref<1x32xf32, #tpu.memory_space<vmem>>) target_semaphore(%79 : memref<!tpu.dma_semaphore, #tpu.memory_space<semaphore_mem>>)
      %c7 = arith.constant 7 : index
      %c0_63 = arith.constant 0 : index
      %80 = memref.load %arg1[%c7, %c0_63] : memref<8x4xi32, #tpu.memory_space<smem>>
      %c0_i32_64 = arith.constant 0 : i32
      %c511_i32_65 = arith.constant 511 : i32
      %81 = arith.maxsi %c0_i32_64, %80 : i32
      %82 = arith.minsi %c511_i32_65, %81 : i32
      %c0_i32_66 = arith.constant 0 : i32
      %c0_i32_67 = arith.constant 0 : i32
      %83 = tpu.memref_slice %arg2[%82, %c0_i32_67] : memref<512x32xf32, #tpu.memory_space<any>> -> memref<1x32xf32, #tpu.memory_space<any>>
      %c7_i32 = arith.constant 7 : i32
      %c0_i32_68 = arith.constant 0 : i32
      %84 = tpu.memref_slice %arg8[%c7_i32, %c0_i32_68] : memref<32x32xf32, #tpu.memory_space<vmem>> -> memref<1x32xf32, #tpu.memory_space<vmem>>
      %85 = tpu.memref_slice %arg9[%c0_i32_66] : memref<1x!tpu.dma_semaphore, #tpu.memory_space<semaphore_mem>> -> memref<1x!tpu.dma_semaphore, #tpu.memory_space<semaphore_mem>>
      %86 = tpu.memref_squeeze %85 : memref<1x!tpu.dma_semaphore, #tpu.memory_space<semaphore_mem>> -> memref<!tpu.dma_semaphore, #tpu.memory_space<semaphore_mem>>
      tpu.enqueue_dma source(%83 : memref<1x32xf32, #tpu.memory_space<any>>) target(%84 : memref<1x32xf32, #tpu.memory_space<vmem>>) target_semaphore(%86 : memref<!tpu.dma_semaphore, #tpu.memory_space<semaphore_mem>>)
      %c0_69 = arith.constant 0 : index
      %c1_70 = arith.constant 1 : index
      %87 = memref.load %arg1[%c0_69, %c1_70] : memref<8x4xi32, #tpu.memory_space<smem>>
      %c0_i32_71 = arith.constant 0 : i32
      %c511_i32_72 = arith.constant 511 : i32
      %88 = arith.maxsi %c0_i32_71, %87 : i32
      %89 = arith.minsi %c511_i32_72, %88 : i32
      %c0_i32_73 = arith.constant 0 : i32
      %c0_i32_74 = arith.constant 0 : i32
      %90 = tpu.memref_slice %arg2[%89, %c0_i32_74] : memref<512x32xf32, #tpu.memory_space<any>> -> memref<1x32xf32, #tpu.memory_space<any>>
      %c8_i32 = arith.constant 8 : i32
      %c0_i32_75 = arith.constant 0 : i32
      %91 = tpu.memref_slice %arg8[%c8_i32, %c0_i32_75] : memref<32x32xf32, #tpu.memory_space<vmem>> -> memref<1x32xf32, #tpu.memory_space<vmem>>
      %92 = tpu.memref_slice %arg9[%c0_i32_73] : memref<1x!tpu.dma_semaphore, #tpu.memory_space<semaphore_mem>> -> memref<1x!tpu.dma_semaphore, #tpu.memory_space<semaphore_mem>>
      %93 = tpu.memref_squeeze %92 : memref<1x!tpu.dma_semaphore, #tpu.memory_space<semaphore_mem>> -> memref<!tpu.dma_semaphore, #tpu.memory_space<semaphore_mem>>
      tpu.enqueue_dma source(%90 : memref<1x32xf32, #tpu.memory_space<any>>) target(%91 : memref<1x32xf32, #tpu.memory_space<vmem>>) target_semaphore(%93 : memref<!tpu.dma_semaphore, #tpu.memory_space<semaphore_mem>>)
      %c1_76 = arith.constant 1 : index
      %c1_77 = arith.constant 1 : index
      %94 = memref.load %arg1[%c1_76, %c1_77] : memref<8x4xi32, #tpu.memory_space<smem>>
      %c0_i32_78 = arith.constant 0 : i32
      %c511_i32_79 = arith.constant 511 : i32
      %95 = arith.maxsi %c0_i32_78, %94 : i32
      %96 = arith.minsi %c511_i32_79, %95 : i32
      %c0_i32_80 = arith.constant 0 : i32
      %c0_i32_81 = arith.constant 0 : i32
      %97 = tpu.memref_slice %arg2[%96, %c0_i32_81] : memref<512x32xf32, #tpu.memory_space<any>> -> memref<1x32xf32, #tpu.memory_space<any>>
      %c9_i32 = arith.constant 9 : i32
      %c0_i32_82 = arith.constant 0 : i32
      %98 = tpu.memref_slice %arg8[%c9_i32, %c0_i32_82] : memref<32x32xf32, #tpu.memory_space<vmem>> -> memref<1x32xf32, #tpu.memory_space<vmem>>
      %99 = tpu.memref_slice %arg9[%c0_i32_80] : memref<1x!tpu.dma_semaphore, #tpu.memory_space<semaphore_mem>> -> memref<1x!tpu.dma_semaphore, #tpu.memory_space<semaphore_mem>>
      %100 = tpu.memref_squeeze %99 : memref<1x!tpu.dma_semaphore, #tpu.memory_space<semaphore_mem>> -> memref<!tpu.dma_semaphore, #tpu.memory_space<semaphore_mem>>
      tpu.enqueue_dma source(%97 : memref<1x32xf32, #tpu.memory_space<any>>) target(%98 : memref<1x32xf32, #tpu.memory_space<vmem>>) target_semaphore(%100 : memref<!tpu.dma_semaphore, #tpu.memory_space<semaphore_mem>>)
      %c2_83 = arith.constant 2 : index
      %c1_84 = arith.constant 1 : index
      %101 = memref.load %arg1[%c2_83, %c1_84] : memref<8x4xi32, #tpu.memory_space<smem>>
      %c0_i32_85 = arith.constant 0 : i32
      %c511_i32_86 = arith.constant 511 : i32
      %102 = arith.maxsi %c0_i32_85, %101 : i32
      %103 = arith.minsi %c511_i32_86, %102 : i32
      %c0_i32_87 = arith.constant 0 : i32
      %c0_i32_88 = arith.constant 0 : i32
      %104 = tpu.memref_slice %arg2[%103, %c0_i32_88] : memref<512x32xf32, #tpu.memory_space<any>> -> memref<1x32xf32, #tpu.memory_space<any>>
      %c10_i32 = arith.constant 10 : i32
      %c0_i32_89 = arith.constant 0 : i32
      %105 = tpu.memref_slice %arg8[%c10_i32, %c0_i32_89] : memref<32x32xf32, #tpu.memory_space<vmem>> -> memref<1x32xf32, #tpu.memory_space<vmem>>
      %106 = tpu.memref_slice %arg9[%c0_i32_87] : memref<1x!tpu.dma_semaphore, #tpu.memory_space<semaphore_mem>> -> memref<1x!tpu.dma_semaphore, #tpu.memory_space<semaphore_mem>>
      %107 = tpu.memref_squeeze %106 : memref<1x!tpu.dma_semaphore, #tpu.memory_space<semaphore_mem>> -> memref<!tpu.dma_semaphore, #tpu.memory_space<semaphore_mem>>
      tpu.enqueue_dma source(%104 : memref<1x32xf32, #tpu.memory_space<any>>) target(%105 : memref<1x32xf32, #tpu.memory_space<vmem>>) target_semaphore(%107 : memref<!tpu.dma_semaphore, #tpu.memory_space<semaphore_mem>>)
      %c3_90 = arith.constant 3 : index
      %c1_91 = arith.constant 1 : index
      %108 = memref.load %arg1[%c3_90, %c1_91] : memref<8x4xi32, #tpu.memory_space<smem>>
      %c0_i32_92 = arith.constant 0 : i32
      %c511_i32_93 = arith.constant 511 : i32
      %109 = arith.maxsi %c0_i32_92, %108 : i32
      %110 = arith.minsi %c511_i32_93, %109 : i32
      %c0_i32_94 = arith.constant 0 : i32
      %c0_i32_95 = arith.constant 0 : i32
      %111 = tpu.memref_slice %arg2[%110, %c0_i32_95] : memref<512x32xf32, #tpu.memory_space<any>> -> memref<1x32xf32, #tpu.memory_space<any>>
      %c11_i32 = arith.constant 11 : i32
      %c0_i32_96 = arith.constant 0 : i32
      %112 = tpu.memref_slice %arg8[%c11_i32, %c0_i32_96] : memref<32x32xf32, #tpu.memory_space<vmem>> -> memref<1x32xf32, #tpu.memory_space<vmem>>
      %113 = tpu.memref_slice %arg9[%c0_i32_94] : memref<1x!tpu.dma_semaphore, #tpu.memory_space<semaphore_mem>> -> memref<1x!tpu.dma_semaphore, #tpu.memory_space<semaphore_mem>>
      %114 = tpu.memref_squeeze %113 : memref<1x!tpu.dma_semaphore, #tpu.memory_space<semaphore_mem>> -> memref<!tpu.dma_semaphore, #tpu.memory_space<semaphore_mem>>
      tpu.enqueue_dma source(%111 : memref<1x32xf32, #tpu.memory_space<any>>) target(%112 : memref<1x32xf32, #tpu.memory_space<vmem>>) target_semaphore(%114 : memref<!tpu.dma_semaphore, #tpu.memory_space<semaphore_mem>>)
      %c4_97 = arith.constant 4 : index
      %c1_98 = arith.constant 1 : index
      %115 = memref.load %arg1[%c4_97, %c1_98] : memref<8x4xi32, #tpu.memory_space<smem>>
      %c0_i32_99 = arith.constant 0 : i32
      %c511_i32_100 = arith.constant 511 : i32
      %116 = arith.maxsi %c0_i32_99, %115 : i32
      %117 = arith.minsi %c511_i32_100, %116 : i32
      %c0_i32_101 = arith.constant 0 : i32
      %c0_i32_102 = arith.constant 0 : i32
      %118 = tpu.memref_slice %arg2[%117, %c0_i32_102] : memref<512x32xf32, #tpu.memory_space<any>> -> memref<1x32xf32, #tpu.memory_space<any>>
      %c12_i32 = arith.constant 12 : i32
      %c0_i32_103 = arith.constant 0 : i32
      %119 = tpu.memref_slice %arg8[%c12_i32, %c0_i32_103] : memref<32x32xf32, #tpu.memory_space<vmem>> -> memref<1x32xf32, #tpu.memory_space<vmem>>
      %120 = tpu.memref_slice %arg9[%c0_i32_101] : memref<1x!tpu.dma_semaphore, #tpu.memory_space<semaphore_mem>> -> memref<1x!tpu.dma_semaphore, #tpu.memory_space<semaphore_mem>>
      %121 = tpu.memref_squeeze %120 : memref<1x!tpu.dma_semaphore, #tpu.memory_space<semaphore_mem>> -> memref<!tpu.dma_semaphore, #tpu.memory_space<semaphore_mem>>
      tpu.enqueue_dma source(%118 : memref<1x32xf32, #tpu.memory_space<any>>) target(%119 : memref<1x32xf32, #tpu.memory_space<vmem>>) target_semaphore(%121 : memref<!tpu.dma_semaphore, #tpu.memory_space<semaphore_mem>>)
      %c5_104 = arith.constant 5 : index
      %c1_105 = arith.constant 1 : index
      %122 = memref.load %arg1[%c5_104, %c1_105] : memref<8x4xi32, #tpu.memory_space<smem>>
      %c0_i32_106 = arith.constant 0 : i32
      %c511_i32_107 = arith.constant 511 : i32
      %123 = arith.maxsi %c0_i32_106, %122 : i32
      %124 = arith.minsi %c511_i32_107, %123 : i32
      %c0_i32_108 = arith.constant 0 : i32
      %c0_i32_109 = arith.constant 0 : i32
      %125 = tpu.memref_slice %arg2[%124, %c0_i32_109] : memref<512x32xf32, #tpu.memory_space<any>> -> memref<1x32xf32, #tpu.memory_space<any>>
      %c13_i32 = arith.constant 13 : i32
      %c0_i32_110 = arith.constant 0 : i32
      %126 = tpu.memref_slice %arg8[%c13_i32, %c0_i32_110] : memref<32x32xf32, #tpu.memory_space<vmem>> -> memref<1x32xf32, #tpu.memory_space<vmem>>
      %127 = tpu.memref_slice %arg9[%c0_i32_108] : memref<1x!tpu.dma_semaphore, #tpu.memory_space<semaphore_mem>> -> memref<1x!tpu.dma_semaphore, #tpu.memory_space<semaphore_mem>>
      %128 = tpu.memref_squeeze %127 : memref<1x!tpu.dma_semaphore, #tpu.memory_space<semaphore_mem>> -> memref<!tpu.dma_semaphore, #tpu.memory_space<semaphore_mem>>
      tpu.enqueue_dma source(%125 : memref<1x32xf32, #tpu.memory_space<any>>) target(%126 : memref<1x32xf32, #tpu.memory_space<vmem>>) target_semaphore(%128 : memref<!tpu.dma_semaphore, #tpu.memory_space<semaphore_mem>>)
      %c6_111 = arith.constant 6 : index
      %c1_112 = arith.constant 1 : index
      %129 = memref.load %arg1[%c6_111, %c1_112] : memref<8x4xi32, #tpu.memory_space<smem>>
      %c0_i32_113 = arith.constant 0 : i32
      %c511_i32_114 = arith.constant 511 : i32
      %130 = arith.maxsi %c0_i32_113, %129 : i32
      %131 = arith.minsi %c511_i32_114, %130 : i32
      %c0_i32_115 = arith.constant 0 : i32
      %c0_i32_116 = arith.constant 0 : i32
      %132 = tpu.memref_slice %arg2[%131, %c0_i32_116] : memref<512x32xf32, #tpu.memory_space<any>> -> memref<1x32xf32, #tpu.memory_space<any>>
      %c14_i32 = arith.constant 14 : i32
      %c0_i32_117 = arith.constant 0 : i32
      %133 = tpu.memref_slice %arg8[%c14_i32, %c0_i32_117] : memref<32x32xf32, #tpu.memory_space<vmem>> -> memref<1x32xf32, #tpu.memory_space<vmem>>
      %134 = tpu.memref_slice %arg9[%c0_i32_115] : memref<1x!tpu.dma_semaphore, #tpu.memory_space<semaphore_mem>> -> memref<1x!tpu.dma_semaphore, #tpu.memory_space<semaphore_mem>>
      %135 = tpu.memref_squeeze %134 : memref<1x!tpu.dma_semaphore, #tpu.memory_space<semaphore_mem>> -> memref<!tpu.dma_semaphore, #tpu.memory_space<semaphore_mem>>
      tpu.enqueue_dma source(%132 : memref<1x32xf32, #tpu.memory_space<any>>) target(%133 : memref<1x32xf32, #tpu.memory_space<vmem>>) target_semaphore(%135 : memref<!tpu.dma_semaphore, #tpu.memory_space<semaphore_mem>>)
      %c7_118 = arith.constant 7 : index
      %c1_119 = arith.constant 1 : index
      %136 = memref.load %arg1[%c7_118, %c1_119] : memref<8x4xi32, #tpu.memory_space<smem>>
      %c0_i32_120 = arith.constant 0 : i32
      %c511_i32_121 = arith.constant 511 : i32
      %137 = arith.maxsi %c0_i32_120, %136 : i32
      %138 = arith.minsi %c511_i32_121, %137 : i32
      %c0_i32_122 = arith.constant 0 : i32
      %c0_i32_123 = arith.constant 0 : i32
      %139 = tpu.memref_slice %arg2[%138, %c0_i32_123] : memref<512x32xf32, #tpu.memory_space<any>> -> memref<1x32xf32, #tpu.memory_space<any>>
      %c15_i32 = arith.constant 15 : i32
      %c0_i32_124 = arith.constant 0 : i32
      %140 = tpu.memref_slice %arg8[%c15_i32, %c0_i32_124] : memref<32x32xf32, #tpu.memory_space<vmem>> -> memref<1x32xf32, #tpu.memory_space<vmem>>
      %141 = tpu.memref_slice %arg9[%c0_i32_122] : memref<1x!tpu.dma_semaphore, #tpu.memory_space<semaphore_mem>> -> memref<1x!tpu.dma_semaphore, #tpu.memory_space<semaphore_mem>>
      %142 = tpu.memref_squeeze %141 : memref<1x!tpu.dma_semaphore, #tpu.memory_space<semaphore_mem>> -> memref<!tpu.dma_semaphore, #tpu.memory_space<semaphore_mem>>
      tpu.enqueue_dma source(%139 : memref<1x32xf32, #tpu.memory_space<any>>) target(%140 : memref<1x32xf32, #tpu.memory_space<vmem>>) target_semaphore(%142 : memref<!tpu.dma_semaphore, #tpu.memory_space<semaphore_mem>>)
      %c0_125 = arith.constant 0 : index
      %c2_126 = arith.constant 2 : index
      %143 = memref.load %arg1[%c0_125, %c2_126] : memref<8x4xi32, #tpu.memory_space<smem>>
      %c0_i32_127 = arith.constant 0 : i32
      %c511_i32_128 = arith.constant 511 : i32
      %144 = arith.maxsi %c0_i32_127, %143 : i32
      %145 = arith.minsi %c511_i32_128, %144 : i32
      %c0_i32_129 = arith.constant 0 : i32
      %c0_i32_130 = arith.constant 0 : i32
      %146 = tpu.memref_slice %arg2[%145, %c0_i32_130] : memref<512x32xf32, #tpu.memory_space<any>> -> memref<1x32xf32, #tpu.memory_space<any>>
      %c16_i32 = arith.constant 16 : i32
      %c0_i32_131 = arith.constant 0 : i32
      %147 = tpu.memref_slice %arg8[%c16_i32, %c0_i32_131] : memref<32x32xf32, #tpu.memory_space<vmem>> -> memref<1x32xf32, #tpu.memory_space<vmem>>
      %148 = tpu.memref_slice %arg9[%c0_i32_129] : memref<1x!tpu.dma_semaphore, #tpu.memory_space<semaphore_mem>> -> memref<1x!tpu.dma_semaphore, #tpu.memory_space<semaphore_mem>>
      %149 = tpu.memref_squeeze %148 : memref<1x!tpu.dma_semaphore, #tpu.memory_space<semaphore_mem>> -> memref<!tpu.dma_semaphore, #tpu.memory_space<semaphore_mem>>
      tpu.enqueue_dma source(%146 : memref<1x32xf32, #tpu.memory_space<any>>) target(%147 : memref<1x32xf32, #tpu.memory_space<vmem>>) target_semaphore(%149 : memref<!tpu.dma_semaphore, #tpu.memory_space<semaphore_mem>>)
      %c1_132 = arith.constant 1 : index
      %c2_133 = arith.constant 2 : index
      %150 = memref.load %arg1[%c1_132, %c2_133] : memref<8x4xi32, #tpu.memory_space<smem>>
      %c0_i32_134 = arith.constant 0 : i32
      %c511_i32_135 = arith.constant 511 : i32
      %151 = arith.maxsi %c0_i32_134, %150 : i32
      %152 = arith.minsi %c511_i32_135, %151 : i32
      %c0_i32_136 = arith.constant 0 : i32
      %c0_i32_137 = arith.constant 0 : i32
      %153 = tpu.memref_slice %arg2[%152, %c0_i32_137] : memref<512x32xf32, #tpu.memory_space<any>> -> memref<1x32xf32, #tpu.memory_space<any>>
      %c17_i32 = arith.constant 17 : i32
      %c0_i32_138 = arith.constant 0 : i32
      %154 = tpu.memref_slice %arg8[%c17_i32, %c0_i32_138] : memref<32x32xf32, #tpu.memory_space<vmem>> -> memref<1x32xf32, #tpu.memory_space<vmem>>
      %155 = tpu.memref_slice %arg9[%c0_i32_136] : memref<1x!tpu.dma_semaphore, #tpu.memory_space<semaphore_mem>> -> memref<1x!tpu.dma_semaphore, #tpu.memory_space<semaphore_mem>>
      %156 = tpu.memref_squeeze %155 : memref<1x!tpu.dma_semaphore, #tpu.memory_space<semaphore_mem>> -> memref<!tpu.dma_semaphore, #tpu.memory_space<semaphore_mem>>
      tpu.enqueue_dma source(%153 : memref<1x32xf32, #tpu.memory_space<any>>) target(%154 : memref<1x32xf32, #tpu.memory_space<vmem>>) target_semaphore(%156 : memref<!tpu.dma_semaphore, #tpu.memory_space<semaphore_mem>>)
      %c2_139 = arith.constant 2 : index
      %c2_140 = arith.constant 2 : index
      %157 = memref.load %arg1[%c2_139, %c2_140] : memref<8x4xi32, #tpu.memory_space<smem>>
      %c0_i32_141 = arith.constant 0 : i32
      %c511_i32_142 = arith.constant 511 : i32
      %158 = arith.maxsi %c0_i32_141, %157 : i32
      %159 = arith.minsi %c511_i32_142, %158 : i32
      %c0_i32_143 = arith.constant 0 : i32
      %c0_i32_144 = arith.constant 0 : i32
      %160 = tpu.memref_slice %arg2[%159, %c0_i32_144] : memref<512x32xf32, #tpu.memory_space<any>> -> memref<1x32xf32, #tpu.memory_space<any>>
      %c18_i32 = arith.constant 18 : i32
      %c0_i32_145 = arith.constant 0 : i32
      %161 = tpu.memref_slice %arg8[%c18_i32, %c0_i32_145] : memref<32x32xf32, #tpu.memory_space<vmem>> -> memref<1x32xf32, #tpu.memory_space<vmem>>
      %162 = tpu.memref_slice %arg9[%c0_i32_143] : memref<1x!tpu.dma_semaphore, #tpu.memory_space<semaphore_mem>> -> memref<1x!tpu.dma_semaphore, #tpu.memory_space<semaphore_mem>>
      %163 = tpu.memref_squeeze %162 : memref<1x!tpu.dma_semaphore, #tpu.memory_space<semaphore_mem>> -> memref<!tpu.dma_semaphore, #tpu.memory_space<semaphore_mem>>
      tpu.enqueue_dma source(%160 : memref<1x32xf32, #tpu.memory_space<any>>) target(%161 : memref<1x32xf32, #tpu.memory_space<vmem>>) target_semaphore(%163 : memref<!tpu.dma_semaphore, #tpu.memory_space<semaphore_mem>>)
      %c3_146 = arith.constant 3 : index
      %c2_147 = arith.constant 2 : index
      %164 = memref.load %arg1[%c3_146, %c2_147] : memref<8x4xi32, #tpu.memory_space<smem>>
      %c0_i32_148 = arith.constant 0 : i32
      %c511_i32_149 = arith.constant 511 : i32
      %165 = arith.maxsi %c0_i32_148, %164 : i32
      %166 = arith.minsi %c511_i32_149, %165 : i32
      %c0_i32_150 = arith.constant 0 : i32
      %c0_i32_151 = arith.constant 0 : i32
      %167 = tpu.memref_slice %arg2[%166, %c0_i32_151] : memref<512x32xf32, #tpu.memory_space<any>> -> memref<1x32xf32, #tpu.memory_space<any>>
      %c19_i32 = arith.constant 19 : i32
      %c0_i32_152 = arith.constant 0 : i32
      %168 = tpu.memref_slice %arg8[%c19_i32, %c0_i32_152] : memref<32x32xf32, #tpu.memory_space<vmem>> -> memref<1x32xf32, #tpu.memory_space<vmem>>
      %169 = tpu.memref_slice %arg9[%c0_i32_150] : memref<1x!tpu.dma_semaphore, #tpu.memory_space<semaphore_mem>> -> memref<1x!tpu.dma_semaphore, #tpu.memory_space<semaphore_mem>>
      %170 = tpu.memref_squeeze %169 : memref<1x!tpu.dma_semaphore, #tpu.memory_space<semaphore_mem>> -> memref<!tpu.dma_semaphore, #tpu.memory_space<semaphore_mem>>
      tpu.enqueue_dma source(%167 : memref<1x32xf32, #tpu.memory_space<any>>) target(%168 : memref<1x32xf32, #tpu.memory_space<vmem>>) target_semaphore(%170 : memref<!tpu.dma_semaphore, #tpu.memory_space<semaphore_mem>>)
      %c4_153 = arith.constant 4 : index
      %c2_154 = arith.constant 2 : index
      %171 = memref.load %arg1[%c4_153, %c2_154] : memref<8x4xi32, #tpu.memory_space<smem>>
      %c0_i32_155 = arith.constant 0 : i32
      %c511_i32_156 = arith.constant 511 : i32
      %172 = arith.maxsi %c0_i32_155, %171 : i32
      %173 = arith.minsi %c511_i32_156, %172 : i32
      %c0_i32_157 = arith.constant 0 : i32
      %c0_i32_158 = arith.constant 0 : i32
      %174 = tpu.memref_slice %arg2[%173, %c0_i32_158] : memref<512x32xf32, #tpu.memory_space<any>> -> memref<1x32xf32, #tpu.memory_space<any>>
      %c20_i32 = arith.constant 20 : i32
      %c0_i32_159 = arith.constant 0 : i32
      %175 = tpu.memref_slice %arg8[%c20_i32, %c0_i32_159] : memref<32x32xf32, #tpu.memory_space<vmem>> -> memref<1x32xf32, #tpu.memory_space<vmem>>
      %176 = tpu.memref_slice %arg9[%c0_i32_157] : memref<1x!tpu.dma_semaphore, #tpu.memory_space<semaphore_mem>> -> memref<1x!tpu.dma_semaphore, #tpu.memory_space<semaphore_mem>>
      %177 = tpu.memref_squeeze %176 : memref<1x!tpu.dma_semaphore, #tpu.memory_space<semaphore_mem>> -> memref<!tpu.dma_semaphore, #tpu.memory_space<semaphore_mem>>
      tpu.enqueue_dma source(%174 : memref<1x32xf32, #tpu.memory_space<any>>) target(%175 : memref<1x32xf32, #tpu.memory_space<vmem>>) target_semaphore(%177 : memref<!tpu.dma_semaphore, #tpu.memory_space<semaphore_mem>>)
      %c5_160 = arith.constant 5 : index
      %c2_161 = arith.constant 2 : index
      %178 = memref.load %arg1[%c5_160, %c2_161] : memref<8x4xi32, #tpu.memory_space<smem>>
      %c0_i32_162 = arith.constant 0 : i32
      %c511_i32_163 = arith.constant 511 : i32
      %179 = arith.maxsi %c0_i32_162, %178 : i32
      %180 = arith.minsi %c511_i32_163, %179 : i32
      %c0_i32_164 = arith.constant 0 : i32
      %c0_i32_165 = arith.constant 0 : i32
      %181 = tpu.memref_slice %arg2[%180, %c0_i32_165] : memref<512x32xf32, #tpu.memory_space<any>> -> memref<1x32xf32, #tpu.memory_space<any>>
      %c21_i32 = arith.constant 21 : i32
      %c0_i32_166 = arith.constant 0 : i32
      %182 = tpu.memref_slice %arg8[%c21_i32, %c0_i32_166] : memref<32x32xf32, #tpu.memory_space<vmem>> -> memref<1x32xf32, #tpu.memory_space<vmem>>
      %183 = tpu.memref_slice %arg9[%c0_i32_164] : memref<1x!tpu.dma_semaphore, #tpu.memory_space<semaphore_mem>> -> memref<1x!tpu.dma_semaphore, #tpu.memory_space<semaphore_mem>>
      %184 = tpu.memref_squeeze %183 : memref<1x!tpu.dma_semaphore, #tpu.memory_space<semaphore_mem>> -> memref<!tpu.dma_semaphore, #tpu.memory_space<semaphore_mem>>
      tpu.enqueue_dma source(%181 : memref<1x32xf32, #tpu.memory_space<any>>) target(%182 : memref<1x32xf32, #tpu.memory_space<vmem>>) target_semaphore(%184 : memref<!tpu.dma_semaphore, #tpu.memory_space<semaphore_mem>>)
      %c6_167 = arith.constant 6 : index
      %c2_168 = arith.constant 2 : index
      %185 = memref.load %arg1[%c6_167, %c2_168] : memref<8x4xi32, #tpu.memory_space<smem>>
      %c0_i32_169 = arith.constant 0 : i32
      %c511_i32_170 = arith.constant 511 : i32
      %186 = arith.maxsi %c0_i32_169, %185 : i32
      %187 = arith.minsi %c511_i32_170, %186 : i32
      %c0_i32_171 = arith.constant 0 : i32
      %c0_i32_172 = arith.constant 0 : i32
      %188 = tpu.memref_slice %arg2[%187, %c0_i32_172] : memref<512x32xf32, #tpu.memory_space<any>> -> memref<1x32xf32, #tpu.memory_space<any>>
      %c22_i32 = arith.constant 22 : i32
      %c0_i32_173 = arith.constant 0 : i32
      %189 = tpu.memref_slice %arg8[%c22_i32, %c0_i32_173] : memref<32x32xf32, #tpu.memory_space<vmem>> -> memref<1x32xf32, #tpu.memory_space<vmem>>
      %190 = tpu.memref_slice %arg9[%c0_i32_171] : memref<1x!tpu.dma_semaphore, #tpu.memory_space<semaphore_mem>> -> memref<1x!tpu.dma_semaphore, #tpu.memory_space<semaphore_mem>>
      %191 = tpu.memref_squeeze %190 : memref<1x!tpu.dma_semaphore, #tpu.memory_space<semaphore_mem>> -> memref<!tpu.dma_semaphore, #tpu.memory_space<semaphore_mem>>
      tpu.enqueue_dma source(%188 : memref<1x32xf32, #tpu.memory_space<any>>) target(%189 : memref<1x32xf32, #tpu.memory_space<vmem>>) target_semaphore(%191 : memref<!tpu.dma_semaphore, #tpu.memory_space<semaphore_mem>>)
      %c7_174 = arith.constant 7 : index
      %c2_175 = arith.constant 2 : index
      %192 = memref.load %arg1[%c7_174, %c2_175] : memref<8x4xi32, #tpu.memory_space<smem>>
      %c0_i32_176 = arith.constant 0 : i32
      %c511_i32_177 = arith.constant 511 : i32
      %193 = arith.maxsi %c0_i32_176, %192 : i32
      %194 = arith.minsi %c511_i32_177, %193 : i32
      %c0_i32_178 = arith.constant 0 : i32
      %c0_i32_179 = arith.constant 0 : i32
      %195 = tpu.memref_slice %arg2[%194, %c0_i32_179] : memref<512x32xf32, #tpu.memory_space<any>> -> memref<1x32xf32, #tpu.memory_space<any>>
      %c23_i32 = arith.constant 23 : i32
      %c0_i32_180 = arith.constant 0 : i32
      %196 = tpu.memref_slice %arg8[%c23_i32, %c0_i32_180] : memref<32x32xf32, #tpu.memory_space<vmem>> -> memref<1x32xf32, #tpu.memory_space<vmem>>
      %197 = tpu.memref_slice %arg9[%c0_i32_178] : memref<1x!tpu.dma_semaphore, #tpu.memory_space<semaphore_mem>> -> memref<1x!tpu.dma_semaphore, #tpu.memory_space<semaphore_mem>>
      %198 = tpu.memref_squeeze %197 : memref<1x!tpu.dma_semaphore, #tpu.memory_space<semaphore_mem>> -> memref<!tpu.dma_semaphore, #tpu.memory_space<semaphore_mem>>
      tpu.enqueue_dma source(%195 : memref<1x32xf32, #tpu.memory_space<any>>) target(%196 : memref<1x32xf32, #tpu.memory_space<vmem>>) target_semaphore(%198 : memref<!tpu.dma_semaphore, #tpu.memory_space<semaphore_mem>>)
      %c0_181 = arith.constant 0 : index
      %c3_182 = arith.constant 3 : index
      %199 = memref.load %arg1[%c0_181, %c3_182] : memref<8x4xi32, #tpu.memory_space<smem>>
      %c0_i32_183 = arith.constant 0 : i32
      %c511_i32_184 = arith.constant 511 : i32
      %200 = arith.maxsi %c0_i32_183, %199 : i32
      %201 = arith.minsi %c511_i32_184, %200 : i32
      %c0_i32_185 = arith.constant 0 : i32
      %c0_i32_186 = arith.constant 0 : i32
      %202 = tpu.memref_slice %arg2[%201, %c0_i32_186] : memref<512x32xf32, #tpu.memory_space<any>> -> memref<1x32xf32, #tpu.memory_space<any>>
      %c24_i32 = arith.constant 24 : i32
      %c0_i32_187 = arith.constant 0 : i32
      %203 = tpu.memref_slice %arg8[%c24_i32, %c0_i32_187] : memref<32x32xf32, #tpu.memory_space<vmem>> -> memref<1x32xf32, #tpu.memory_space<vmem>>
      %204 = tpu.memref_slice %arg9[%c0_i32_185] : memref<1x!tpu.dma_semaphore, #tpu.memory_space<semaphore_mem>> -> memref<1x!tpu.dma_semaphore, #tpu.memory_space<semaphore_mem>>
      %205 = tpu.memref_squeeze %204 : memref<1x!tpu.dma_semaphore, #tpu.memory_space<semaphore_mem>> -> memref<!tpu.dma_semaphore, #tpu.memory_space<semaphore_mem>>
      tpu.enqueue_dma source(%202 : memref<1x32xf32, #tpu.memory_space<any>>) target(%203 : memref<1x32xf32, #tpu.memory_space<vmem>>) target_semaphore(%205 : memref<!tpu.dma_semaphore, #tpu.memory_space<semaphore_mem>>)
      %c1_188 = arith.constant 1 : index
      %c3_189 = arith.constant 3 : index
      %206 = memref.load %arg1[%c1_188, %c3_189] : memref<8x4xi32, #tpu.memory_space<smem>>
      %c0_i32_190 = arith.constant 0 : i32
      %c511_i32_191 = arith.constant 511 : i32
      %207 = arith.maxsi %c0_i32_190, %206 : i32
      %208 = arith.minsi %c511_i32_191, %207 : i32
      %c0_i32_192 = arith.constant 0 : i32
      %c0_i32_193 = arith.constant 0 : i32
      %209 = tpu.memref_slice %arg2[%208, %c0_i32_193] : memref<512x32xf32, #tpu.memory_space<any>> -> memref<1x32xf32, #tpu.memory_space<any>>
      %c25_i32 = arith.constant 25 : i32
      %c0_i32_194 = arith.constant 0 : i32
      %210 = tpu.memref_slice %arg8[%c25_i32, %c0_i32_194] : memref<32x32xf32, #tpu.memory_space<vmem>> -> memref<1x32xf32, #tpu.memory_space<vmem>>
      %211 = tpu.memref_slice %arg9[%c0_i32_192] : memref<1x!tpu.dma_semaphore, #tpu.memory_space<semaphore_mem>> -> memref<1x!tpu.dma_semaphore, #tpu.memory_space<semaphore_mem>>
      %212 = tpu.memref_squeeze %211 : memref<1x!tpu.dma_semaphore, #tpu.memory_space<semaphore_mem>> -> memref<!tpu.dma_semaphore, #tpu.memory_space<semaphore_mem>>
      tpu.enqueue_dma source(%209 : memref<1x32xf32, #tpu.memory_space<any>>) target(%210 : memref<1x32xf32, #tpu.memory_space<vmem>>) target_semaphore(%212 : memref<!tpu.dma_semaphore, #tpu.memory_space<semaphore_mem>>)
      %c2_195 = arith.constant 2 : index
      %c3_196 = arith.constant 3 : index
      %213 = memref.load %arg1[%c2_195, %c3_196] : memref<8x4xi32, #tpu.memory_space<smem>>
      %c0_i32_197 = arith.constant 0 : i32
      %c511_i32_198 = arith.constant 511 : i32
      %214 = arith.maxsi %c0_i32_197, %213 : i32
      %215 = arith.minsi %c511_i32_198, %214 : i32
      %c0_i32_199 = arith.constant 0 : i32
      %c0_i32_200 = arith.constant 0 : i32
      %216 = tpu.memref_slice %arg2[%215, %c0_i32_200] : memref<512x32xf32, #tpu.memory_space<any>> -> memref<1x32xf32, #tpu.memory_space<any>>
      %c26_i32 = arith.constant 26 : i32
      %c0_i32_201 = arith.constant 0 : i32
      %217 = tpu.memref_slice %arg8[%c26_i32, %c0_i32_201] : memref<32x32xf32, #tpu.memory_space<vmem>> -> memref<1x32xf32, #tpu.memory_space<vmem>>
      %218 = tpu.memref_slice %arg9[%c0_i32_199] : memref<1x!tpu.dma_semaphore, #tpu.memory_space<semaphore_mem>> -> memref<1x!tpu.dma_semaphore, #tpu.memory_space<semaphore_mem>>
      %219 = tpu.memref_squeeze %218 : memref<1x!tpu.dma_semaphore, #tpu.memory_space<semaphore_mem>> -> memref<!tpu.dma_semaphore, #tpu.memory_space<semaphore_mem>>
      tpu.enqueue_dma source(%216 : memref<1x32xf32, #tpu.memory_space<any>>) target(%217 : memref<1x32xf32, #tpu.memory_space<vmem>>) target_semaphore(%219 : memref<!tpu.dma_semaphore, #tpu.memory_space<semaphore_mem>>)
      %c3_202 = arith.constant 3 : index
      %c3_203 = arith.constant 3 : index
      %220 = memref.load %arg1[%c3_202, %c3_203] : memref<8x4xi32, #tpu.memory_space<smem>>
      %c0_i32_204 = arith.constant 0 : i32
      %c511_i32_205 = arith.constant 511 : i32
      %221 = arith.maxsi %c0_i32_204, %220 : i32
      %222 = arith.minsi %c511_i32_205, %221 : i32
      %c0_i32_206 = arith.constant 0 : i32
      %c0_i32_207 = arith.constant 0 : i32
      %223 = tpu.memref_slice %arg2[%222, %c0_i32_207] : memref<512x32xf32, #tpu.memory_space<any>> -> memref<1x32xf32, #tpu.memory_space<any>>
      %c27_i32 = arith.constant 27 : i32
      %c0_i32_208 = arith.constant 0 : i32
      %224 = tpu.memref_slice %arg8[%c27_i32, %c0_i32_208] : memref<32x32xf32, #tpu.memory_space<vmem>> -> memref<1x32xf32, #tpu.memory_space<vmem>>
      %225 = tpu.memref_slice %arg9[%c0_i32_206] : memref<1x!tpu.dma_semaphore, #tpu.memory_space<semaphore_mem>> -> memref<1x!tpu.dma_semaphore, #tpu.memory_space<semaphore_mem>>
      %226 = tpu.memref_squeeze %225 : memref<1x!tpu.dma_semaphore, #tpu.memory_space<semaphore_mem>> -> memref<!tpu.dma_semaphore, #tpu.memory_space<semaphore_mem>>
      tpu.enqueue_dma source(%223 : memref<1x32xf32, #tpu.memory_space<any>>) target(%224 : memref<1x32xf32, #tpu.memory_space<vmem>>) target_semaphore(%226 : memref<!tpu.dma_semaphore, #tpu.memory_space<semaphore_mem>>)
      %c4_209 = arith.constant 4 : index
      %c3_210 = arith.constant 3 : index
      %227 = memref.load %arg1[%c4_209, %c3_210] : memref<8x4xi32, #tpu.memory_space<smem>>
      %c0_i32_211 = arith.constant 0 : i32
      %c511_i32_212 = arith.constant 511 : i32
      %228 = arith.maxsi %c0_i32_211, %227 : i32
      %229 = arith.minsi %c511_i32_212, %228 : i32
      %c0_i32_213 = arith.constant 0 : i32
      %c0_i32_214 = arith.constant 0 : i32
      %230 = tpu.memref_slice %arg2[%229, %c0_i32_214] : memref<512x32xf32, #tpu.memory_space<any>> -> memref<1x32xf32, #tpu.memory_space<any>>
      %c28_i32 = arith.constant 28 : i32
      %c0_i32_215 = arith.constant 0 : i32
      %231 = tpu.memref_slice %arg8[%c28_i32, %c0_i32_215] : memref<32x32xf32, #tpu.memory_space<vmem>> -> memref<1x32xf32, #tpu.memory_space<vmem>>
      %232 = tpu.memref_slice %arg9[%c0_i32_213] : memref<1x!tpu.dma_semaphore, #tpu.memory_space<semaphore_mem>> -> memref<1x!tpu.dma_semaphore, #tpu.memory_space<semaphore_mem>>
      %233 = tpu.memref_squeeze %232 : memref<1x!tpu.dma_semaphore, #tpu.memory_space<semaphore_mem>> -> memref<!tpu.dma_semaphore, #tpu.memory_space<semaphore_mem>>
      tpu.enqueue_dma source(%230 : memref<1x32xf32, #tpu.memory_space<any>>) target(%231 : memref<1x32xf32, #tpu.memory_space<vmem>>) target_semaphore(%233 : memref<!tpu.dma_semaphore, #tpu.memory_space<semaphore_mem>>)
      %c5_216 = arith.constant 5 : index
      %c3_217 = arith.constant 3 : index
      %234 = memref.load %arg1[%c5_216, %c3_217] : memref<8x4xi32, #tpu.memory_space<smem>>
      %c0_i32_218 = arith.constant 0 : i32
      %c511_i32_219 = arith.constant 511 : i32
      %235 = arith.maxsi %c0_i32_218, %234 : i32
      %236 = arith.minsi %c511_i32_219, %235 : i32
      %c0_i32_220 = arith.constant 0 : i32
      %c0_i32_221 = arith.constant 0 : i32
      %237 = tpu.memref_slice %arg2[%236, %c0_i32_221] : memref<512x32xf32, #tpu.memory_space<any>> -> memref<1x32xf32, #tpu.memory_space<any>>
      %c29_i32 = arith.constant 29 : i32
      %c0_i32_222 = arith.constant 0 : i32
      %238 = tpu.memref_slice %arg8[%c29_i32, %c0_i32_222] : memref<32x32xf32, #tpu.memory_space<vmem>> -> memref<1x32xf32, #tpu.memory_space<vmem>>
      %239 = tpu.memref_slice %arg9[%c0_i32_220] : memref<1x!tpu.dma_semaphore, #tpu.memory_space<semaphore_mem>> -> memref<1x!tpu.dma_semaphore, #tpu.memory_space<semaphore_mem>>
      %240 = tpu.memref_squeeze %239 : memref<1x!tpu.dma_semaphore, #tpu.memory_space<semaphore_mem>> -> memref<!tpu.dma_semaphore, #tpu.memory_space<semaphore_mem>>
      tpu.enqueue_dma source(%237 : memref<1x32xf32, #tpu.memory_space<any>>) target(%238 : memref<1x32xf32, #tpu.memory_space<vmem>>) target_semaphore(%240 : memref<!tpu.dma_semaphore, #tpu.memory_space<semaphore_mem>>)
      %c6_223 = arith.constant 6 : index
      %c3_224 = arith.constant 3 : index
      %241 = memref.load %arg1[%c6_223, %c3_224] : memref<8x4xi32, #tpu.memory_space<smem>>
      %c0_i32_225 = arith.constant 0 : i32
      %c511_i32_226 = arith.constant 511 : i32
      %242 = arith.maxsi %c0_i32_225, %241 : i32
      %243 = arith.minsi %c511_i32_226, %242 : i32
      %c0_i32_227 = arith.constant 0 : i32
      %c0_i32_228 = arith.constant 0 : i32
      %244 = tpu.memref_slice %arg2[%243, %c0_i32_228] : memref<512x32xf32, #tpu.memory_space<any>> -> memref<1x32xf32, #tpu.memory_space<any>>
      %c30_i32 = arith.constant 30 : i32
      %c0_i32_229 = arith.constant 0 : i32
      %245 = tpu.memref_slice %arg8[%c30_i32, %c0_i32_229] : memref<32x32xf32, #tpu.memory_space<vmem>> -> memref<1x32xf32, #tpu.memory_space<vmem>>
      %246 = tpu.memref_slice %arg9[%c0_i32_227] : memref<1x!tpu.dma_semaphore, #tpu.memory_space<semaphore_mem>> -> memref<1x!tpu.dma_semaphore, #tpu.memory_space<semaphore_mem>>
      %247 = tpu.memref_squeeze %246 : memref<1x!tpu.dma_semaphore, #tpu.memory_space<semaphore_mem>> -> memref<!tpu.dma_semaphore, #tpu.memory_space<semaphore_mem>>
      tpu.enqueue_dma source(%244 : memref<1x32xf32, #tpu.memory_space<any>>) target(%245 : memref<1x32xf32, #tpu.memory_space<vmem>>) target_semaphore(%247 : memref<!tpu.dma_semaphore, #tpu.memory_space<semaphore_mem>>)
      %c7_230 = arith.constant 7 : index
      %c3_231 = arith.constant 3 : index
      %248 = memref.load %arg1[%c7_230, %c3_231] : memref<8x4xi32, #tpu.memory_space<smem>>
      %c0_i32_232 = arith.constant 0 : i32
      %c511_i32_233 = arith.constant 511 : i32
      %249 = arith.maxsi %c0_i32_232, %248 : i32
      %250 = arith.minsi %c511_i32_233, %249 : i32
      %c0_i32_234 = arith.constant 0 : i32
      %c0_i32_235 = arith.constant 0 : i32
      %251 = tpu.memref_slice %arg2[%250, %c0_i32_235] : memref<512x32xf32, #tpu.memory_space<any>> -> memref<1x32xf32, #tpu.memory_space<any>>
      %c31_i32 = arith.constant 31 : i32
      %c0_i32_236 = arith.constant 0 : i32
      %252 = tpu.memref_slice %arg8[%c31_i32, %c0_i32_236] : memref<32x32xf32, #tpu.memory_space<vmem>> -> memref<1x32xf32, #tpu.memory_space<vmem>>
      %253 = tpu.memref_slice %arg9[%c0_i32_234] : memref<1x!tpu.dma_semaphore, #tpu.memory_space<semaphore_mem>> -> memref<1x!tpu.dma_semaphore, #tpu.memory_space<semaphore_mem>>
      %254 = tpu.memref_squeeze %253 : memref<1x!tpu.dma_semaphore, #tpu.memory_space<semaphore_mem>> -> memref<!tpu.dma_semaphore, #tpu.memory_space<semaphore_mem>>
      tpu.enqueue_dma source(%251 : memref<1x32xf32, #tpu.memory_space<any>>) target(%252 : memref<1x32xf32, #tpu.memory_space<vmem>>) target_semaphore(%254 : memref<!tpu.dma_semaphore, #tpu.memory_space<semaphore_mem>>)
      %c0_i32_237 = arith.constant 0 : i32
      %c0_i32_238 = arith.constant 0 : i32
      %255 = tpu.memref_slice %arg2[%33, %c0_i32_238] : memref<512x32xf32, #tpu.memory_space<any>> -> memref<1x32xf32, #tpu.memory_space<any>>
      %c0_i32_239 = arith.constant 0 : i32
      %c0_i32_240 = arith.constant 0 : i32
      %256 = tpu.memref_slice %arg8[%c0_i32_239, %c0_i32_240] : memref<32x32xf32, #tpu.memory_space<vmem>> -> memref<1x32xf32, #tpu.memory_space<vmem>>
      %257 = tpu.memref_slice %arg9[%c0_i32_237] : memref<1x!tpu.dma_semaphore, #tpu.memory_space<semaphore_mem>> -> memref<1x!tpu.dma_semaphore, #tpu.memory_space<semaphore_mem>>
      %258 = tpu.memref_squeeze %257 : memref<1x!tpu.dma_semaphore, #tpu.memory_space<semaphore_mem>> -> memref<!tpu.dma_semaphore, #tpu.memory_space<semaphore_mem>>
      tpu.wait_dma2 semaphore(%258 : memref<!tpu.dma_semaphore, #tpu.memory_space<semaphore_mem>>) src(%255 : memref<1x32xf32, #tpu.memory_space<any>>) dst(%256 : memref<1x32xf32, #tpu.memory_space<vmem>>)
      %c0_i32_241 = arith.constant 0 : i32
      %c0_i32_242 = arith.constant 0 : i32
      %259 = tpu.memref_slice %arg2[%40, %c0_i32_242] : memref<512x32xf32, #tpu.memory_space<any>> -> memref<1x32xf32, #tpu.memory_space<any>>
      %c1_i32_243 = arith.constant 1 : i32
      %c0_i32_244 = arith.constant 0 : i32
      %260 = tpu.memref_slice %arg8[%c1_i32_243, %c0_i32_244] : memref<32x32xf32, #tpu.memory_space<vmem>> -> memref<1x32xf32, #tpu.memory_space<vmem>>
      %261 = tpu.memref_slice %arg9[%c0_i32_241] : memref<1x!tpu.dma_semaphore, #tpu.memory_space<semaphore_mem>> -> memref<1x!tpu.dma_semaphore, #tpu.memory_space<semaphore_mem>>
      %262 = tpu.memref_squeeze %261 : memref<1x!tpu.dma_semaphore, #tpu.memory_space<semaphore_mem>> -> memref<!tpu.dma_semaphore, #tpu.memory_space<semaphore_mem>>
      tpu.wait_dma2 semaphore(%262 : memref<!tpu.dma_semaphore, #tpu.memory_space<semaphore_mem>>) src(%259 : memref<1x32xf32, #tpu.memory_space<any>>) dst(%260 : memref<1x32xf32, #tpu.memory_space<vmem>>)
      %c0_i32_245 = arith.constant 0 : i32
      %c0_i32_246 = arith.constant 0 : i32
      %263 = tpu.memref_slice %arg2[%47, %c0_i32_246] : memref<512x32xf32, #tpu.memory_space<any>> -> memref<1x32xf32, #tpu.memory_space<any>>
      %c2_i32_247 = arith.constant 2 : i32
      %c0_i32_248 = arith.constant 0 : i32
      %264 = tpu.memref_slice %arg8[%c2_i32_247, %c0_i32_248] : memref<32x32xf32, #tpu.memory_space<vmem>> -> memref<1x32xf32, #tpu.memory_space<vmem>>
      %265 = tpu.memref_slice %arg9[%c0_i32_245] : memref<1x!tpu.dma_semaphore, #tpu.memory_space<semaphore_mem>> -> memref<1x!tpu.dma_semaphore, #tpu.memory_space<semaphore_mem>>
      %266 = tpu.memref_squeeze %265 : memref<1x!tpu.dma_semaphore, #tpu.memory_space<semaphore_mem>> -> memref<!tpu.dma_semaphore, #tpu.memory_space<semaphore_mem>>
      tpu.wait_dma2 semaphore(%266 : memref<!tpu.dma_semaphore, #tpu.memory_space<semaphore_mem>>) src(%263 : memref<1x32xf32, #tpu.memory_space<any>>) dst(%264 : memref<1x32xf32, #tpu.memory_space<vmem>>)
      %c0_i32_249 = arith.constant 0 : i32
      %c0_i32_250 = arith.constant 0 : i32
      %267 = tpu.memref_slice %arg2[%54, %c0_i32_250] : memref<512x32xf32, #tpu.memory_space<any>> -> memref<1x32xf32, #tpu.memory_space<any>>
      %c3_i32_251 = arith.constant 3 : i32
      %c0_i32_252 = arith.constant 0 : i32
      %268 = tpu.memref_slice %arg8[%c3_i32_251, %c0_i32_252] : memref<32x32xf32, #tpu.memory_space<vmem>> -> memref<1x32xf32, #tpu.memory_space<vmem>>
      %269 = tpu.memref_slice %arg9[%c0_i32_249] : memref<1x!tpu.dma_semaphore, #tpu.memory_space<semaphore_mem>> -> memref<1x!tpu.dma_semaphore, #tpu.memory_space<semaphore_mem>>
      %270 = tpu.memref_squeeze %269 : memref<1x!tpu.dma_semaphore, #tpu.memory_space<semaphore_mem>> -> memref<!tpu.dma_semaphore, #tpu.memory_space<semaphore_mem>>
      tpu.wait_dma2 semaphore(%270 : memref<!tpu.dma_semaphore, #tpu.memory_space<semaphore_mem>>) src(%267 : memref<1x32xf32, #tpu.memory_space<any>>) dst(%268 : memref<1x32xf32, #tpu.memory_space<vmem>>)
      %c0_i32_253 = arith.constant 0 : i32
      %c0_i32_254 = arith.constant 0 : i32
      %271 = tpu.memref_slice %arg2[%61, %c0_i32_254] : memref<512x32xf32, #tpu.memory_space<any>> -> memref<1x32xf32, #tpu.memory_space<any>>
      %c4_i32_255 = arith.constant 4 : i32
      %c0_i32_256 = arith.constant 0 : i32
      %272 = tpu.memref_slice %arg8[%c4_i32_255, %c0_i32_256] : memref<32x32xf32, #tpu.memory_space<vmem>> -> memref<1x32xf32, #tpu.memory_space<vmem>>
      %273 = tpu.memref_slice %arg9[%c0_i32_253] : memref<1x!tpu.dma_semaphore, #tpu.memory_space<semaphore_mem>> -> memref<1x!tpu.dma_semaphore, #tpu.memory_space<semaphore_mem>>
      %274 = tpu.memref_squeeze %273 : memref<1x!tpu.dma_semaphore, #tpu.memory_space<semaphore_mem>> -> memref<!tpu.dma_semaphore, #tpu.memory_space<semaphore_mem>>
      tpu.wait_dma2 semaphore(%274 : memref<!tpu.dma_semaphore, #tpu.memory_space<semaphore_mem>>) src(%271 : memref<1x32xf32, #tpu.memory_space<any>>) dst(%272 : memref<1x32xf32, #tpu.memory_space<vmem>>)
      %c0_i32_257 = arith.constant 0 : i32
      %c0_i32_258 = arith.constant 0 : i32
      %275 = tpu.memref_slice %arg2[%68, %c0_i32_258] : memref<512x32xf32, #tpu.memory_space<any>> -> memref<1x32xf32, #tpu.memory_space<any>>
      %c5_i32_259 = arith.constant 5 : i32
      %c0_i32_260 = arith.constant 0 : i32
      %276 = tpu.memref_slice %arg8[%c5_i32_259, %c0_i32_260] : memref<32x32xf32, #tpu.memory_space<vmem>> -> memref<1x32xf32, #tpu.memory_space<vmem>>
      %277 = tpu.memref_slice %arg9[%c0_i32_257] : memref<1x!tpu.dma_semaphore, #tpu.memory_space<semaphore_mem>> -> memref<1x!tpu.dma_semaphore, #tpu.memory_space<semaphore_mem>>
      %278 = tpu.memref_squeeze %277 : memref<1x!tpu.dma_semaphore, #tpu.memory_space<semaphore_mem>> -> memref<!tpu.dma_semaphore, #tpu.memory_space<semaphore_mem>>
      tpu.wait_dma2 semaphore(%278 : memref<!tpu.dma_semaphore, #tpu.memory_space<semaphore_mem>>) src(%275 : memref<1x32xf32, #tpu.memory_space<any>>) dst(%276 : memref<1x32xf32, #tpu.memory_space<vmem>>)
      %c0_i32_261 = arith.constant 0 : i32
      %c0_i32_262 = arith.constant 0 : i32
      %279 = tpu.memref_slice %arg2[%75, %c0_i32_262] : memref<512x32xf32, #tpu.memory_space<any>> -> memref<1x32xf32, #tpu.memory_space<any>>
      %c6_i32_263 = arith.constant 6 : i32
      %c0_i32_264 = arith.constant 0 : i32
      %280 = tpu.memref_slice %arg8[%c6_i32_263, %c0_i32_264] : memref<32x32xf32, #tpu.memory_space<vmem>> -> memref<1x32xf32, #tpu.memory_space<vmem>>
      %281 = tpu.memref_slice %arg9[%c0_i32_261] : memref<1x!tpu.dma_semaphore, #tpu.memory_space<semaphore_mem>> -> memref<1x!tpu.dma_semaphore, #tpu.memory_space<semaphore_mem>>
      %282 = tpu.memref_squeeze %281 : memref<1x!tpu.dma_semaphore, #tpu.memory_space<semaphore_mem>> -> memref<!tpu.dma_semaphore, #tpu.memory_space<semaphore_mem>>
      tpu.wait_dma2 semaphore(%282 : memref<!tpu.dma_semaphore, #tpu.memory_space<semaphore_mem>>) src(%279 : memref<1x32xf32, #tpu.memory_space<any>>) dst(%280 : memref<1x32xf32, #tpu.memory_space<vmem>>)
      %c0_i32_265 = arith.constant 0 : i32
      %c0_i32_266 = arith.constant 0 : i32
      %283 = tpu.memref_slice %arg2[%82, %c0_i32_266] : memref<512x32xf32, #tpu.memory_space<any>> -> memref<1x32xf32, #tpu.memory_space<any>>
      %c7_i32_267 = arith.constant 7 : i32
      %c0_i32_268 = arith.constant 0 : i32
      %284 = tpu.memref_slice %arg8[%c7_i32_267, %c0_i32_268] : memref<32x32xf32, #tpu.memory_space<vmem>> -> memref<1x32xf32, #tpu.memory_space<vmem>>
      %285 = tpu.memref_slice %arg9[%c0_i32_265] : memref<1x!tpu.dma_semaphore, #tpu.memory_space<semaphore_mem>> -> memref<1x!tpu.dma_semaphore, #tpu.memory_space<semaphore_mem>>
      %286 = tpu.memref_squeeze %285 : memref<1x!tpu.dma_semaphore, #tpu.memory_space<semaphore_mem>> -> memref<!tpu.dma_semaphore, #tpu.memory_space<semaphore_mem>>
      tpu.wait_dma2 semaphore(%286 : memref<!tpu.dma_semaphore, #tpu.memory_space<semaphore_mem>>) src(%283 : memref<1x32xf32, #tpu.memory_space<any>>) dst(%284 : memref<1x32xf32, #tpu.memory_space<vmem>>)
      %c0_i32_269 = arith.constant 0 : i32
      %c0_i32_270 = arith.constant 0 : i32
      %287 = tpu.memref_slice %arg2[%89, %c0_i32_270] : memref<512x32xf32, #tpu.memory_space<any>> -> memref<1x32xf32, #tpu.memory_space<any>>
      %c8_i32_271 = arith.constant 8 : i32
      %c0_i32_272 = arith.constant 0 : i32
      %288 = tpu.memref_slice %arg8[%c8_i32_271, %c0_i32_272] : memref<32x32xf32, #tpu.memory_space<vmem>> -> memref<1x32xf32, #tpu.memory_space<vmem>>
      %289 = tpu.memref_slice %arg9[%c0_i32_269] : memref<1x!tpu.dma_semaphore, #tpu.memory_space<semaphore_mem>> -> memref<1x!tpu.dma_semaphore, #tpu.memory_space<semaphore_mem>>
      %290 = tpu.memref_squeeze %289 : memref<1x!tpu.dma_semaphore, #tpu.memory_space<semaphore_mem>> -> memref<!tpu.dma_semaphore, #tpu.memory_space<semaphore_mem>>
      tpu.wait_dma2 semaphore(%290 : memref<!tpu.dma_semaphore, #tpu.memory_space<semaphore_mem>>) src(%287 : memref<1x32xf32, #tpu.memory_space<any>>) dst(%288 : memref<1x32xf32, #tpu.memory_space<vmem>>)
      %c0_i32_273 = arith.constant 0 : i32
      %c0_i32_274 = arith.constant 0 : i32
      %291 = tpu.memref_slice %arg2[%96, %c0_i32_274] : memref<512x32xf32, #tpu.memory_space<any>> -> memref<1x32xf32, #tpu.memory_space<any>>
      %c9_i32_275 = arith.constant 9 : i32
      %c0_i32_276 = arith.constant 0 : i32
      %292 = tpu.memref_slice %arg8[%c9_i32_275, %c0_i32_276] : memref<32x32xf32, #tpu.memory_space<vmem>> -> memref<1x32xf32, #tpu.memory_space<vmem>>
      %293 = tpu.memref_slice %arg9[%c0_i32_273] : memref<1x!tpu.dma_semaphore, #tpu.memory_space<semaphore_mem>> -> memref<1x!tpu.dma_semaphore, #tpu.memory_space<semaphore_mem>>
      %294 = tpu.memref_squeeze %293 : memref<1x!tpu.dma_semaphore, #tpu.memory_space<semaphore_mem>> -> memref<!tpu.dma_semaphore, #tpu.memory_space<semaphore_mem>>
      tpu.wait_dma2 semaphore(%294 : memref<!tpu.dma_semaphore, #tpu.memory_space<semaphore_mem>>) src(%291 : memref<1x32xf32, #tpu.memory_space<any>>) dst(%292 : memref<1x32xf32, #tpu.memory_space<vmem>>)
      %c0_i32_277 = arith.constant 0 : i32
      %c0_i32_278 = arith.constant 0 : i32
      %295 = tpu.memref_slice %arg2[%103, %c0_i32_278] : memref<512x32xf32, #tpu.memory_space<any>> -> memref<1x32xf32, #tpu.memory_space<any>>
      %c10_i32_279 = arith.constant 10 : i32
      %c0_i32_280 = arith.constant 0 : i32
      %296 = tpu.memref_slice %arg8[%c10_i32_279, %c0_i32_280] : memref<32x32xf32, #tpu.memory_space<vmem>> -> memref<1x32xf32, #tpu.memory_space<vmem>>
      %297 = tpu.memref_slice %arg9[%c0_i32_277] : memref<1x!tpu.dma_semaphore, #tpu.memory_space<semaphore_mem>> -> memref<1x!tpu.dma_semaphore, #tpu.memory_space<semaphore_mem>>
      %298 = tpu.memref_squeeze %297 : memref<1x!tpu.dma_semaphore, #tpu.memory_space<semaphore_mem>> -> memref<!tpu.dma_semaphore, #tpu.memory_space<semaphore_mem>>
      tpu.wait_dma2 semaphore(%298 : memref<!tpu.dma_semaphore, #tpu.memory_space<semaphore_mem>>) src(%295 : memref<1x32xf32, #tpu.memory_space<any>>) dst(%296 : memref<1x32xf32, #tpu.memory_space<vmem>>)
      %c0_i32_281 = arith.constant 0 : i32
      %c0_i32_282 = arith.constant 0 : i32
      %299 = tpu.memref_slice %arg2[%110, %c0_i32_282] : memref<512x32xf32, #tpu.memory_space<any>> -> memref<1x32xf32, #tpu.memory_space<any>>
      %c11_i32_283 = arith.constant 11 : i32
      %c0_i32_284 = arith.constant 0 : i32
      %300 = tpu.memref_slice %arg8[%c11_i32_283, %c0_i32_284] : memref<32x32xf32, #tpu.memory_space<vmem>> -> memref<1x32xf32, #tpu.memory_space<vmem>>
      %301 = tpu.memref_slice %arg9[%c0_i32_281] : memref<1x!tpu.dma_semaphore, #tpu.memory_space<semaphore_mem>> -> memref<1x!tpu.dma_semaphore, #tpu.memory_space<semaphore_mem>>
      %302 = tpu.memref_squeeze %301 : memref<1x!tpu.dma_semaphore, #tpu.memory_space<semaphore_mem>> -> memref<!tpu.dma_semaphore, #tpu.memory_space<semaphore_mem>>
      tpu.wait_dma2 semaphore(%302 : memref<!tpu.dma_semaphore, #tpu.memory_space<semaphore_mem>>) src(%299 : memref<1x32xf32, #tpu.memory_space<any>>) dst(%300 : memref<1x32xf32, #tpu.memory_space<vmem>>)
      %c0_i32_285 = arith.constant 0 : i32
      %c0_i32_286 = arith.constant 0 : i32
      %303 = tpu.memref_slice %arg2[%117, %c0_i32_286] : memref<512x32xf32, #tpu.memory_space<any>> -> memref<1x32xf32, #tpu.memory_space<any>>
      %c12_i32_287 = arith.constant 12 : i32
      %c0_i32_288 = arith.constant 0 : i32
      %304 = tpu.memref_slice %arg8[%c12_i32_287, %c0_i32_288] : memref<32x32xf32, #tpu.memory_space<vmem>> -> memref<1x32xf32, #tpu.memory_space<vmem>>
      %305 = tpu.memref_slice %arg9[%c0_i32_285] : memref<1x!tpu.dma_semaphore, #tpu.memory_space<semaphore_mem>> -> memref<1x!tpu.dma_semaphore, #tpu.memory_space<semaphore_mem>>
      %306 = tpu.memref_squeeze %305 : memref<1x!tpu.dma_semaphore, #tpu.memory_space<semaphore_mem>> -> memref<!tpu.dma_semaphore, #tpu.memory_space<semaphore_mem>>
      tpu.wait_dma2 semaphore(%306 : memref<!tpu.dma_semaphore, #tpu.memory_space<semaphore_mem>>) src(%303 : memref<1x32xf32, #tpu.memory_space<any>>) dst(%304 : memref<1x32xf32, #tpu.memory_space<vmem>>)
      %c0_i32_289 = arith.constant 0 : i32
      %c0_i32_290 = arith.constant 0 : i32
      %307 = tpu.memref_slice %arg2[%124, %c0_i32_290] : memref<512x32xf32, #tpu.memory_space<any>> -> memref<1x32xf32, #tpu.memory_space<any>>
      %c13_i32_291 = arith.constant 13 : i32
      %c0_i32_292 = arith.constant 0 : i32
      %308 = tpu.memref_slice %arg8[%c13_i32_291, %c0_i32_292] : memref<32x32xf32, #tpu.memory_space<vmem>> -> memref<1x32xf32, #tpu.memory_space<vmem>>
      %309 = tpu.memref_slice %arg9[%c0_i32_289] : memref<1x!tpu.dma_semaphore, #tpu.memory_space<semaphore_mem>> -> memref<1x!tpu.dma_semaphore, #tpu.memory_space<semaphore_mem>>
      %310 = tpu.memref_squeeze %309 : memref<1x!tpu.dma_semaphore, #tpu.memory_space<semaphore_mem>> -> memref<!tpu.dma_semaphore, #tpu.memory_space<semaphore_mem>>
      tpu.wait_dma2 semaphore(%310 : memref<!tpu.dma_semaphore, #tpu.memory_space<semaphore_mem>>) src(%307 : memref<1x32xf32, #tpu.memory_space<any>>) dst(%308 : memref<1x32xf32, #tpu.memory_space<vmem>>)
      %c0_i32_293 = arith.constant 0 : i32
      %c0_i32_294 = arith.constant 0 : i32
      %311 = tpu.memref_slice %arg2[%131, %c0_i32_294] : memref<512x32xf32, #tpu.memory_space<any>> -> memref<1x32xf32, #tpu.memory_space<any>>
      %c14_i32_295 = arith.constant 14 : i32
      %c0_i32_296 = arith.constant 0 : i32
      %312 = tpu.memref_slice %arg8[%c14_i32_295, %c0_i32_296] : memref<32x32xf32, #tpu.memory_space<vmem>> -> memref<1x32xf32, #tpu.memory_space<vmem>>
      %313 = tpu.memref_slice %arg9[%c0_i32_293] : memref<1x!tpu.dma_semaphore, #tpu.memory_space<semaphore_mem>> -> memref<1x!tpu.dma_semaphore, #tpu.memory_space<semaphore_mem>>
      %314 = tpu.memref_squeeze %313 : memref<1x!tpu.dma_semaphore, #tpu.memory_space<semaphore_mem>> -> memref<!tpu.dma_semaphore, #tpu.memory_space<semaphore_mem>>
      tpu.wait_dma2 semaphore(%314 : memref<!tpu.dma_semaphore, #tpu.memory_space<semaphore_mem>>) src(%311 : memref<1x32xf32, #tpu.memory_space<any>>) dst(%312 : memref<1x32xf32, #tpu.memory_space<vmem>>)
      %c0_i32_297 = arith.constant 0 : i32
      %c0_i32_298 = arith.constant 0 : i32
      %315 = tpu.memref_slice %arg2[%138, %c0_i32_298] : memref<512x32xf32, #tpu.memory_space<any>> -> memref<1x32xf32, #tpu.memory_space<any>>
      %c15_i32_299 = arith.constant 15 : i32
      %c0_i32_300 = arith.constant 0 : i32
      %316 = tpu.memref_slice %arg8[%c15_i32_299, %c0_i32_300] : memref<32x32xf32, #tpu.memory_space<vmem>> -> memref<1x32xf32, #tpu.memory_space<vmem>>
      %317 = tpu.memref_slice %arg9[%c0_i32_297] : memref<1x!tpu.dma_semaphore, #tpu.memory_space<semaphore_mem>> -> memref<1x!tpu.dma_semaphore, #tpu.memory_space<semaphore_mem>>
      %318 = tpu.memref_squeeze %317 : memref<1x!tpu.dma_semaphore, #tpu.memory_space<semaphore_mem>> -> memref<!tpu.dma_semaphore, #tpu.memory_space<semaphore_mem>>
      tpu.wait_dma2 semaphore(%318 : memref<!tpu.dma_semaphore, #tpu.memory_space<semaphore_mem>>) src(%315 : memref<1x32xf32, #tpu.memory_space<any>>) dst(%316 : memref<1x32xf32, #tpu.memory_space<vmem>>)
      %c0_i32_301 = arith.constant 0 : i32
      %c0_i32_302 = arith.constant 0 : i32
      %319 = tpu.memref_slice %arg2[%145, %c0_i32_302] : memref<512x32xf32, #tpu.memory_space<any>> -> memref<1x32xf32, #tpu.memory_space<any>>
      %c16_i32_303 = arith.constant 16 : i32
      %c0_i32_304 = arith.constant 0 : i32
      %320 = tpu.memref_slice %arg8[%c16_i32_303, %c0_i32_304] : memref<32x32xf32, #tpu.memory_space<vmem>> -> memref<1x32xf32, #tpu.memory_space<vmem>>
      %321 = tpu.memref_slice %arg9[%c0_i32_301] : memref<1x!tpu.dma_semaphore, #tpu.memory_space<semaphore_mem>> -> memref<1x!tpu.dma_semaphore, #tpu.memory_space<semaphore_mem>>
      %322 = tpu.memref_squeeze %321 : memref<1x!tpu.dma_semaphore, #tpu.memory_space<semaphore_mem>> -> memref<!tpu.dma_semaphore, #tpu.memory_space<semaphore_mem>>
      tpu.wait_dma2 semaphore(%322 : memref<!tpu.dma_semaphore, #tpu.memory_space<semaphore_mem>>) src(%319 : memref<1x32xf32, #tpu.memory_space<any>>) dst(%320 : memref<1x32xf32, #tpu.memory_space<vmem>>)
      %c0_i32_305 = arith.constant 0 : i32
      %c0_i32_306 = arith.constant 0 : i32
      %323 = tpu.memref_slice %arg2[%152, %c0_i32_306] : memref<512x32xf32, #tpu.memory_space<any>> -> memref<1x32xf32, #tpu.memory_space<any>>
      %c17_i32_307 = arith.constant 17 : i32
      %c0_i32_308 = arith.constant 0 : i32
      %324 = tpu.memref_slice %arg8[%c17_i32_307, %c0_i32_308] : memref<32x32xf32, #tpu.memory_space<vmem>> -> memref<1x32xf32, #tpu.memory_space<vmem>>
      %325 = tpu.memref_slice %arg9[%c0_i32_305] : memref<1x!tpu.dma_semaphore, #tpu.memory_space<semaphore_mem>> -> memref<1x!tpu.dma_semaphore, #tpu.memory_space<semaphore_mem>>
      %326 = tpu.memref_squeeze %325 : memref<1x!tpu.dma_semaphore, #tpu.memory_space<semaphore_mem>> -> memref<!tpu.dma_semaphore, #tpu.memory_space<semaphore_mem>>
      tpu.wait_dma2 semaphore(%326 : memref<!tpu.dma_semaphore, #tpu.memory_space<semaphore_mem>>) src(%323 : memref<1x32xf32, #tpu.memory_space<any>>) dst(%324 : memref<1x32xf32, #tpu.memory_space<vmem>>)
      %c0_i32_309 = arith.constant 0 : i32
      %c0_i32_310 = arith.constant 0 : i32
      %327 = tpu.memref_slice %arg2[%159, %c0_i32_310] : memref<512x32xf32, #tpu.memory_space<any>> -> memref<1x32xf32, #tpu.memory_space<any>>
      %c18_i32_311 = arith.constant 18 : i32
      %c0_i32_312 = arith.constant 0 : i32
      %328 = tpu.memref_slice %arg8[%c18_i32_311, %c0_i32_312] : memref<32x32xf32, #tpu.memory_space<vmem>> -> memref<1x32xf32, #tpu.memory_space<vmem>>
      %329 = tpu.memref_slice %arg9[%c0_i32_309] : memref<1x!tpu.dma_semaphore, #tpu.memory_space<semaphore_mem>> -> memref<1x!tpu.dma_semaphore, #tpu.memory_space<semaphore_mem>>
      %330 = tpu.memref_squeeze %329 : memref<1x!tpu.dma_semaphore, #tpu.memory_space<semaphore_mem>> -> memref<!tpu.dma_semaphore, #tpu.memory_space<semaphore_mem>>
      tpu.wait_dma2 semaphore(%330 : memref<!tpu.dma_semaphore, #tpu.memory_space<semaphore_mem>>) src(%327 : memref<1x32xf32, #tpu.memory_space<any>>) dst(%328 : memref<1x32xf32, #tpu.memory_space<vmem>>)
      %c0_i32_313 = arith.constant 0 : i32
      %c0_i32_314 = arith.constant 0 : i32
      %331 = tpu.memref_slice %arg2[%166, %c0_i32_314] : memref<512x32xf32, #tpu.memory_space<any>> -> memref<1x32xf32, #tpu.memory_space<any>>
      %c19_i32_315 = arith.constant 19 : i32
      %c0_i32_316 = arith.constant 0 : i32
      %332 = tpu.memref_slice %arg8[%c19_i32_315, %c0_i32_316] : memref<32x32xf32, #tpu.memory_space<vmem>> -> memref<1x32xf32, #tpu.memory_space<vmem>>
      %333 = tpu.memref_slice %arg9[%c0_i32_313] : memref<1x!tpu.dma_semaphore, #tpu.memory_space<semaphore_mem>> -> memref<1x!tpu.dma_semaphore, #tpu.memory_space<semaphore_mem>>
      %334 = tpu.memref_squeeze %333 : memref<1x!tpu.dma_semaphore, #tpu.memory_space<semaphore_mem>> -> memref<!tpu.dma_semaphore, #tpu.memory_space<semaphore_mem>>
      tpu.wait_dma2 semaphore(%334 : memref<!tpu.dma_semaphore, #tpu.memory_space<semaphore_mem>>) src(%331 : memref<1x32xf32, #tpu.memory_space<any>>) dst(%332 : memref<1x32xf32, #tpu.memory_space<vmem>>)
      %c0_i32_317 = arith.constant 0 : i32
      %c0_i32_318 = arith.constant 0 : i32
      %335 = tpu.memref_slice %arg2[%173, %c0_i32_318] : memref<512x32xf32, #tpu.memory_space<any>> -> memref<1x32xf32, #tpu.memory_space<any>>
      %c20_i32_319 = arith.constant 20 : i32
      %c0_i32_320 = arith.constant 0 : i32
      %336 = tpu.memref_slice %arg8[%c20_i32_319, %c0_i32_320] : memref<32x32xf32, #tpu.memory_space<vmem>> -> memref<1x32xf32, #tpu.memory_space<vmem>>
      %337 = tpu.memref_slice %arg9[%c0_i32_317] : memref<1x!tpu.dma_semaphore, #tpu.memory_space<semaphore_mem>> -> memref<1x!tpu.dma_semaphore, #tpu.memory_space<semaphore_mem>>
      %338 = tpu.memref_squeeze %337 : memref<1x!tpu.dma_semaphore, #tpu.memory_space<semaphore_mem>> -> memref<!tpu.dma_semaphore, #tpu.memory_space<semaphore_mem>>
      tpu.wait_dma2 semaphore(%338 : memref<!tpu.dma_semaphore, #tpu.memory_space<semaphore_mem>>) src(%335 : memref<1x32xf32, #tpu.memory_space<any>>) dst(%336 : memref<1x32xf32, #tpu.memory_space<vmem>>)
      %c0_i32_321 = arith.constant 0 : i32
      %c0_i32_322 = arith.constant 0 : i32
      %339 = tpu.memref_slice %arg2[%180, %c0_i32_322] : memref<512x32xf32, #tpu.memory_space<any>> -> memref<1x32xf32, #tpu.memory_space<any>>
      %c21_i32_323 = arith.constant 21 : i32
      %c0_i32_324 = arith.constant 0 : i32
      %340 = tpu.memref_slice %arg8[%c21_i32_323, %c0_i32_324] : memref<32x32xf32, #tpu.memory_space<vmem>> -> memref<1x32xf32, #tpu.memory_space<vmem>>
      %341 = tpu.memref_slice %arg9[%c0_i32_321] : memref<1x!tpu.dma_semaphore, #tpu.memory_space<semaphore_mem>> -> memref<1x!tpu.dma_semaphore, #tpu.memory_space<semaphore_mem>>
      %342 = tpu.memref_squeeze %341 : memref<1x!tpu.dma_semaphore, #tpu.memory_space<semaphore_mem>> -> memref<!tpu.dma_semaphore, #tpu.memory_space<semaphore_mem>>
      tpu.wait_dma2 semaphore(%342 : memref<!tpu.dma_semaphore, #tpu.memory_space<semaphore_mem>>) src(%339 : memref<1x32xf32, #tpu.memory_space<any>>) dst(%340 : memref<1x32xf32, #tpu.memory_space<vmem>>)
      %c0_i32_325 = arith.constant 0 : i32
      %c0_i32_326 = arith.constant 0 : i32
      %343 = tpu.memref_slice %arg2[%187, %c0_i32_326] : memref<512x32xf32, #tpu.memory_space<any>> -> memref<1x32xf32, #tpu.memory_space<any>>
      %c22_i32_327 = arith.constant 22 : i32
      %c0_i32_328 = arith.constant 0 : i32
      %344 = tpu.memref_slice %arg8[%c22_i32_327, %c0_i32_328] : memref<32x32xf32, #tpu.memory_space<vmem>> -> memref<1x32xf32, #tpu.memory_space<vmem>>
      %345 = tpu.memref_slice %arg9[%c0_i32_325] : memref<1x!tpu.dma_semaphore, #tpu.memory_space<semaphore_mem>> -> memref<1x!tpu.dma_semaphore, #tpu.memory_space<semaphore_mem>>
      %346 = tpu.memref_squeeze %345 : memref<1x!tpu.dma_semaphore, #tpu.memory_space<semaphore_mem>> -> memref<!tpu.dma_semaphore, #tpu.memory_space<semaphore_mem>>
      tpu.wait_dma2 semaphore(%346 : memref<!tpu.dma_semaphore, #tpu.memory_space<semaphore_mem>>) src(%343 : memref<1x32xf32, #tpu.memory_space<any>>) dst(%344 : memref<1x32xf32, #tpu.memory_space<vmem>>)
      %c0_i32_329 = arith.constant 0 : i32
      %c0_i32_330 = arith.constant 0 : i32
      %347 = tpu.memref_slice %arg2[%194, %c0_i32_330] : memref<512x32xf32, #tpu.memory_space<any>> -> memref<1x32xf32, #tpu.memory_space<any>>
      %c23_i32_331 = arith.constant 23 : i32
      %c0_i32_332 = arith.constant 0 : i32
      %348 = tpu.memref_slice %arg8[%c23_i32_331, %c0_i32_332] : memref<32x32xf32, #tpu.memory_space<vmem>> -> memref<1x32xf32, #tpu.memory_space<vmem>>
      %349 = tpu.memref_slice %arg9[%c0_i32_329] : memref<1x!tpu.dma_semaphore, #tpu.memory_space<semaphore_mem>> -> memref<1x!tpu.dma_semaphore, #tpu.memory_space<semaphore_mem>>
      %350 = tpu.memref_squeeze %349 : memref<1x!tpu.dma_semaphore, #tpu.memory_space<semaphore_mem>> -> memref<!tpu.dma_semaphore, #tpu.memory_space<semaphore_mem>>
      tpu.wait_dma2 semaphore(%350 : memref<!tpu.dma_semaphore, #tpu.memory_space<semaphore_mem>>) src(%347 : memref<1x32xf32, #tpu.memory_space<any>>) dst(%348 : memref<1x32xf32, #tpu.memory_space<vmem>>)
      %c0_i32_333 = arith.constant 0 : i32
      %c0_i32_334 = arith.constant 0 : i32
      %351 = tpu.memref_slice %arg2[%201, %c0_i32_334] : memref<512x32xf32, #tpu.memory_space<any>> -> memref<1x32xf32, #tpu.memory_space<any>>
      %c24_i32_335 = arith.constant 24 : i32
      %c0_i32_336 = arith.constant 0 : i32
      %352 = tpu.memref_slice %arg8[%c24_i32_335, %c0_i32_336] : memref<32x32xf32, #tpu.memory_space<vmem>> -> memref<1x32xf32, #tpu.memory_space<vmem>>
      %353 = tpu.memref_slice %arg9[%c0_i32_333] : memref<1x!tpu.dma_semaphore, #tpu.memory_space<semaphore_mem>> -> memref<1x!tpu.dma_semaphore, #tpu.memory_space<semaphore_mem>>
      %354 = tpu.memref_squeeze %353 : memref<1x!tpu.dma_semaphore, #tpu.memory_space<semaphore_mem>> -> memref<!tpu.dma_semaphore, #tpu.memory_space<semaphore_mem>>
      tpu.wait_dma2 semaphore(%354 : memref<!tpu.dma_semaphore, #tpu.memory_space<semaphore_mem>>) src(%351 : memref<1x32xf32, #tpu.memory_space<any>>) dst(%352 : memref<1x32xf32, #tpu.memory_space<vmem>>)
      %c0_i32_337 = arith.constant 0 : i32
      %c0_i32_338 = arith.constant 0 : i32
      %355 = tpu.memref_slice %arg2[%208, %c0_i32_338] : memref<512x32xf32, #tpu.memory_space<any>> -> memref<1x32xf32, #tpu.memory_space<any>>
      %c25_i32_339 = arith.constant 25 : i32
      %c0_i32_340 = arith.constant 0 : i32
      %356 = tpu.memref_slice %arg8[%c25_i32_339, %c0_i32_340] : memref<32x32xf32, #tpu.memory_space<vmem>> -> memref<1x32xf32, #tpu.memory_space<vmem>>
      %357 = tpu.memref_slice %arg9[%c0_i32_337] : memref<1x!tpu.dma_semaphore, #tpu.memory_space<semaphore_mem>> -> memref<1x!tpu.dma_semaphore, #tpu.memory_space<semaphore_mem>>
      %358 = tpu.memref_squeeze %357 : memref<1x!tpu.dma_semaphore, #tpu.memory_space<semaphore_mem>> -> memref<!tpu.dma_semaphore, #tpu.memory_space<semaphore_mem>>
      tpu.wait_dma2 semaphore(%358 : memref<!tpu.dma_semaphore, #tpu.memory_space<semaphore_mem>>) src(%355 : memref<1x32xf32, #tpu.memory_space<any>>) dst(%356 : memref<1x32xf32, #tpu.memory_space<vmem>>)
      %c0_i32_341 = arith.constant 0 : i32
      %c0_i32_342 = arith.constant 0 : i32
      %359 = tpu.memref_slice %arg2[%215, %c0_i32_342] : memref<512x32xf32, #tpu.memory_space<any>> -> memref<1x32xf32, #tpu.memory_space<any>>
      %c26_i32_343 = arith.constant 26 : i32
      %c0_i32_344 = arith.constant 0 : i32
      %360 = tpu.memref_slice %arg8[%c26_i32_343, %c0_i32_344] : memref<32x32xf32, #tpu.memory_space<vmem>> -> memref<1x32xf32, #tpu.memory_space<vmem>>
      %361 = tpu.memref_slice %arg9[%c0_i32_341] : memref<1x!tpu.dma_semaphore, #tpu.memory_space<semaphore_mem>> -> memref<1x!tpu.dma_semaphore, #tpu.memory_space<semaphore_mem>>
      %362 = tpu.memref_squeeze %361 : memref<1x!tpu.dma_semaphore, #tpu.memory_space<semaphore_mem>> -> memref<!tpu.dma_semaphore, #tpu.memory_space<semaphore_mem>>
      tpu.wait_dma2 semaphore(%362 : memref<!tpu.dma_semaphore, #tpu.memory_space<semaphore_mem>>) src(%359 : memref<1x32xf32, #tpu.memory_space<any>>) dst(%360 : memref<1x32xf32, #tpu.memory_space<vmem>>)
      %c0_i32_345 = arith.constant 0 : i32
      %c0_i32_346 = arith.constant 0 : i32
      %363 = tpu.memref_slice %arg2[%222, %c0_i32_346] : memref<512x32xf32, #tpu.memory_space<any>> -> memref<1x32xf32, #tpu.memory_space<any>>
      %c27_i32_347 = arith.constant 27 : i32
      %c0_i32_348 = arith.constant 0 : i32
      %364 = tpu.memref_slice %arg8[%c27_i32_347, %c0_i32_348] : memref<32x32xf32, #tpu.memory_space<vmem>> -> memref<1x32xf32, #tpu.memory_space<vmem>>
      %365 = tpu.memref_slice %arg9[%c0_i32_345] : memref<1x!tpu.dma_semaphore, #tpu.memory_space<semaphore_mem>> -> memref<1x!tpu.dma_semaphore, #tpu.memory_space<semaphore_mem>>
      %366 = tpu.memref_squeeze %365 : memref<1x!tpu.dma_semaphore, #tpu.memory_space<semaphore_mem>> -> memref<!tpu.dma_semaphore, #tpu.memory_space<semaphore_mem>>
      tpu.wait_dma2 semaphore(%366 : memref<!tpu.dma_semaphore, #tpu.memory_space<semaphore_mem>>) src(%363 : memref<1x32xf32, #tpu.memory_space<any>>) dst(%364 : memref<1x32xf32, #tpu.memory_space<vmem>>)
      %c0_i32_349 = arith.constant 0 : i32
      %c0_i32_350 = arith.constant 0 : i32
      %367 = tpu.memref_slice %arg2[%229, %c0_i32_350] : memref<512x32xf32, #tpu.memory_space<any>> -> memref<1x32xf32, #tpu.memory_space<any>>
      %c28_i32_351 = arith.constant 28 : i32
      %c0_i32_352 = arith.constant 0 : i32
      %368 = tpu.memref_slice %arg8[%c28_i32_351, %c0_i32_352] : memref<32x32xf32, #tpu.memory_space<vmem>> -> memref<1x32xf32, #tpu.memory_space<vmem>>
      %369 = tpu.memref_slice %arg9[%c0_i32_349] : memref<1x!tpu.dma_semaphore, #tpu.memory_space<semaphore_mem>> -> memref<1x!tpu.dma_semaphore, #tpu.memory_space<semaphore_mem>>
      %370 = tpu.memref_squeeze %369 : memref<1x!tpu.dma_semaphore, #tpu.memory_space<semaphore_mem>> -> memref<!tpu.dma_semaphore, #tpu.memory_space<semaphore_mem>>
      tpu.wait_dma2 semaphore(%370 : memref<!tpu.dma_semaphore, #tpu.memory_space<semaphore_mem>>) src(%367 : memref<1x32xf32, #tpu.memory_space<any>>) dst(%368 : memref<1x32xf32, #tpu.memory_space<vmem>>)
      %c0_i32_353 = arith.constant 0 : i32
      %c0_i32_354 = arith.constant 0 : i32
      %371 = tpu.memref_slice %arg2[%236, %c0_i32_354] : memref<512x32xf32, #tpu.memory_space<any>> -> memref<1x32xf32, #tpu.memory_space<any>>
      %c29_i32_355 = arith.constant 29 : i32
      %c0_i32_356 = arith.constant 0 : i32
      %372 = tpu.memref_slice %arg8[%c29_i32_355, %c0_i32_356] : memref<32x32xf32, #tpu.memory_space<vmem>> -> memref<1x32xf32, #tpu.memory_space<vmem>>
      %373 = tpu.memref_slice %arg9[%c0_i32_353] : memref<1x!tpu.dma_semaphore, #tpu.memory_space<semaphore_mem>> -> memref<1x!tpu.dma_semaphore, #tpu.memory_space<semaphore_mem>>
      %374 = tpu.memref_squeeze %373 : memref<1x!tpu.dma_semaphore, #tpu.memory_space<semaphore_mem>> -> memref<!tpu.dma_semaphore, #tpu.memory_space<semaphore_mem>>
      tpu.wait_dma2 semaphore(%374 : memref<!tpu.dma_semaphore, #tpu.memory_space<semaphore_mem>>) src(%371 : memref<1x32xf32, #tpu.memory_space<any>>) dst(%372 : memref<1x32xf32, #tpu.memory_space<vmem>>)
      %c0_i32_357 = arith.constant 0 : i32
      %c0_i32_358 = arith.constant 0 : i32
      %375 = tpu.memref_slice %arg2[%243, %c0_i32_358] : memref<512x32xf32, #tpu.memory_space<any>> -> memref<1x32xf32, #tpu.memory_space<any>>
      %c30_i32_359 = arith.constant 30 : i32
      %c0_i32_360 = arith.constant 0 : i32
      %376 = tpu.memref_slice %arg8[%c30_i32_359, %c0_i32_360] : memref<32x32xf32, #tpu.memory_space<vmem>> -> memref<1x32xf32, #tpu.memory_space<vmem>>
      %377 = tpu.memref_slice %arg9[%c0_i32_357] : memref<1x!tpu.dma_semaphore, #tpu.memory_space<semaphore_mem>> -> memref<1x!tpu.dma_semaphore, #tpu.memory_space<semaphore_mem>>
      %378 = tpu.memref_squeeze %377 : memref<1x!tpu.dma_semaphore, #tpu.memory_space<semaphore_mem>> -> memref<!tpu.dma_semaphore, #tpu.memory_space<semaphore_mem>>
      tpu.wait_dma2 semaphore(%378 : memref<!tpu.dma_semaphore, #tpu.memory_space<semaphore_mem>>) src(%375 : memref<1x32xf32, #tpu.memory_space<any>>) dst(%376 : memref<1x32xf32, #tpu.memory_space<vmem>>)
      %c0_i32_361 = arith.constant 0 : i32
      %c0_i32_362 = arith.constant 0 : i32
      %379 = tpu.memref_slice %arg2[%250, %c0_i32_362] : memref<512x32xf32, #tpu.memory_space<any>> -> memref<1x32xf32, #tpu.memory_space<any>>
      %c31_i32_363 = arith.constant 31 : i32
      %c0_i32_364 = arith.constant 0 : i32
      %380 = tpu.memref_slice %arg8[%c31_i32_363, %c0_i32_364] : memref<32x32xf32, #tpu.memory_space<vmem>> -> memref<1x32xf32, #tpu.memory_space<vmem>>
      %381 = tpu.memref_slice %arg9[%c0_i32_361] : memref<1x!tpu.dma_semaphore, #tpu.memory_space<semaphore_mem>> -> memref<1x!tpu.dma_semaphore, #tpu.memory_space<semaphore_mem>>
      %382 = tpu.memref_squeeze %381 : memref<1x!tpu.dma_semaphore, #tpu.memory_space<semaphore_mem>> -> memref<!tpu.dma_semaphore, #tpu.memory_space<semaphore_mem>>
      tpu.wait_dma2 semaphore(%382 : memref<!tpu.dma_semaphore, #tpu.memory_space<semaphore_mem>>) src(%379 : memref<1x32xf32, #tpu.memory_space<any>>) dst(%380 : memref<1x32xf32, #tpu.memory_space<vmem>>)
      %c0_365 = arith.constant 0 : index
      %c0_366 = arith.constant 0 : index
      %383 = vector.load %arg4[%c0_365, %c0_366] : memref<1x128xf32, #tpu.memory_space<vmem>>, vector<1x128xf32>
      %cst_367 = arith.constant 0.000000e+00 : f32
      %384 = vector.broadcast %cst_367 : f32 to vector<8x128xf32>
      %385 = vector.broadcast %383 : vector<1x128xf32> to vector<8x128xf32>
      %386 = arith.addf %385, %384 : vector<8x128xf32>
      %c0_368 = arith.constant 0 : index
      %c0_369 = arith.constant 0 : index
      %387 = vector.load %arg8[%c0_368, %c0_369] : memref<32x32xf32, #tpu.memory_space<vmem>>, vector<8x32xf32>
      %388 = arith.truncf %387 : vector<8x32xf32> to vector<8x32xbf16>
      %c0_370 = arith.constant 0 : index
      %c0_371 = arith.constant 0 : index
      %389 = vector.load %arg3[%c0_370, %c0_371] : memref<128x128xbf16, #tpu.memory_space<vmem>>, vector<32x128xbf16>
      %cst_372 = arith.constant dense<0.000000e+00> : vector<8x128xf32>
      %390 = tpu.matmul %388, %389, %cst_372 {dimension_numbers = #tpu.dot_dimension_numbers<[1], [0], [0], [1], [0, 0, 1, 1], [], []>} : vector<8x32xbf16>, vector<32x128xbf16>, vector<8x128xf32> -> vector<8x128xf32>
      %391 = arith.addf %386, %390 : vector<8x128xf32>
      %c8 = arith.constant 8 : index
      %c0_373 = arith.constant 0 : index
      %392 = vector.load %arg8[%c8, %c0_373] : memref<32x32xf32, #tpu.memory_space<vmem>>, vector<8x32xf32>
      %393 = arith.truncf %392 : vector<8x32xf32> to vector<8x32xbf16>
      %c32 = arith.constant 32 : index
      %c0_374 = arith.constant 0 : index
      %394 = vector.load %arg3[%c32, %c0_374] : memref<128x128xbf16, #tpu.memory_space<vmem>>, vector<32x128xbf16>
      %cst_375 = arith.constant dense<0.000000e+00> : vector<8x128xf32>
      %395 = tpu.matmul %393, %394, %cst_375 {dimension_numbers = #tpu.dot_dimension_numbers<[1], [0], [0], [1], [0, 0, 1, 1], [], []>} : vector<8x32xbf16>, vector<32x128xbf16>, vector<8x128xf32> -> vector<8x128xf32>
      %396 = arith.addf %391, %395 : vector<8x128xf32>
      %c16 = arith.constant 16 : index
      %c0_376 = arith.constant 0 : index
      %397 = vector.load %arg8[%c16, %c0_376] : memref<32x32xf32, #tpu.memory_space<vmem>>, vector<8x32xf32>
      %398 = arith.truncf %397 : vector<8x32xf32> to vector<8x32xbf16>
      %c64 = arith.constant 64 : index
      %c0_377 = arith.constant 0 : index
      %399 = vector.load %arg3[%c64, %c0_377] : memref<128x128xbf16, #tpu.memory_space<vmem>>, vector<32x128xbf16>
      %cst_378 = arith.constant dense<0.000000e+00> : vector<8x128xf32>
      %400 = tpu.matmul %398, %399, %cst_378 {dimension_numbers = #tpu.dot_dimension_numbers<[1], [0], [0], [1], [0, 0, 1, 1], [], []>} : vector<8x32xbf16>, vector<32x128xbf16>, vector<8x128xf32> -> vector<8x128xf32>
      %401 = arith.addf %396, %400 : vector<8x128xf32>
      %c24 = arith.constant 24 : index
      %c0_379 = arith.constant 0 : index
      %402 = vector.load %arg8[%c24, %c0_379] : memref<32x32xf32, #tpu.memory_space<vmem>>, vector<8x32xf32>
      %403 = arith.truncf %402 : vector<8x32xf32> to vector<8x32xbf16>
      %c96 = arith.constant 96 : index
      %c0_380 = arith.constant 0 : index
      %404 = vector.load %arg3[%c96, %c0_380] : memref<128x128xbf16, #tpu.memory_space<vmem>>, vector<32x128xbf16>
      %cst_381 = arith.constant dense<0.000000e+00> : vector<8x128xf32>
      %405 = tpu.matmul %403, %404, %cst_381 {dimension_numbers = #tpu.dot_dimension_numbers<[1], [0], [0], [1], [0, 0, 1, 1], [], []>} : vector<8x32xbf16>, vector<32x128xbf16>, vector<8x128xf32> -> vector<8x128xf32>
      %406 = arith.addf %401, %405 : vector<8x128xf32>
      %cst_382 = arith.constant 0.000000e+00 : f32
      %407 = vector.broadcast %cst_382 : f32 to vector<8x128xf32>
      %408 = arith.maximumf %406, %407 : vector<8x128xf32>
      %409 = arith.truncf %408 : vector<8x128xf32> to vector<8x128xbf16>
      %c0_383 = arith.constant 0 : index
      %c0_384 = arith.constant 0 : index
      %410 = vector.load %arg10[%c0_383, %c0_384] : memref<8x128xbf16, #tpu.memory_space<vmem>>, vector<8x128xbf16>
      tpu.vector_store %arg10[%c0_383, %c0_384], %409 {strides = array<i32>} : memref<8x128xbf16, #tpu.memory_space<vmem>>, vector<8x128xbf16>,
      %cst_385 = arith.constant 0xFF800000 : f32
      %411 = vector.broadcast %cst_385 : f32 to vector<8x1xf32>
      %c0_386 = arith.constant 0 : index
      %c0_387 = arith.constant 0 : index
      %412 = vector.load %arg11[%c0_386, %c0_387] : memref<8x1xf32, #tpu.memory_space<vmem>>, vector<8x1xf32>
      tpu.vector_store %arg11[%c0_386, %c0_387], %411 {strides = array<i32>} : memref<8x1xf32, #tpu.memory_space<vmem>>, vector<8x1xf32>,
      %cst_388 = arith.constant 0.000000e+00 : f32
      %413 = vector.broadcast %cst_388 : f32 to vector<8x1xf32>
      %c0_389 = arith.constant 0 : index
      %c0_390 = arith.constant 0 : index
      %414 = vector.load %arg12[%c0_389, %c0_390] : memref<8x1xf32, #tpu.memory_space<vmem>>, vector<8x1xf32>
      tpu.vector_store %arg12[%c0_389, %c0_390], %413 {strides = array<i32>} : memref<8x1xf32, #tpu.memory_space<vmem>>, vector<8x1xf32>,
    } else {
    }
    %c0 = arith.constant 0 : index
    %c0_1 = arith.constant 0 : index
    %3 = vector.load %arg10[%c0, %c0_1] : memref<8x128xbf16, #tpu.memory_space<vmem>>, vector<8x128xbf16>
    %c0_2 = arith.constant 0 : index
    %c0_3 = arith.constant 0 : index
    %4 = vector.load %arg5[%c0_2, %c0_3] : memref<128x512xbf16, #tpu.memory_space<vmem>>, vector<128x512xbf16>
    %cst = arith.constant dense<0.000000e+00> : vector<8x512xf32>
    %5 = tpu.matmul %3, %4, %cst {dimension_numbers = #tpu.dot_dimension_numbers<[1], [0], [0], [1], [0, 0, 1, 1], [], []>} : vector<8x128xbf16>, vector<128x512xbf16>, vector<8x512xf32> -> vector<8x512xf32>
    %c0_4 = arith.constant 0 : index
    %c0_5 = arith.constant 0 : index
    %6 = vector.load %arg6[%c0_4, %c0_5] : memref<1x512xf32, #tpu.memory_space<vmem>>, vector<1x512xf32>
    %7 = vector.broadcast %6 : vector<1x512xf32> to vector<8x512xf32>
    %8 = arith.addf %5, %7 : vector<8x512xf32>
    %c0_i32_6 = arith.constant 0 : i32
    %9 = arith.cmpi eq, %arg0, %c0_i32_6 : i32
    %10 = arith.extui %9 : i1 to i32
    %c0_i32_7 = arith.constant 0 : i32
    %11 = arith.cmpi ne, %10, %c0_i32_7 : i32
    scf.if %11 {
      %c0_20 = arith.constant 0 : index
      %c0_21 = arith.constant 0 : index
      %31 = vector.load %arg7[%c0_20, %c0_21] : memref<8x512xf32, #tpu.memory_space<vmem>>, vector<8x512xf32>
      tpu.vector_store %arg7[%c0_20, %c0_21], %8 {strides = array<i32>} : memref<8x512xf32, #tpu.memory_space<vmem>>, vector<8x512xf32>,
    } else {
    }
    %c0_8 = arith.constant 0 : index
    %c0_9 = arith.constant 0 : index
    %12 = vector.load %arg11[%c0_8, %c0_9] : memref<8x1xf32, #tpu.memory_space<vmem>>, vector<8x1xf32>
    %cst_10 = arith.constant dense<0xFF800000> : vector<8xf32>
    %13 = vector.multi_reduction <maximumf>, %8, %cst_10 [1] : vector<8x512xf32> to vector<8xf32>
    %14 = vector.shape_cast %13 : vector<8xf32> to vector<8x1xf32>
    %15 = arith.maximumf %12, %14 : vector<8x1xf32>
    %c0_11 = arith.constant 0 : index
    %c0_12 = arith.constant 0 : index
    %16 = vector.load %arg12[%c0_11, %c0_12] : memref<8x1xf32, #tpu.memory_space<vmem>>, vector<8x1xf32>
    %17 = arith.subf %12, %15 : vector<8x1xf32>
    %18 = math.exp %17 : vector<8x1xf32>
    %19 = arith.mulf %16, %18 : vector<8x1xf32>
    %20 = vector.broadcast %15 : vector<8x1xf32> to vector<8x512xf32>
    %21 = arith.subf %8, %20 : vector<8x512xf32>
    %22 = math.exp %21 : vector<8x512xf32>
    %cst_13 = arith.constant dense<0.000000e+00> : vector<8xf32>
    %23 = vector.multi_reduction <add>, %22, %cst_13 [1] : vector<8x512xf32> to vector<8xf32>
    %24 = vector.shape_cast %23 : vector<8xf32> to vector<8x1xf32>
    %25 = arith.addf %19, %24 : vector<8x1xf32>
    %c0_14 = arith.constant 0 : index
    %c0_15 = arith.constant 0 : index
    %26 = vector.load %arg12[%c0_14, %c0_15] : memref<8x1xf32, #tpu.memory_space<vmem>>, vector<8x1xf32>
    tpu.vector_store %arg12[%c0_14, %c0_15], %25 {strides = array<i32>} : memref<8x1xf32, #tpu.memory_space<vmem>>, vector<8x1xf32>,
    %c0_16 = arith.constant 0 : index
    %c0_17 = arith.constant 0 : index
    %27 = vector.load %arg11[%c0_16, %c0_17] : memref<8x1xf32, #tpu.memory_space<vmem>>, vector<8x1xf32>
    tpu.vector_store %arg11[%c0_16, %c0_17], %15 {strides = array<i32>} : memref<8x1xf32, #tpu.memory_space<vmem>>, vector<8x1xf32>,
    %c0_i32_18 = arith.constant 0 : i32
    %28 = arith.cmpi eq, %arg0, %c0_i32_18 : i32
    %29 = arith.extui %28 : i1 to i32
    %c0_i32_19 = arith.constant 0 : i32
    %30 = arith.cmpi ne, %29, %c0_i32_19 : i32
    scf.if %30 {
      %c0_20 = arith.constant 0 : index
      %c0_21 = arith.constant 0 : index
      %31 = vector.load %arg11[%c0_20, %c0_21] : memref<8x1xf32, #tpu.memory_space<vmem>>, vector<8x1xf32>
      %c0_22 = arith.constant 0 : index
      %c0_23 = arith.constant 0 : index
      %32 = vector.load %arg12[%c0_22, %c0_23] : memref<8x1xf32, #tpu.memory_space<vmem>>, vector<8x1xf32>
      %33 = math.log %32 : vector<8x1xf32>
      %34 = arith.addf %31, %33 : vector<8x1xf32>
      %c0_24 = arith.constant 0 : index
      %c0_25 = arith.constant 0 : index
      %35 = vector.load %arg7[%c0_24, %c0_25] : memref<8x512xf32, #tpu.memory_space<vmem>>, vector<8x512xf32>
      %36 = vector.broadcast %34 : vector<8x1xf32> to vector<8x512xf32>
      %37 = arith.subf %35, %36 : vector<8x512xf32>
      %c0_26 = arith.constant 0 : index
      %c0_27 = arith.constant 0 : index
      %38 = vector.load %arg7[%c0_26, %c0_27] : memref<8x512xf32, #tpu.memory_space<vmem>>, vector<8x512xf32>
      tpu.vector_store %arg7[%c0_26, %c0_27], %37 {strides = array<i32>} : memref<8x512xf32, #tpu.memory_space<vmem>>, vector<8x512xf32>,
    } else {
    }
    return
  }
  func.func @transform_1(%arg0: i32, %arg1: memref<8x4xi32, #tpu.memory_space<smem>>) -> (i32, i32) {
    %c0_i32 = arith.constant 0 : i32
    %c0_i32_0 = arith.constant 0 : i32
    %c0_i32_1 = arith.constant 0 : i32
    return %c0_i32, %c0_i32_0 : i32, i32
  }
  func.func @transform_2(%arg0: i32, %arg1: memref<8x4xi32, #tpu.memory_space<smem>>) -> (i32, i32) {
    %c0_i32 = arith.constant 0 : i32
    %c0_i32_0 = arith.constant 0 : i32
    %c0_i32_1 = arith.constant 0 : i32
    return %c0_i32, %c0_i32_0 : i32, i32
  }
  func.func @transform_3(%arg0: i32, %arg1: memref<8x4xi32, #tpu.memory_space<smem>>) -> (i32, i32) {
    %c0_i32 = arith.constant 0 : i32
    %c0_i32_0 = arith.constant 0 : i32
    return %c0_i32, %arg0 : i32, i32
  }
  func.func @transform_4(%arg0: i32, %arg1: memref<8x4xi32, #tpu.memory_space<smem>>) -> (i32, i32) {
    %c0_i32 = arith.constant 0 : i32
    %c0_i32_0 = arith.constant 0 : i32
    return %c0_i32, %arg0 : i32, i32
  }
  func.func @transform_5(%arg0: i32, %arg1: memref<8x4xi32, #tpu.memory_space<smem>>) -> (i32, i32) {
    %c0_i32 = arith.constant 0 : i32
    %c0_i32_0 = arith.constant 0 : i32
    %c0_i32_1 = arith.constant 0 : i32
    return %c0_i32, %c0_i32_0 : i32, i32
  }
}

</mosaic_0001>

<llo_original>
// kernel: tpu_custom_call.1
$region0: #{tpu_custom_call.1}
  #allocation0 [shape = 'u32[]', space=smem, size = 0x4, offset = 0x4, fixed_abs, tag = 'smem constant byte address 0x4 - core index']
  #allocation1 [shape = 'u32[144,128]{1,0:T(1,128)}', space=vmem, size = 0x12000, scoped, tag = 'internal scratch']
  #allocation2 [shape = 'f32[32,32]{1,0:T(8,128)}', space=vmem, size = 0x4000, scoped, tag = 'scratch operand']
  #allocation3 [shape = 's32[1]{0}', space=sflag, size = 0x4, scoped, tag = 'scratch operand']
  #allocation4 [shape = 'bf16[8,128]{1,0:T(8,128)(2,1)}', space=vmem, size = 0x800, scoped, tag = 'scratch operand']
  #allocation5 [shape = 'f32[8,1]{1,0:T(8,128)}', space=vmem, size = 0x1000, scoped, tag = 'scratch operand']
  #allocation6 [shape = 'f32[8,1]{1,0:T(8,128)}', space=vmem, size = 0x1000, scoped, tag = 'scratch operand']
  #allocation7 [shape = 's32[1]{0}', space=sflag, size = 0x4, scoped, tag = 'scoped memory for tpu_custom_call.1']
  #allocation8 [shape = 'u8[4096]{0}', space=smem, size = 0x1000, scoped, tag = 'prefetched SMEM operand 0']
  #allocation11 [shape = 's32[]', space=sflag, size = 0x4, offset = 0, fixed_abs, tag = 'sflag constant byte address 0x0 - dummy sync flag']
  #allocation12 [shape = 's32[]', space=sflag, size = 0x4, offset = 0, fixed_abs, tag = 'sflag constant byte address 0x0 - dummy sync flag']
  #allocation13 [shape = 's32[]', space=sflag, size = 0x4, offset = 0, fixed_abs, tag = 'sflag constant byte address 0x0 - dummy sync flag']
  #allocation14 [shape = 's32[]', space=sflag, size = 0x4, offset = 0, fixed_abs, tag = 'sflag constant byte address 0x0 - dummy sync flag']
  #allocation15 [shape = 's32[]', space=sflag, size = 0x4, offset = 0, fixed_abs, tag = 'sflag constant byte address 0x0 - dummy sync flag']
  #allocation16 [shape = 's32[]', space=sflag, size = 0x4, offset = 0, fixed_abs, tag = 'sflag constant byte address 0x0 - dummy sync flag']
  #allocation17 [shape = 's32[]', space=sflag, size = 0x4, offset = 0, fixed_abs, tag = 'sflag constant byte address 0x0 - dummy sync flag']
  #allocation18 [shape = 's32[]', space=sflag, size = 0x4, offset = 0, fixed_abs, tag = 'sflag constant byte address 0x0 - dummy sync flag']
  #allocation19 [shape = 's32[]', space=sflag, size = 0x4, offset = 0, fixed_abs, tag = 'sflag constant byte address 0x0 - dummy sync flag']
  #allocation20 [shape = 's32[]', space=sflag, size = 0x4, offset = 0, fixed_abs, tag = 'sflag constant byte address 0x0 - dummy sync flag']
  #allocation21 [shape = 's32[]', space=sflag, size = 0x4, offset = 0, fixed_abs, tag = 'sflag constant byte address 0x0 - dummy sync flag']
  #allocation22 [shape = 's32[]', space=sflag, size = 0x4, offset = 0, fixed_abs, tag = 'sflag constant byte address 0x0 - dummy sync flag']
  #allocation23 [shape = 's32[]', space=sflag, size = 0x4, offset = 0, fixed_abs, tag = 'sflag constant byte address 0x0 - dummy sync flag']
  #allocation24 [shape = 's32[]', space=sflag, size = 0x4, offset = 0, fixed_abs, tag = 'sflag constant byte address 0x0 - dummy sync flag']
  #allocation25 [shape = 's32[]', space=sflag, size = 0x4, offset = 0, fixed_abs, tag = 'sflag constant byte address 0x0 - dummy sync flag']
  #allocation26 [shape = 's32[]', space=sflag, size = 0x4, offset = 0, fixed_abs, tag = 'sflag constant byte address 0x0 - dummy sync flag']
  #allocation27 [shape = 's32[]', space=sflag, size = 0x4, offset = 0, fixed_abs, tag = 'sflag constant byte address 0x0 - dummy sync flag']
  #allocation28 [shape = 's32[]', space=sflag, size = 0x4, offset = 0, fixed_abs, tag = 'sflag constant byte address 0x0 - dummy sync flag']
  #allocation29 [shape = 's32[]', space=sflag, size = 0x4, offset = 0, fixed_abs, tag = 'sflag constant byte address 0x0 - dummy sync flag']
  #allocation30 [shape = 's32[]', space=sflag, size = 0x4, offset = 0, fixed_abs, tag = 'sflag constant byte address 0x0 - dummy sync flag']
  #allocation31 [shape = 's32[]', space=sflag, size = 0x4, offset = 0, fixed_abs, tag = 'sflag constant byte address 0x0 - dummy sync flag']
  #allocation32 [shape = 's32[]', space=sflag, size = 0x4, offset = 0, fixed_abs, tag = 'sflag constant byte address 0x0 - dummy sync flag']
  #allocation33 [shape = 's32[]', space=sflag, size = 0x4, offset = 0, fixed_abs, tag = 'sflag constant byte address 0x0 - dummy sync flag']
  #allocation34 [shape = 's32[]', space=sflag, size = 0x4, offset = 0, fixed_abs, tag = 'sflag constant byte address 0x0 - dummy sync flag']
  #allocation35 [shape = 's32[]', space=sflag, size = 0x4, offset = 0, fixed_abs, tag = 'sflag constant byte address 0x0 - dummy sync flag']
  #allocation36 [shape = 's32[]', space=sflag, size = 0x4, offset = 0, fixed_abs, tag = 'sflag constant byte address 0x0 - dummy sync flag']
  #allocation37 [shape = 's32[]', space=sflag, size = 0x4, offset = 0, fixed_abs, tag = 'sflag constant byte address 0x0 - dummy sync flag']
  #allocation38 [shape = 's32[]', space=sflag, size = 0x4, offset = 0, fixed_abs, tag = 'sflag constant byte address 0x0 - dummy sync flag']
  #allocation39 [shape = 's32[]', space=sflag, size = 0x4, offset = 0, fixed_abs, tag = 'sflag constant byte address 0x0 - dummy sync flag']
  #allocation40 [shape = 's32[]', space=sflag, size = 0x4, offset = 0, fixed_abs, tag = 'sflag constant byte address 0x0 - dummy sync flag']
  #allocation41 [shape = 's32[]', space=sflag, size = 0x4, offset = 0, fixed_abs, tag = 'sflag constant byte address 0x0 - dummy sync flag']
  #allocation42 [shape = 's32[]', space=sflag, size = 0x4, offset = 0, fixed_abs, tag = 'sflag constant byte address 0x0 - dummy sync flag']
  %s0 = inlined_call_operand.vmem [shape: s32[8,4], index: 0, kind: input, shape index: {}]
  %s1 = inlined_call_operand.vmem [shape: f32[512,32], index: 1, kind: input, shape index: {}]
  %s2 = inlined_call_operand.vmem [shape: bf16[128,128], index: 2, kind: input, shape index: {}]
  %s3 = inlined_call_operand.vmem [shape: f32[1,128], index: 3, kind: input, shape index: {}]
  %s4 = inlined_call_operand.vmem [shape: bf16[128,512], index: 4, kind: input, shape index: {}]
  %s5 = inlined_call_operand.vmem [shape: f32[1,512], index: 5, kind: input, shape index: {}]
  %s6 = inlined_call_operand.hbm [shape: f32[8,512], index: 6, kind: output, shape index: {}]
  %s7 = sld [smem:[#allocation0]]
  $region998: #{tpu_custom_call.1} parent=0
    _
  %s9 = ssub.s32 1, %s7
  %s10 = scalar_select 0, %s9, %s7
  %s11 = sshll.u32 %s0, 4
  %s12 = int_to_ptr.vmem [resolvable:$true] %s11
  %14 = dma.vmem_to_smem %s12, 128, [#allocation8], [#allocation7]
  %15 = dma.done [#allocation7], 128
  %16 = sfence
  $region1: #{tpu_custom_call.1} parent=0
    #allocation9 [shape = 'u8[16384]{0}', space=vmem, size = 0x4000, scoped, tag = 'output window, operand 0, single buffered']
    #allocation10 [shape = 's32[1]{0}', space=sflag, size = 0x4, scoped, tag = 'scoped memory for tpu_custom_call.1']
    %17 = vsyncpa [#allocation10], 0
    // Predicated region
    $region2: #{tpu_custom_call.1} parent=1 // pred_check
      _
    $region3: #{tpu_custom_call.1} parent=1 // pred_check_branch
      %19 = sbr.rel (0) target = $region5
    $region4: #{tpu_custom_call.1} parent=1 // pred_region
      _
    $region5: #{tpu_custom_call.1} parent=1 // pred_fallthru
      _
    // Predicated region
    $region6: #{tpu_custom_call.1} parent=1 // pred_check
      _
    $region7: #{tpu_custom_call.1} parent=1 // pred_check_branch
      %21 = sbr.rel (0) target = $region9
    $region8: #{tpu_custom_call.1} parent=1 // pred_region
      _
    $region9: #{tpu_custom_call.1} parent=1 // pred_fallthru
      _
    // Predicated region
    $region10: #{tpu_custom_call.1} parent=1 // pred_check
      _
    $region11: #{tpu_custom_call.1} parent=1 // pred_check_branch
      %23 = sbr.rel (0) target = $region13
    $region12: #{tpu_custom_call.1} parent=1 // pred_region
      _
    $region13: #{tpu_custom_call.1} parent=1 // pred_fallthru
      _
    // Predicated region
    $region14: #{tpu_custom_call.1} parent=1 // pred_check
      _
    $region15: #{tpu_custom_call.1} parent=1 // pred_check_branch
      %25 = sbr.rel (0) target = $region17
    $region16: #{tpu_custom_call.1} parent=1 // pred_region
      _
    $region17: #{tpu_custom_call.1} parent=1 // pred_fallthru
      _
    %p27 = scmp.eq.s32.totalorder 0, 0
    // Predicated region
    $region18: #{tpu_custom_call.1} parent=1 // pred_check
      %p28 = pneg %p27
    $region19: #{tpu_custom_call.1} parent=1 // pred_check_branch
      %30 = sbr.rel (%p28) target = $region21
    $region20: #{tpu_custom_call.1} parent=1 // pred_region
      %s31 = sld [smem:[#allocation8]]
      %p32 = scmp.gt.s32.totalorder %s31, 0
      %s33 = scalar_select %p32, %s31, 0
      %p34 = scmp.lt.s32.totalorder %s33, 511
      %s35 = scalar_select %p34, %s33, 511
      %s36 = scalar_lea.vmem %s1, %s35
      %p38 = scmp.lt.u32.totalorder 1, 8
      %p39 = pneg %p38
      // Predicated region
      $region22: #{tpu_custom_call.1} parent=20 // pred_check
        _
      $region23: #{tpu_custom_call.1} parent=20 // pred_check_branch
        %41 = sbr.rel (%p38) target = $region25
      $region24: #{tpu_custom_call.1} parent=20 // pred_region
        %s57 = sand.u32 1, 7
        %p58 = scmp.eq.s32.totalorder %s57, 0
        %p59 = pneg %p58
        // Predicated region
        $region37: #{tpu_custom_call.1} parent=24 // pred_check
          _
        $region38: #{tpu_custom_call.1} parent=24 // pred_check_branch
          %61 = sbr.rel (%p58) target = $region40
        $region39: #{tpu_custom_call.1} parent=24 // pred_region
          %s62 = sand.u32 1, 7
          %s63 = ssub.s32 1, %s62
          %s64 = scalar_lea.vmem %s36, %s63
          %s65 = ssub.s32 1, %s62
          %s66 = scalar_lea.vmem [#allocation2], %s65
          %s67 = sshll.u32 1, %s62
          %s68 = ssub.s32 %s67, 1
          loop: start=0, step=1, limit=1
          $region41: #{tpu_custom_call.1} parent=39 // loop_pre_header
            _
          $region42: #{tpu_custom_call.1} parent=39 // loop_header
            %s70 = sphi 0, %s74
            %p71 = scmp.ge.s32.totalorder %s70, 1
            %s75 = sphi %s64, %s64
            %s76 = sphi %s66, %s66
          $region43: #{tpu_custom_call.1} parent=39 // loop_header_branch
            %73 = sbr.rel (%p71) target = $region47
          $region44: #{tpu_custom_call.1} parent=39 // loop_body
            %v77 = vld [vmem:[%s75] sm:%s68]
            %78 = vst [vmem:[%s76] sm:%s68] %v77
          $region45: #{tpu_custom_call.1} parent=39 // loop_footer
            %s74 = sadd.s32 1, %s70
          $region46: #{tpu_custom_call.1} parent=39 // loop_footer_branch
            %69 = sbr.rel target = $region42
          $region47: #{tpu_custom_call.1} parent=39 // loop_exit
            _
        $region40: #{tpu_custom_call.1} parent=24 // pred_fallthru
          _
      $region25: #{tpu_custom_call.1} parent=20 // pred_fallthru
        _
      // Predicated region
      $region26: #{tpu_custom_call.1} parent=20 // pred_check
        %p42 = pneg %p38
      $region27: #{tpu_custom_call.1} parent=20 // pred_check_branch
        %44 = sbr.rel (%p42) target = $region29
      $region28: #{tpu_custom_call.1} parent=20 // pred_region
        %s45 = sshll.u32 1, 1
        %s46 = ssub.s32 %s45, 1
        loop: start=0, step=1, limit=1
        $region30: #{tpu_custom_call.1} parent=28 // loop_pre_header
          _
        $region31: #{tpu_custom_call.1} parent=28 // loop_header
          %s48 = sphi 0, %s52
          %p49 = scmp.ge.s32.totalorder %s48, 1
          %s53 = sphi %s36, %s36
          %s54 = sphi [#allocation2], [#allocation2]
        $region32: #{tpu_custom_call.1} parent=28 // loop_header_branch
          %51 = sbr.rel (%p49) target = $region36
        $region33: #{tpu_custom_call.1} parent=28 // loop_body
          %v55 = vld [vmem:[%s53] sm:%s46]
          %56 = vst [vmem:[%s54] sm:%s46] %v55
        $region34: #{tpu_custom_call.1} parent=28 // loop_footer
          %s52 = sadd.s32 1, %s48
        $region35: #{tpu_custom_call.1} parent=28 // loop_footer_branch
          %47 = sbr.rel target = $region31
        $region36: #{tpu_custom_call.1} parent=28 // loop_exit
          _
      $region29: #{tpu_custom_call.1} parent=20 // pred_fallthru
        _
      // Predicated region
      $region48: #{tpu_custom_call.1} parent=20 // pred_check
        _
      $region49: #{tpu_custom_call.1} parent=20 // pred_check_branch
        %81 = sbr.rel (0) target = $region51
      $region50: #{tpu_custom_call.1} parent=20 // pred_region
        %82 = vsyncadd [#allocation3], 16
      $region51: #{tpu_custom_call.1} parent=20 // pred_fallthru
        _
      %s83 = sld [smem:[#allocation8 + $0x80]]
      %p84 = scmp.gt.s32.totalorder %s83, 0
      %s85 = scalar_select %p84, %s83, 0
      %p86 = scmp.lt.s32.totalorder %s85, 511
      %s87 = scalar_select %p86, %s85, 511
      %s88 = scalar_lea.vmem %s1, %s87
      %s89 = scalar_lea.vmem [#allocation2], 1
      %p91 = scmp.lt.u32.totalorder 1, 8
      %p92 = pneg %p91
      // Predicated region
      $region52: #{tpu_custom_call.1} parent=20 // pred_check
        _
      $region53: #{tpu_custom_call.1} parent=20 // pred_check_branch
        %94 = sbr.rel (%p91) target = $region55
      $region54: #{tpu_custom_call.1} parent=20 // pred_region
        %s110 = sand.u32 1, 7
        %p111 = scmp.eq.s32.totalorder %s110, 0
        %p112 = pneg %p111
        // Predicated region
        $region67: #{tpu_custom_call.1} parent=54 // pred_check
          _
        $region68: #{tpu_custom_call.1} parent=54 // pred_check_branch
          %114 = sbr.rel (%p111) target = $region70
        $region69: #{tpu_custom_call.1} parent=54 // pred_region
          %s115 = sand.u32 1, 7
          %s116 = ssub.s32 1, %s115
          %s117 = scalar_lea.vmem %s88, %s116
          %s118 = ssub.s32 1, %s115
          %s119 = scalar_lea.vmem %s89, %s118 [#allocation2]
          %s120 = sshll.u32 1, %s115
          %s121 = ssub.s32 %s120, 1
          loop: start=0, step=1, limit=1
          $region71: #{tpu_custom_call.1} parent=69 // loop_pre_header
            _
          $region72: #{tpu_custom_call.1} parent=69 // loop_header
            %s123 = sphi 0, %s127
            %p124 = scmp.ge.s32.totalorder %s123, 1
            %s128 = sphi %s117, %s117
            %s129 = sphi %s119, %s119
          $region73: #{tpu_custom_call.1} parent=69 // loop_header_branch
            %126 = sbr.rel (%p124) target = $region77
          $region74: #{tpu_custom_call.1} parent=69 // loop_body
            %v130 = vld [vmem:[%s128] sm:%s121]
            %131 = vst [vmem:[%s129] sm:%s121] %v130
          $region75: #{tpu_custom_call.1} parent=69 // loop_footer
            %s127 = sadd.s32 1, %s123
          $region76: #{tpu_custom_call.1} parent=69 // loop_footer_branch
            %122 = sbr.rel target = $region72
          $region77: #{tpu_custom_call.1} parent=69 // loop_exit
            _
        $region70: #{tpu_custom_call.1} parent=54 // pred_fallthru
          _
      $region55: #{tpu_custom_call.1} parent=20 // pred_fallthru
        _
      // Predicated region
      $region56: #{tpu_custom_call.1} parent=20 // pred_check
        %p95 = pneg %p91
      $region57: #{tpu_custom_call.1} parent=20 // pred_check_branch
        %97 = sbr.rel (%p95) target = $region59
      $region58: #{tpu_custom_call.1} parent=20 // pred_region
        %s98 = sshll.u32 1, 1
        %s99 = ssub.s32 %s98, 1
        loop: start=0, step=1, limit=1
        $region60: #{tpu_custom_call.1} parent=58 // loop_pre_header
          _
        $region61: #{tpu_custom_call.1} parent=58 // loop_header
          %s101 = sphi 0, %s105
          %p102 = scmp.ge.s32.totalorder %s101, 1
          %s106 = sphi %s88, %s88
          %s107 = sphi %s89, %s89
        $region62: #{tpu_custom_call.1} parent=58 // loop_header_branch
          %104 = sbr.rel (%p102) target = $region66
        $region63: #{tpu_custom_call.1} parent=58 // loop_body
          %v108 = vld [vmem:[%s106] sm:%s99]
          %109 = vst [vmem:[%s107] sm:%s99] %v108
        $region64: #{tpu_custom_call.1} parent=58 // loop_footer
          %s105 = sadd.s32 1, %s101
        $region65: #{tpu_custom_call.1} parent=58 // loop_footer_branch
          %100 = sbr.rel target = $region61
        $region66: #{tpu_custom_call.1} parent=58 // loop_exit
          _
      $region59: #{tpu_custom_call.1} parent=20 // pred_fallthru
        _
      // Predicated region
      $region78: #{tpu_custom_call.1} parent=20 // pred_check
        _
      $region79: #{tpu_custom_call.1} parent=20 // pred_check_branch
        %134 = sbr.rel (0) target = $region81
      $region80: #{tpu_custom_call.1} parent=20 // pred_region
        %135 = vsyncadd [#allocation3], 16
      $region81: #{tpu_custom_call.1} parent=20 // pred_fallthru
        _
      %s136 = sld [smem:[#allocation8 + $0x100]]
      %p137 = scmp.gt.s32.totalorder %s136, 0
      %s138 = scalar_select %p137, %s136, 0
      %p139 = scmp.lt.s32.totalorder %s138, 511
      %s140 = scalar_select %p139, %s138, 511
      %s141 = scalar_lea.vmem %s1, %s140
      %s142 = scalar_lea.vmem [#allocation2], 2
      %p144 = scmp.lt.u32.totalorder 1, 8
      %p145 = pneg %p144
      // Predicated region
      $region82: #{tpu_custom_call.1} parent=20 // pred_check
        _
      $region83: #{tpu_custom_call.1} parent=20 // pred_check_branch
        %147 = sbr.rel (%p144) target = $region85
      $region84: #{tpu_custom_call.1} parent=20 // pred_region
        %s163 = sand.u32 1, 7
        %p164 = scmp.eq.s32.totalorder %s163, 0
        %p165 = pneg %p164
        // Predicated region
        $region97: #{tpu_custom_call.1} parent=84 // pred_check
          _
        $region98: #{tpu_custom_call.1} parent=84 // pred_check_branch
          %167 = sbr.rel (%p164) target = $region100
        $region99: #{tpu_custom_call.1} parent=84 // pred_region
          %s168 = sand.u32 1, 7
          %s169 = ssub.s32 1, %s168
          %s170 = scalar_lea.vmem %s141, %s169
          %s171 = ssub.s32 1, %s168
          %s172 = scalar_lea.vmem %s142, %s171 [#allocation2]
          %s173 = sshll.u32 1, %s168
          %s174 = ssub.s32 %s173, 1
          loop: start=0, step=1, limit=1
          $region101: #{tpu_custom_call.1} parent=99 // loop_pre_header
            _
          $region102: #{tpu_custom_call.1} parent=99 // loop_header
            %s176 = sphi 0, %s180
            %p177 = scmp.ge.s32.totalorder %s176, 1
            %s181 = sphi %s170, %s170
            %s182 = sphi %s172, %s172
          $region103: #{tpu_custom_call.1} parent=99 // loop_header_branch
            %179 = sbr.rel (%p177) target = $region107
          $region104: #{tpu_custom_call.1} parent=99 // loop_body
            %v183 = vld [vmem:[%s181] sm:%s174]
            %184 = vst [vmem:[%s182] sm:%s174] %v183
          $region105: #{tpu_custom_call.1} parent=99 // loop_footer
            %s180 = sadd.s32 1, %s176
          $region106: #{tpu_custom_call.1} parent=99 // loop_footer_branch
            %175 = sbr.rel target = $region102
          $region107: #{tpu_custom_call.1} parent=99 // loop_exit
            _
        $region100: #{tpu_custom_call.1} parent=84 // pred_fallthru
          _
      $region85: #{tpu_custom_call.1} parent=20 // pred_fallthru
        _
      // Predicated region
      $region86: #{tpu_custom_call.1} parent=20 // pred_check
        %p148 = pneg %p144
      $region87: #{tpu_custom_call.1} parent=20 // pred_check_branch
        %150 = sbr.rel (%p148) target = $region89
      $region88: #{tpu_custom_call.1} parent=20 // pred_region
        %s151 = sshll.u32 1, 1
        %s152 = ssub.s32 %s151, 1
        loop: start=0, step=1, limit=1
        $region90: #{tpu_custom_call.1} parent=88 // loop_pre_header
          _
        $region91: #{tpu_custom_call.1} parent=88 // loop_header
          %s154 = sphi 0, %s158
          %p155 = scmp.ge.s32.totalorder %s154, 1
          %s159 = sphi %s141, %s141
          %s160 = sphi %s142, %s142
        $region92: #{tpu_custom_call.1} parent=88 // loop_header_branch
          %157 = sbr.rel (%p155) target = $region96
        $region93: #{tpu_custom_call.1} parent=88 // loop_body
          %v161 = vld [vmem:[%s159] sm:%s152]
          %162 = vst [vmem:[%s160] sm:%s152] %v161
        $region94: #{tpu_custom_call.1} parent=88 // loop_footer
          %s158 = sadd.s32 1, %s154
        $region95: #{tpu_custom_call.1} parent=88 // loop_footer_branch
          %153 = sbr.rel target = $region91
        $region96: #{tpu_custom_call.1} parent=88 // loop_exit
          _
      $region89: #{tpu_custom_call.1} parent=20 // pred_fallthru
        _
      // Predicated region
      $region108: #{tpu_custom_call.1} parent=20 // pred_check
        _
      $region109: #{tpu_custom_call.1} parent=20 // pred_check_branch
        %187 = sbr.rel (0) target = $region111
      $region110: #{tpu_custom_call.1} parent=20 // pred_region
        %188 = vsyncadd [#allocation3], 16
      $region111: #{tpu_custom_call.1} parent=20 // pred_fallthru
        _
      %s189 = sld [smem:[#allocation8 + $0x180]]
      %p190 = scmp.gt.s32.totalorder %s189, 0
      %s191 = scalar_select %p190, %s189, 0
      %p192 = scmp.lt.s32.totalorder %s191, 511
      %s193 = scalar_select %p192, %s191, 511
      %s194 = scalar_lea.vmem %s1, %s193
      %s195 = scalar_lea.vmem [#allocation2], 3
      %p197 = scmp.lt.u32.totalorder 1, 8
      %p198 = pneg %p197
      // Predicated region
      $region112: #{tpu_custom_call.1} parent=20 // pred_check
        _
      $region113: #{tpu_custom_call.1} parent=20 // pred_check_branch
        %200 = sbr.rel (%p197) target = $region115
      $region114: #{tpu_custom_call.1} parent=20 // pred_region
        %s216 = sand.u32 1, 7
        %p217 = scmp.eq.s32.totalorder %s216, 0
        %p218 = pneg %p217
        // Predicated region
        $region127: #{tpu_custom_call.1} parent=114 // pred_check
          _
        $region128: #{tpu_custom_call.1} parent=114 // pred_check_branch
          %220 = sbr.rel (%p217) target = $region130
        $region129: #{tpu_custom_call.1} parent=114 // pred_region
          %s221 = sand.u32 1, 7
          %s222 = ssub.s32 1, %s221
          %s223 = scalar_lea.vmem %s194, %s222
          %s224 = ssub.s32 1, %s221
          %s225 = scalar_lea.vmem %s195, %s224 [#allocation2]
          %s226 = sshll.u32 1, %s221
          %s227 = ssub.s32 %s226, 1
          loop: start=0, step=1, limit=1
          $region131: #{tpu_custom_call.1} parent=129 // loop_pre_header
            _
          $region132: #{tpu_custom_call.1} parent=129 // loop_header
            %s229 = sphi 0, %s233
            %p230 = scmp.ge.s32.totalorder %s229, 1
            %s234 = sphi %s223, %s223
            %s235 = sphi %s225, %s225
          $region133: #{tpu_custom_call.1} parent=129 // loop_header_branch
            %232 = sbr.rel (%p230) target = $region137
          $region134: #{tpu_custom_call.1} parent=129 // loop_body
            %v236 = vld [vmem:[%s234] sm:%s227]
            %237 = vst [vmem:[%s235] sm:%s227] %v236
          $region135: #{tpu_custom_call.1} parent=129 // loop_footer
            %s233 = sadd.s32 1, %s229
          $region136: #{tpu_custom_call.1} parent=129 // loop_footer_branch
            %228 = sbr.rel target = $region132
          $region137: #{tpu_custom_call.1} parent=129 // loop_exit
            _
        $region130: #{tpu_custom_call.1} parent=114 // pred_fallthru
          _
      $region115: #{tpu_custom_call.1} parent=20 // pred_fallthru
        _
      // Predicated region
      $region116: #{tpu_custom_call.1} parent=20 // pred_check
        %p201 = pneg %p197
      $region117: #{tpu_custom_call.1} parent=20 // pred_check_branch
        %203 = sbr.rel (%p201) target = $region119
      $region118: #{tpu_custom_call.1} parent=20 // pred_region
        %s204 = sshll.u32 1, 1
        %s205 = ssub.s32 %s204, 1
        loop: start=0, step=1, limit=1
        $region120: #{tpu_custom_call.1} parent=118 // loop_pre_header
          _
        $region121: #{tpu_custom_call.1} parent=118 // loop_header
          %s207 = sphi 0, %s211
          %p208 = scmp.ge.s32.totalorder %s207, 1
          %s212 = sphi %s194, %s194
          %s213 = sphi %s195, %s195
        $region122: #{tpu_custom_call.1} parent=118 // loop_header_branch
          %210 = sbr.rel (%p208) target = $region126
        $region123: #{tpu_custom_call.1} parent=118 // loop_body
          %v214 = vld [vmem:[%s212] sm:%s205]
          %215 = vst [vmem:[%s213] sm:%s205] %v214
        $region124: #{tpu_custom_call.1} parent=118 // loop_footer
          %s211 = sadd.s32 1, %s207
        $region125: #{tpu_custom_call.1} parent=118 // loop_footer_branch
          %206 = sbr.rel target = $region121
        $region126: #{tpu_custom_call.1} parent=118 // loop_exit
          _
      $region119: #{tpu_custom_call.1} parent=20 // pred_fallthru
        _
      // Predicated region
      $region138: #{tpu_custom_call.1} parent=20 // pred_check
        _
      $region139: #{tpu_custom_call.1} parent=20 // pred_check_branch
        %240 = sbr.rel (0) target = $region141
      $region140: #{tpu_custom_call.1} parent=20 // pred_region
        %241 = vsyncadd [#allocation3], 16
      $region141: #{tpu_custom_call.1} parent=20 // pred_fallthru
        _
      %s242 = sld [smem:[#allocation8 + $0x200]]
      %p243 = scmp.gt.s32.totalorder %s242, 0
      %s244 = scalar_select %p243, %s242, 0
      %p245 = scmp.lt.s32.totalorder %s244, 511
      %s246 = scalar_select %p245, %s244, 511
      %s247 = scalar_lea.vmem %s1, %s246
      %s248 = scalar_lea.vmem [#allocation2], 4
      %p250 = scmp.lt.u32.totalorder 1, 8
      %p251 = pneg %p250
      // Predicated region
      $region142: #{tpu_custom_call.1} parent=20 // pred_check
        _
      $region143: #{tpu_custom_call.1} parent=20 // pred_check_branch
        %253 = sbr.rel (%p250) target = $region145
      $region144: #{tpu_custom_call.1} parent=20 // pred_region
        %s269 = sand.u32 1, 7
        %p270 = scmp.eq.s32.totalorder %s269, 0
        %p271 = pneg %p270
        // Predicated region
        $region157: #{tpu_custom_call.1} parent=144 // pred_check
          _
        $region158: #{tpu_custom_call.1} parent=144 // pred_check_branch
          %273 = sbr.rel (%p270) target = $region160
        $region159: #{tpu_custom_call.1} parent=144 // pred_region
          %s274 = sand.u32 1, 7
          %s275 = ssub.s32 1, %s274
          %s276 = scalar_lea.vmem %s247, %s275
          %s277 = ssub.s32 1, %s274
          %s278 = scalar_lea.vmem %s248, %s277 [#allocation2]
          %s279 = sshll.u32 1, %s274
          %s280 = ssub.s32 %s279, 1
          loop: start=0, step=1, limit=1
          $region161: #{tpu_custom_call.1} parent=159 // loop_pre_header
            _
          $region162: #{tpu_custom_call.1} parent=159 // loop_header
            %s282 = sphi 0, %s286
            %p283 = scmp.ge.s32.totalorder %s282, 1
            %s287 = sphi %s276, %s276
            %s288 = sphi %s278, %s278
          $region163: #{tpu_custom_call.1} parent=159 // loop_header_branch
            %285 = sbr.rel (%p283) target = $region167
          $region164: #{tpu_custom_call.1} parent=159 // loop_body
            %v289 = vld [vmem:[%s287] sm:%s280]
            %290 = vst [vmem:[%s288] sm:%s280] %v289
          $region165: #{tpu_custom_call.1} parent=159 // loop_footer
            %s286 = sadd.s32 1, %s282
          $region166: #{tpu_custom_call.1} parent=159 // loop_footer_branch
            %281 = sbr.rel target = $region162
          $region167: #{tpu_custom_call.1} parent=159 // loop_exit
            _
        $region160: #{tpu_custom_call.1} parent=144 // pred_fallthru
          _
      $region145: #{tpu_custom_call.1} parent=20 // pred_fallthru
        _
      // Predicated region
      $region146: #{tpu_custom_call.1} parent=20 // pred_check
        %p254 = pneg %p250
      $region147: #{tpu_custom_call.1} parent=20 // pred_check_branch
        %256 = sbr.rel (%p254) target = $region149
      $region148: #{tpu_custom_call.1} parent=20 // pred_region
        %s257 = sshll.u32 1, 1
        %s258 = ssub.s32 %s257, 1
        loop: start=0, step=1, limit=1
        $region150: #{tpu_custom_call.1} parent=148 // loop_pre_header
          _
        $region151: #{tpu_custom_call.1} parent=148 // loop_header
          %s260 = sphi 0, %s264
          %p261 = scmp.ge.s32.totalorder %s260, 1
          %s265 = sphi %s247, %s247
          %s266 = sphi %s248, %s248
        $region152: #{tpu_custom_call.1} parent=148 // loop_header_branch
          %263 = sbr.rel (%p261) target = $region156
        $region153: #{tpu_custom_call.1} parent=148 // loop_body
          %v267 = vld [vmem:[%s265] sm:%s258]
          %268 = vst [vmem:[%s266] sm:%s258] %v267
        $region154: #{tpu_custom_call.1} parent=148 // loop_footer
          %s264 = sadd.s32 1, %s260
        $region155: #{tpu_custom_call.1} parent=148 // loop_footer_branch
          %259 = sbr.rel target = $region151
        $region156: #{tpu_custom_call.1} parent=148 // loop_exit
          _
      $region149: #{tpu_custom_call.1} parent=20 // pred_fallthru
        _
      // Predicated region
      $region168: #{tpu_custom_call.1} parent=20 // pred_check
        _
      $region169: #{tpu_custom_call.1} parent=20 // pred_check_branch
        %293 = sbr.rel (0) target = $region171
      $region170: #{tpu_custom_call.1} parent=20 // pred_region
        %294 = vsyncadd [#allocation3], 16
      $region171: #{tpu_custom_call.1} parent=20 // pred_fallthru
        _
      %s295 = sld [smem:[#allocation8 + $0x280]]
      %p296 = scmp.gt.s32.totalorder %s295, 0
      %s297 = scalar_select %p296, %s295, 0
      %p298 = scmp.lt.s32.totalorder %s297, 511
      %s299 = scalar_select %p298, %s297, 511
      %s300 = scalar_lea.vmem %s1, %s299
      %s301 = scalar_lea.vmem [#allocation2], 5
      %p303 = scmp.lt.u32.totalorder 1, 8
      %p304 = pneg %p303
      // Predicated region
      $region172: #{tpu_custom_call.1} parent=20 // pred_check
        _
      $region173: #{tpu_custom_call.1} parent=20 // pred_check_branch
        %306 = sbr.rel (%p303) target = $region175
      $region174: #{tpu_custom_call.1} parent=20 // pred_region
        %s322 = sand.u32 1, 7
        %p323 = scmp.eq.s32.totalorder %s322, 0
        %p324 = pneg %p323
        // Predicated region
        $region187: #{tpu_custom_call.1} parent=174 // pred_check
          _
        $region188: #{tpu_custom_call.1} parent=174 // pred_check_branch
          %326 = sbr.rel (%p323) target = $region190
        $region189: #{tpu_custom_call.1} parent=174 // pred_region
          %s327 = sand.u32 1, 7
          %s328 = ssub.s32 1, %s327
          %s329 = scalar_lea.vmem %s300, %s328
          %s330 = ssub.s32 1, %s327
          %s331 = scalar_lea.vmem %s301, %s330 [#allocation2]
          %s332 = sshll.u32 1, %s327
          %s333 = ssub.s32 %s332, 1
          loop: start=0, step=1, limit=1
          $region191: #{tpu_custom_call.1} parent=189 // loop_pre_header
            _
          $region192: #{tpu_custom_call.1} parent=189 // loop_header
            %s335 = sphi 0, %s339
            %p336 = scmp.ge.s32.totalorder %s335, 1
            %s340 = sphi %s329, %s329
            %s341 = sphi %s331, %s331
          $region193: #{tpu_custom_call.1} parent=189 // loop_header_branch
            %338 = sbr.rel (%p336) target = $region197
          $region194: #{tpu_custom_call.1} parent=189 // loop_body
            %v342 = vld [vmem:[%s340] sm:%s333]
            %343 = vst [vmem:[%s341] sm:%s333] %v342
          $region195: #{tpu_custom_call.1} parent=189 // loop_footer
            %s339 = sadd.s32 1, %s335
          $region196: #{tpu_custom_call.1} parent=189 // loop_footer_branch
            %334 = sbr.rel target = $region192
          $region197: #{tpu_custom_call.1} parent=189 // loop_exit
            _
        $region190: #{tpu_custom_call.1} parent=174 // pred_fallthru
          _
      $region175: #{tpu_custom_call.1} parent=20 // pred_fallthru
        _
      // Predicated region
      $region176: #{tpu_custom_call.1} parent=20 // pred_check
        %p307 = pneg %p303
      $region177: #{tpu_custom_call.1} parent=20 // pred_check_branch
        %309 = sbr.rel (%p307) target = $region179
      $region178: #{tpu_custom_call.1} parent=20 // pred_region
        %s310 = sshll.u32 1, 1
        %s311 = ssub.s32 %s310, 1
        loop: start=0, step=1, limit=1
        $region180: #{tpu_custom_call.1} parent=178 // loop_pre_header
          _
        $region181: #{tpu_custom_call.1} parent=178 // loop_header
          %s313 = sphi 0, %s317
          %p314 = scmp.ge.s32.totalorder %s313, 1
          %s318 = sphi %s300, %s300
          %s319 = sphi %s301, %s301
        $region182: #{tpu_custom_call.1} parent=178 // loop_header_branch
          %316 = sbr.rel (%p314) target = $region186
        $region183: #{tpu_custom_call.1} parent=178 // loop_body
          %v320 = vld [vmem:[%s318] sm:%s311]
          %321 = vst [vmem:[%s319] sm:%s311] %v320
        $region184: #{tpu_custom_call.1} parent=178 // loop_footer
          %s317 = sadd.s32 1, %s313
        $region185: #{tpu_custom_call.1} parent=178 // loop_footer_branch
          %312 = sbr.rel target = $region181
        $region186: #{tpu_custom_call.1} parent=178 // loop_exit
          _
      $region179: #{tpu_custom_call.1} parent=20 // pred_fallthru
        _
      // Predicated region
      $region198: #{tpu_custom_call.1} parent=20 // pred_check
        _
      $region199: #{tpu_custom_call.1} parent=20 // pred_check_branch
        %346 = sbr.rel (0) target = $region201
      $region200: #{tpu_custom_call.1} parent=20 // pred_region
        %347 = vsyncadd [#allocation3], 16
      $region201: #{tpu_custom_call.1} parent=20 // pred_fallthru
        _
      %s348 = sld [smem:[#allocation8 + $0x300]]
      %p349 = scmp.gt.s32.totalorder %s348, 0
      %s350 = scalar_select %p349, %s348, 0
      %p351 = scmp.lt.s32.totalorder %s350, 511
      %s352 = scalar_select %p351, %s350, 511
      %s353 = scalar_lea.vmem %s1, %s352
      %s354 = scalar_lea.vmem [#allocation2], 6
      %p356 = scmp.lt.u32.totalorder 1, 8
      %p357 = pneg %p356
      // Predicated region
      $region202: #{tpu_custom_call.1} parent=20 // pred_check
        _
      $region203: #{tpu_custom_call.1} parent=20 // pred_check_branch
        %359 = sbr.rel (%p356) target = $region205
      $region204: #{tpu_custom_call.1} parent=20 // pred_region
        %s375 = sand.u32 1, 7
        %p376 = scmp.eq.s32.totalorder %s375, 0
        %p377 = pneg %p376
        // Predicated region
        $region217: #{tpu_custom_call.1} parent=204 // pred_check
          _
        $region218: #{tpu_custom_call.1} parent=204 // pred_check_branch
          %379 = sbr.rel (%p376) target = $region220
        $region219: #{tpu_custom_call.1} parent=204 // pred_region
          %s380 = sand.u32 1, 7
          %s381 = ssub.s32 1, %s380
          %s382 = scalar_lea.vmem %s353, %s381
          %s383 = ssub.s32 1, %s380
          %s384 = scalar_lea.vmem %s354, %s383 [#allocation2]
          %s385 = sshll.u32 1, %s380
          %s386 = ssub.s32 %s385, 1
          loop: start=0, step=1, limit=1
          $region221: #{tpu_custom_call.1} parent=219 // loop_pre_header
            _
          $region222: #{tpu_custom_call.1} parent=219 // loop_header
            %s388 = sphi 0, %s392
            %p389 = scmp.ge.s32.totalorder %s388, 1
            %s393 = sphi %s382, %s382
            %s394 = sphi %s384, %s384
          $region223: #{tpu_custom_call.1} parent=219 // loop_header_branch
            %391 = sbr.rel (%p389) target = $region227
          $region224: #{tpu_custom_call.1} parent=219 // loop_body
            %v395 = vld [vmem:[%s393] sm:%s386]
            %396 = vst [vmem:[%s394] sm:%s386] %v395
          $region225: #{tpu_custom_call.1} parent=219 // loop_footer
            %s392 = sadd.s32 1, %s388
          $region226: #{tpu_custom_call.1} parent=219 // loop_footer_branch
            %387 = sbr.rel target = $region222
          $region227: #{tpu_custom_call.1} parent=219 // loop_exit
            _
        $region220: #{tpu_custom_call.1} parent=204 // pred_fallthru
          _
      $region205: #{tpu_custom_call.1} parent=20 // pred_fallthru
        _
      // Predicated region
      $region206: #{tpu_custom_call.1} parent=20 // pred_check
        %p360 = pneg %p356
      $region207: #{tpu_custom_call.1} parent=20 // pred_check_branch
        %362 = sbr.rel (%p360) target = $region209
      $region208: #{tpu_custom_call.1} parent=20 // pred_region
        %s363 = sshll.u32 1, 1
        %s364 = ssub.s32 %s363, 1
        loop: start=0, step=1, limit=1
        $region210: #{tpu_custom_call.1} parent=208 // loop_pre_header
          _
        $region211: #{tpu_custom_call.1} parent=208 // loop_header
          %s366 = sphi 0, %s370
          %p367 = scmp.ge.s32.totalorder %s366, 1
          %s371 = sphi %s353, %s353
          %s372 = sphi %s354, %s354
        $region212: #{tpu_custom_call.1} parent=208 // loop_header_branch
          %369 = sbr.rel (%p367) target = $region216
        $region213: #{tpu_custom_call.1} parent=208 // loop_body
          %v373 = vld [vmem:[%s371] sm:%s364]
          %374 = vst [vmem:[%s372] sm:%s364] %v373
        $region214: #{tpu_custom_call.1} parent=208 // loop_footer
          %s370 = sadd.s32 1, %s366
        $region215: #{tpu_custom_call.1} parent=208 // loop_footer_branch
          %365 = sbr.rel target = $region211
        $region216: #{tpu_custom_call.1} parent=208 // loop_exit
          _
      $region209: #{tpu_custom_call.1} parent=20 // pred_fallthru
        _
      // Predicated region
      $region228: #{tpu_custom_call.1} parent=20 // pred_check
        _
      $region229: #{tpu_custom_call.1} parent=20 // pred_check_branch
        %399 = sbr.rel (0) target = $region231
      $region230: #{tpu_custom_call.1} parent=20 // pred_region
        %400 = vsyncadd [#allocation3], 16
      $region231: #{tpu_custom_call.1} parent=20 // pred_fallthru
        _
      %s401 = sld [smem:[#allocation8 + $0x380]]
      %p402 = scmp.gt.s32.totalorder %s401, 0
      %s403 = scalar_select %p402, %s401, 0
      %p404 = scmp.lt.s32.totalorder %s403, 511
      %s405 = scalar_select %p404, %s403, 511
      %s406 = scalar_lea.vmem %s1, %s405
      %s407 = scalar_lea.vmem [#allocation2], 7
      %p409 = scmp.lt.u32.totalorder 1, 8
      %p410 = pneg %p409
      // Predicated region
      $region232: #{tpu_custom_call.1} parent=20 // pred_check
        _
      $region233: #{tpu_custom_call.1} parent=20 // pred_check_branch
        %412 = sbr.rel (%p409) target = $region235
      $region234: #{tpu_custom_call.1} parent=20 // pred_region
        %s428 = sand.u32 1, 7
        %p429 = scmp.eq.s32.totalorder %s428, 0
        %p430 = pneg %p429
        // Predicated region
        $region247: #{tpu_custom_call.1} parent=234 // pred_check
          _
        $region248: #{tpu_custom_call.1} parent=234 // pred_check_branch
          %432 = sbr.rel (%p429) target = $region250
        $region249: #{tpu_custom_call.1} parent=234 // pred_region
          %s433 = sand.u32 1, 7
          %s434 = ssub.s32 1, %s433
          %s435 = scalar_lea.vmem %s406, %s434
          %s436 = ssub.s32 1, %s433
          %s437 = scalar_lea.vmem %s407, %s436 [#allocation2]
          %s438 = sshll.u32 1, %s433
          %s439 = ssub.s32 %s438, 1
          loop: start=0, step=1, limit=1
          $region251: #{tpu_custom_call.1} parent=249 // loop_pre_header
            _
          $region252: #{tpu_custom_call.1} parent=249 // loop_header
            %s441 = sphi 0, %s445
            %p442 = scmp.ge.s32.totalorder %s441, 1
            %s446 = sphi %s435, %s435
            %s447 = sphi %s437, %s437
          $region253: #{tpu_custom_call.1} parent=249 // loop_header_branch
            %444 = sbr.rel (%p442) target = $region257
          $region254: #{tpu_custom_call.1} parent=249 // loop_body
            %v448 = vld [vmem:[%s446] sm:%s439]
            %449 = vst [vmem:[%s447] sm:%s439] %v448
          $region255: #{tpu_custom_call.1} parent=249 // loop_footer
            %s445 = sadd.s32 1, %s441
          $region256: #{tpu_custom_call.1} parent=249 // loop_footer_branch
            %440 = sbr.rel target = $region252
          $region257: #{tpu_custom_call.1} parent=249 // loop_exit
            _
        $region250: #{tpu_custom_call.1} parent=234 // pred_fallthru
          _
      $region235: #{tpu_custom_call.1} parent=20 // pred_fallthru
        _
      // Predicated region
      $region236: #{tpu_custom_call.1} parent=20 // pred_check
        %p413 = pneg %p409
      $region237: #{tpu_custom_call.1} parent=20 // pred_check_branch
        %415 = sbr.rel (%p413) target = $region239
      $region238: #{tpu_custom_call.1} parent=20 // pred_region
        %s416 = sshll.u32 1, 1
        %s417 = ssub.s32 %s416, 1
        loop: start=0, step=1, limit=1
        $region240: #{tpu_custom_call.1} parent=238 // loop_pre_header
          _
        $region241: #{tpu_custom_call.1} parent=238 // loop_header
          %s419 = sphi 0, %s423
          %p420 = scmp.ge.s32.totalorder %s419, 1
          %s424 = sphi %s406, %s406
          %s425 = sphi %s407, %s407
        $region242: #{tpu_custom_call.1} parent=238 // loop_header_branch
          %422 = sbr.rel (%p420) target = $region246
        $region243: #{tpu_custom_call.1} parent=238 // loop_body
          %v426 = vld [vmem:[%s424] sm:%s417]
          %427 = vst [vmem:[%s425] sm:%s417] %v426
        $region244: #{tpu_custom_call.1} parent=238 // loop_footer
          %s423 = sadd.s32 1, %s419
        $region245: #{tpu_custom_call.1} parent=238 // loop_footer_branch
          %418 = sbr.rel target = $region241
        $region246: #{tpu_custom_call.1} parent=238 // loop_exit
          _
      $region239: #{tpu_custom_call.1} parent=20 // pred_fallthru
        _
      // Predicated region
      $region258: #{tpu_custom_call.1} parent=20 // pred_check
        _
      $region259: #{tpu_custom_call.1} parent=20 // pred_check_branch
        %452 = sbr.rel (0) target = $region261
      $region260: #{tpu_custom_call.1} parent=20 // pred_region
        %453 = vsyncadd [#allocation3], 16
      $region261: #{tpu_custom_call.1} parent=20 // pred_fallthru
        _
      %s454 = sld [smem:[#allocation8 + $0x1]]
      %p455 = scmp.gt.s32.totalorder %s454, 0
      %s456 = scalar_select %p455, %s454, 0
      %p457 = scmp.lt.s32.totalorder %s456, 511
      %s458 = scalar_select %p457, %s456, 511
      %s459 = scalar_lea.vmem %s1, %s458
      %s460 = scalar_lea.vmem [#allocation2], 8
      %p462 = scmp.lt.u32.totalorder 1, 8
      %p463 = pneg %p462
      // Predicated region
      $region262: #{tpu_custom_call.1} parent=20 // pred_check
        _
      $region263: #{tpu_custom_call.1} parent=20 // pred_check_branch
        %465 = sbr.rel (%p462) target = $region265
      $region264: #{tpu_custom_call.1} parent=20 // pred_region
        %s481 = sand.u32 1, 7
        %p482 = scmp.eq.s32.totalorder %s481, 0
        %p483 = pneg %p482
        // Predicated region
        $region277: #{tpu_custom_call.1} parent=264 // pred_check
          _
        $region278: #{tpu_custom_call.1} parent=264 // pred_check_branch
          %485 = sbr.rel (%p482) target = $region280
        $region279: #{tpu_custom_call.1} parent=264 // pred_region
          %s486 = sand.u32 1, 7
          %s487 = ssub.s32 1, %s486
          %s488 = scalar_lea.vmem %s459, %s487
          %s489 = ssub.s32 1, %s486
          %s490 = scalar_lea.vmem %s460, %s489 [#allocation2]
          %s491 = sshll.u32 1, %s486
          %s492 = ssub.s32 %s491, 1
          loop: start=0, step=1, limit=1
          $region281: #{tpu_custom_call.1} parent=279 // loop_pre_header
            _
          $region282: #{tpu_custom_call.1} parent=279 // loop_header
            %s494 = sphi 0, %s498
            %p495 = scmp.ge.s32.totalorder %s494, 1
            %s499 = sphi %s488, %s488
            %s500 = sphi %s490, %s490
          $region283: #{tpu_custom_call.1} parent=279 // loop_header_branch
            %497 = sbr.rel (%p495) target = $region287
          $region284: #{tpu_custom_call.1} parent=279 // loop_body
            %v501 = vld [vmem:[%s499] sm:%s492]
            %502 = vst [vmem:[%s500] sm:%s492] %v501
          $region285: #{tpu_custom_call.1} parent=279 // loop_footer
            %s498 = sadd.s32 1, %s494
          $region286: #{tpu_custom_call.1} parent=279 // loop_footer_branch
            %493 = sbr.rel target = $region282
          $region287: #{tpu_custom_call.1} parent=279 // loop_exit
            _
        $region280: #{tpu_custom_call.1} parent=264 // pred_fallthru
          _
      $region265: #{tpu_custom_call.1} parent=20 // pred_fallthru
        _
      // Predicated region
      $region266: #{tpu_custom_call.1} parent=20 // pred_check
        %p466 = pneg %p462
      $region267: #{tpu_custom_call.1} parent=20 // pred_check_branch
        %468 = sbr.rel (%p466) target = $region269
      $region268: #{tpu_custom_call.1} parent=20 // pred_region
        %s469 = sshll.u32 1, 1
        %s470 = ssub.s32 %s469, 1
        loop: start=0, step=1, limit=1
        $region270: #{tpu_custom_call.1} parent=268 // loop_pre_header
          _
        $region271: #{tpu_custom_call.1} parent=268 // loop_header
          %s472 = sphi 0, %s476
          %p473 = scmp.ge.s32.totalorder %s472, 1
          %s477 = sphi %s459, %s459
          %s478 = sphi %s460, %s460
        $region272: #{tpu_custom_call.1} parent=268 // loop_header_branch
          %475 = sbr.rel (%p473) target = $region276
        $region273: #{tpu_custom_call.1} parent=268 // loop_body
          %v479 = vld [vmem:[%s477] sm:%s470]
          %480 = vst [vmem:[%s478] sm:%s470] %v479
        $region274: #{tpu_custom_call.1} parent=268 // loop_footer
          %s476 = sadd.s32 1, %s472
        $region275: #{tpu_custom_call.1} parent=268 // loop_footer_branch
          %471 = sbr.rel target = $region271
        $region276: #{tpu_custom_call.1} parent=268 // loop_exit
          _
      $region269: #{tpu_custom_call.1} parent=20 // pred_fallthru
        _
      // Predicated region
      $region288: #{tpu_custom_call.1} parent=20 // pred_check
        _
      $region289: #{tpu_custom_call.1} parent=20 // pred_check_branch
        %505 = sbr.rel (0) target = $region291
      $region290: #{tpu_custom_call.1} parent=20 // pred_region
        %506 = vsyncadd [#allocation3], 16
      $region291: #{tpu_custom_call.1} parent=20 // pred_fallthru
        _
      %s507 = sld [smem:[#allocation8 + $0x81]]
      %p508 = scmp.gt.s32.totalorder %s507, 0
      %s509 = scalar_select %p508, %s507, 0
      %p510 = scmp.lt.s32.totalorder %s509, 511
      %s511 = scalar_select %p510, %s509, 511
      %s512 = scalar_lea.vmem %s1, %s511
      %s513 = scalar_lea.vmem [#allocation2], 9
      %p515 = scmp.lt.u32.totalorder 1, 8
      %p516 = pneg %p515
      // Predicated region
      $region292: #{tpu_custom_call.1} parent=20 // pred_check
        _
      $region293: #{tpu_custom_call.1} parent=20 // pred_check_branch
        %518 = sbr.rel (%p515) target = $region295
      $region294: #{tpu_custom_call.1} parent=20 // pred_region
        %s534 = sand.u32 1, 7
        %p535 = scmp.eq.s32.totalorder %s534, 0
        %p536 = pneg %p535
        // Predicated region
        $region307: #{tpu_custom_call.1} parent=294 // pred_check
          _
        $region308: #{tpu_custom_call.1} parent=294 // pred_check_branch
          %538 = sbr.rel (%p535) target = $region310
        $region309: #{tpu_custom_call.1} parent=294 // pred_region
          %s539 = sand.u32 1, 7
          %s540 = ssub.s32 1, %s539
          %s541 = scalar_lea.vmem %s512, %s540
          %s542 = ssub.s32 1, %s539
          %s543 = scalar_lea.vmem %s513, %s542 [#allocation2]
          %s544 = sshll.u32 1, %s539
          %s545 = ssub.s32 %s544, 1
          loop: start=0, step=1, limit=1
          $region311: #{tpu_custom_call.1} parent=309 // loop_pre_header
            _
          $region312: #{tpu_custom_call.1} parent=309 // loop_header
            %s547 = sphi 0, %s551
            %p548 = scmp.ge.s32.totalorder %s547, 1
            %s552 = sphi %s541, %s541
            %s553 = sphi %s543, %s543
          $region313: #{tpu_custom_call.1} parent=309 // loop_header_branch
            %550 = sbr.rel (%p548) target = $region317
          $region314: #{tpu_custom_call.1} parent=309 // loop_body
            %v554 = vld [vmem:[%s552] sm:%s545]
            %555 = vst [vmem:[%s553] sm:%s545] %v554
          $region315: #{tpu_custom_call.1} parent=309 // loop_footer
            %s551 = sadd.s32 1, %s547
          $region316: #{tpu_custom_call.1} parent=309 // loop_footer_branch
            %546 = sbr.rel target = $region312
          $region317: #{tpu_custom_call.1} parent=309 // loop_exit
            _
        $region310: #{tpu_custom_call.1} parent=294 // pred_fallthru
          _
      $region295: #{tpu_custom_call.1} parent=20 // pred_fallthru
        _
      // Predicated region
      $region296: #{tpu_custom_call.1} parent=20 // pred_check
        %p519 = pneg %p515
      $region297: #{tpu_custom_call.1} parent=20 // pred_check_branch
        %521 = sbr.rel (%p519) target = $region299
      $region298: #{tpu_custom_call.1} parent=20 // pred_region
        %s522 = sshll.u32 1, 1
        %s523 = ssub.s32 %s522, 1
        loop: start=0, step=1, limit=1
        $region300: #{tpu_custom_call.1} parent=298 // loop_pre_header
          _
        $region301: #{tpu_custom_call.1} parent=298 // loop_header
          %s525 = sphi 0, %s529
          %p526 = scmp.ge.s32.totalorder %s525, 1
          %s530 = sphi %s512, %s512
          %s531 = sphi %s513, %s513
        $region302: #{tpu_custom_call.1} parent=298 // loop_header_branch
          %528 = sbr.rel (%p526) target = $region306
        $region303: #{tpu_custom_call.1} parent=298 // loop_body
          %v532 = vld [vmem:[%s530] sm:%s523]
          %533 = vst [vmem:[%s531] sm:%s523] %v532
        $region304: #{tpu_custom_call.1} parent=298 // loop_footer
          %s529 = sadd.s32 1, %s525
        $region305: #{tpu_custom_call.1} parent=298 // loop_footer_branch
          %524 = sbr.rel target = $region301
        $region306: #{tpu_custom_call.1} parent=298 // loop_exit
          _
      $region299: #{tpu_custom_call.1} parent=20 // pred_fallthru
        _
      // Predicated region
      $region318: #{tpu_custom_call.1} parent=20 // pred_check
        _
      $region319: #{tpu_custom_call.1} parent=20 // pred_check_branch
        %558 = sbr.rel (0) target = $region321
      $region320: #{tpu_custom_call.1} parent=20 // pred_region
        %559 = vsyncadd [#allocation3], 16
      $region321: #{tpu_custom_call.1} parent=20 // pred_fallthru
        _
      %s560 = sld [smem:[#allocation8 + $0x101]]
      %p561 = scmp.gt.s32.totalorder %s560, 0
      %s562 = scalar_select %p561, %s560, 0
      %p563 = scmp.lt.s32.totalorder %s562, 511
      %s564 = scalar_select %p563, %s562, 511
      %s565 = scalar_lea.vmem %s1, %s564
      %s566 = scalar_lea.vmem [#allocation2], 10
      %p568 = scmp.lt.u32.totalorder 1, 8
      %p569 = pneg %p568
      // Predicated region
      $region322: #{tpu_custom_call.1} parent=20 // pred_check
        _
      $region323: #{tpu_custom_call.1} parent=20 // pred_check_branch
        %571 = sbr.rel (%p568) target = $region325
      $region324: #{tpu_custom_call.1} parent=20 // pred_region
        %s587 = sand.u32 1, 7
        %p588 = scmp.eq.s32.totalorder %s587, 0
        %p589 = pneg %p588
        // Predicated region
        $region337: #{tpu_custom_call.1} parent=324 // pred_check
          _
        $region338: #{tpu_custom_call.1} parent=324 // pred_check_branch
          %591 = sbr.rel (%p588) target = $region340
        $region339: #{tpu_custom_call.1} parent=324 // pred_region
          %s592 = sand.u32 1, 7
          %s593 = ssub.s32 1, %s592
          %s594 = scalar_lea.vmem %s565, %s593
          %s595 = ssub.s32 1, %s592
          %s596 = scalar_lea.vmem %s566, %s595 [#allocation2]
          %s597 = sshll.u32 1, %s592
          %s598 = ssub.s32 %s597, 1
          loop: start=0, step=1, limit=1
          $region341: #{tpu_custom_call.1} parent=339 // loop_pre_header
            _
          $region342: #{tpu_custom_call.1} parent=339 // loop_header
            %s600 = sphi 0, %s604
            %p601 = scmp.ge.s32.totalorder %s600, 1
            %s605 = sphi %s594, %s594
            %s606 = sphi %s596, %s596
          $region343: #{tpu_custom_call.1} parent=339 // loop_header_branch
            %603 = sbr.rel (%p601) target = $region347
          $region344: #{tpu_custom_call.1} parent=339 // loop_body
            %v607 = vld [vmem:[%s605] sm:%s598]
            %608 = vst [vmem:[%s606] sm:%s598] %v607
          $region345: #{tpu_custom_call.1} parent=339 // loop_footer
            %s604 = sadd.s32 1, %s600
          $region346: #{tpu_custom_call.1} parent=339 // loop_footer_branch
            %599 = sbr.rel target = $region342
          $region347: #{tpu_custom_call.1} parent=339 // loop_exit
            _
        $region340: #{tpu_custom_call.1} parent=324 // pred_fallthru
          _
      $region325: #{tpu_custom_call.1} parent=20 // pred_fallthru
        _
      // Predicated region
      $region326: #{tpu_custom_call.1} parent=20 // pred_check
        %p572 = pneg %p568
      $region327: #{tpu_custom_call.1} parent=20 // pred_check_branch
        %574 = sbr.rel (%p572) target = $region329
      $region328: #{tpu_custom_call.1} parent=20 // pred_region
        %s575 = sshll.u32 1, 1
        %s576 = ssub.s32 %s575, 1
        loop: start=0, step=1, limit=1
        $region330: #{tpu_custom_call.1} parent=328 // loop_pre_header
          _
        $region331: #{tpu_custom_call.1} parent=328 // loop_header
          %s578 = sphi 0, %s582
          %p579 = scmp.ge.s32.totalorder %s578, 1
          %s583 = sphi %s565, %s565
          %s584 = sphi %s566, %s566
        $region332: #{tpu_custom_call.1} parent=328 // loop_header_branch
          %581 = sbr.rel (%p579) target = $region336
        $region333: #{tpu_custom_call.1} parent=328 // loop_body
          %v585 = vld [vmem:[%s583] sm:%s576]
          %586 = vst [vmem:[%s584] sm:%s576] %v585
        $region334: #{tpu_custom_call.1} parent=328 // loop_footer
          %s582 = sadd.s32 1, %s578
        $region335: #{tpu_custom_call.1} parent=328 // loop_footer_branch
          %577 = sbr.rel target = $region331
        $region336: #{tpu_custom_call.1} parent=328 // loop_exit
          _
      $region329: #{tpu_custom_call.1} parent=20 // pred_fallthru
        _
      // Predicated region
      $region348: #{tpu_custom_call.1} parent=20 // pred_check
        _
      $region349: #{tpu_custom_call.1} parent=20 // pred_check_branch
        %611 = sbr.rel (0) target = $region351
      $region350: #{tpu_custom_call.1} parent=20 // pred_region
        %612 = vsyncadd [#allocation3], 16
      $region351: #{tpu_custom_call.1} parent=20 // pred_fallthru
        _
      %s613 = sld [smem:[#allocation8 + $0x181]]
      %p614 = scmp.gt.s32.totalorder %s613, 0
      %s615 = scalar_select %p614, %s613, 0
      %p616 = scmp.lt.s32.totalorder %s615, 511
      %s617 = scalar_select %p616, %s615, 511
      %s618 = scalar_lea.vmem %s1, %s617
      %s619 = scalar_lea.vmem [#allocation2], 11
      %p621 = scmp.lt.u32.totalorder 1, 8
      %p622 = pneg %p621
      // Predicated region
      $region352: #{tpu_custom_call.1} parent=20 // pred_check
        _
      $region353: #{tpu_custom_call.1} parent=20 // pred_check_branch
        %624 = sbr.rel (%p621) target = $region355
      $region354: #{tpu_custom_call.1} parent=20 // pred_region
        %s640 = sand.u32 1, 7
        %p641 = scmp.eq.s32.totalorder %s640, 0
        %p642 = pneg %p641
        // Predicated region
        $region367: #{tpu_custom_call.1} parent=354 // pred_check
          _
        $region368: #{tpu_custom_call.1} parent=354 // pred_check_branch
          %644 = sbr.rel (%p641) target = $region370
        $region369: #{tpu_custom_call.1} parent=354 // pred_region
          %s645 = sand.u32 1, 7
          %s646 = ssub.s32 1, %s645
          %s647 = scalar_lea.vmem %s618, %s646
          %s648 = ssub.s32 1, %s645
          %s649 = scalar_lea.vmem %s619, %s648 [#allocation2]
          %s650 = sshll.u32 1, %s645
          %s651 = ssub.s32 %s650, 1
          loop: start=0, step=1, limit=1
          $region371: #{tpu_custom_call.1} parent=369 // loop_pre_header
            _
          $region372: #{tpu_custom_call.1} parent=369 // loop_header
            %s653 = sphi 0, %s657
            %p654 = scmp.ge.s32.totalorder %s653, 1
            %s658 = sphi %s647, %s647
            %s659 = sphi %s649, %s649
          $region373: #{tpu_custom_call.1} parent=369 // loop_header_branch
            %656 = sbr.rel (%p654) target = $region377
          $region374: #{tpu_custom_call.1} parent=369 // loop_body
            %v660 = vld [vmem:[%s658] sm:%s651]
            %661 = vst [vmem:[%s659] sm:%s651] %v660
          $region375: #{tpu_custom_call.1} parent=369 // loop_footer
            %s657 = sadd.s32 1, %s653
          $region376: #{tpu_custom_call.1} parent=369 // loop_footer_branch
            %652 = sbr.rel target = $region372
          $region377: #{tpu_custom_call.1} parent=369 // loop_exit
            _
        $region370: #{tpu_custom_call.1} parent=354 // pred_fallthru
          _
      $region355: #{tpu_custom_call.1} parent=20 // pred_fallthru
        _
      // Predicated region
      $region356: #{tpu_custom_call.1} parent=20 // pred_check
        %p625 = pneg %p621
      $region357: #{tpu_custom_call.1} parent=20 // pred_check_branch
        %627 = sbr.rel (%p625) target = $region359
      $region358: #{tpu_custom_call.1} parent=20 // pred_region
        %s628 = sshll.u32 1, 1
        %s629 = ssub.s32 %s628, 1
        loop: start=0, step=1, limit=1
        $region360: #{tpu_custom_call.1} parent=358 // loop_pre_header
          _
        $region361: #{tpu_custom_call.1} parent=358 // loop_header
          %s631 = sphi 0, %s635
          %p632 = scmp.ge.s32.totalorder %s631, 1
          %s636 = sphi %s618, %s618
          %s637 = sphi %s619, %s619
        $region362: #{tpu_custom_call.1} parent=358 // loop_header_branch
          %634 = sbr.rel (%p632) target = $region366
        $region363: #{tpu_custom_call.1} parent=358 // loop_body
          %v638 = vld [vmem:[%s636] sm:%s629]
          %639 = vst [vmem:[%s637] sm:%s629] %v638
        $region364: #{tpu_custom_call.1} parent=358 // loop_footer
          %s635 = sadd.s32 1, %s631
        $region365: #{tpu_custom_call.1} parent=358 // loop_footer_branch
          %630 = sbr.rel target = $region361
        $region366: #{tpu_custom_call.1} parent=358 // loop_exit
          _
      $region359: #{tpu_custom_call.1} parent=20 // pred_fallthru
        _
      // Predicated region
      $region378: #{tpu_custom_call.1} parent=20 // pred_check
        _
      $region379: #{tpu_custom_call.1} parent=20 // pred_check_branch
        %664 = sbr.rel (0) target = $region381
      $region380: #{tpu_custom_call.1} parent=20 // pred_region
        %665 = vsyncadd [#allocation3], 16
      $region381: #{tpu_custom_call.1} parent=20 // pred_fallthru
        _
      %s666 = sld [smem:[#allocation8 + $0x201]]
      %p667 = scmp.gt.s32.totalorder %s666, 0
      %s668 = scalar_select %p667, %s666, 0
      %p669 = scmp.lt.s32.totalorder %s668, 511
      %s670 = scalar_select %p669, %s668, 511
      %s671 = scalar_lea.vmem %s1, %s670
      %s672 = scalar_lea.vmem [#allocation2], 12
      %p674 = scmp.lt.u32.totalorder 1, 8
      %p675 = pneg %p674
      // Predicated region
      $region382: #{tpu_custom_call.1} parent=20 // pred_check
        _
      $region383: #{tpu_custom_call.1} parent=20 // pred_check_branch
        %677 = sbr.rel (%p674) target = $region385
      $region384: #{tpu_custom_call.1} parent=20 // pred_region
        %s693 = sand.u32 1, 7
        %p694 = scmp.eq.s32.totalorder %s693, 0
        %p695 = pneg %p694
        // Predicated region
        $region397: #{tpu_custom_call.1} parent=384 // pred_check
          _
        $region398: #{tpu_custom_call.1} parent=384 // pred_check_branch
          %697 = sbr.rel (%p694) target = $region400
        $region399: #{tpu_custom_call.1} parent=384 // pred_region
          %s698 = sand.u32 1, 7
          %s699 = ssub.s32 1, %s698
          %s700 = scalar_lea.vmem %s671, %s699
          %s701 = ssub.s32 1, %s698
          %s702 = scalar_lea.vmem %s672, %s701 [#allocation2]
          %s703 = sshll.u32 1, %s698
          %s704 = ssub.s32 %s703, 1
          loop: start=0, step=1, limit=1
          $region401: #{tpu_custom_call.1} parent=399 // loop_pre_header
            _
          $region402: #{tpu_custom_call.1} parent=399 // loop_header
            %s706 = sphi 0, %s710
            %p707 = scmp.ge.s32.totalorder %s706, 1
            %s711 = sphi %s700, %s700
            %s712 = sphi %s702, %s702
          $region403: #{tpu_custom_call.1} parent=399 // loop_header_branch
            %709 = sbr.rel (%p707) target = $region407
          $region404: #{tpu_custom_call.1} parent=399 // loop_body
            %v713 = vld [vmem:[%s711] sm:%s704]
            %714 = vst [vmem:[%s712] sm:%s704] %v713
          $region405: #{tpu_custom_call.1} parent=399 // loop_footer
            %s710 = sadd.s32 1, %s706
          $region406: #{tpu_custom_call.1} parent=399 // loop_footer_branch
            %705 = sbr.rel target = $region402
          $region407: #{tpu_custom_call.1} parent=399 // loop_exit
            _
        $region400: #{tpu_custom_call.1} parent=384 // pred_fallthru
          _
      $region385: #{tpu_custom_call.1} parent=20 // pred_fallthru
        _
      // Predicated region
      $region386: #{tpu_custom_call.1} parent=20 // pred_check
        %p678 = pneg %p674
      $region387: #{tpu_custom_call.1} parent=20 // pred_check_branch
        %680 = sbr.rel (%p678) target = $region389
      $region388: #{tpu_custom_call.1} parent=20 // pred_region
        %s681 = sshll.u32 1, 1
        %s682 = ssub.s32 %s681, 1
        loop: start=0, step=1, limit=1
        $region390: #{tpu_custom_call.1} parent=388 // loop_pre_header
          _
        $region391: #{tpu_custom_call.1} parent=388 // loop_header
          %s684 = sphi 0, %s688
          %p685 = scmp.ge.s32.totalorder %s684, 1
          %s689 = sphi %s671, %s671
          %s690 = sphi %s672, %s672
        $region392: #{tpu_custom_call.1} parent=388 // loop_header_branch
          %687 = sbr.rel (%p685) target = $region396
        $region393: #{tpu_custom_call.1} parent=388 // loop_body
          %v691 = vld [vmem:[%s689] sm:%s682]
          %692 = vst [vmem:[%s690] sm:%s682] %v691
        $region394: #{tpu_custom_call.1} parent=388 // loop_footer
          %s688 = sadd.s32 1, %s684
        $region395: #{tpu_custom_call.1} parent=388 // loop_footer_branch
          %683 = sbr.rel target = $region391
        $region396: #{tpu_custom_call.1} parent=388 // loop_exit
          _
      $region389: #{tpu_custom_call.1} parent=20 // pred_fallthru
        _
      // Predicated region
      $region408: #{tpu_custom_call.1} parent=20 // pred_check
        _
      $region409: #{tpu_custom_call.1} parent=20 // pred_check_branch
        %717 = sbr.rel (0) target = $region411
      $region410: #{tpu_custom_call.1} parent=20 // pred_region
        %718 = vsyncadd [#allocation3], 16
      $region411: #{tpu_custom_call.1} parent=20 // pred_fallthru
        _
      %s719 = sld [smem:[#allocation8 + $0x281]]
      %p720 = scmp.gt.s32.totalorder %s719, 0
      %s721 = scalar_select %p720, %s719, 0
      %p722 = scmp.lt.s32.totalorder %s721, 511
      %s723 = scalar_select %p722, %s721, 511
      %s724 = scalar_lea.vmem %s1, %s723
      %s725 = scalar_lea.vmem [#allocation2], 13
      %p727 = scmp.lt.u32.totalorder 1, 8
      %p728 = pneg %p727
      // Predicated region
      $region412: #{tpu_custom_call.1} parent=20 // pred_check
        _
      $region413: #{tpu_custom_call.1} parent=20 // pred_check_branch
        %730 = sbr.rel (%p727) target = $region415
      $region414: #{tpu_custom_call.1} parent=20 // pred_region
        %s746 = sand.u32 1, 7
        %p747 = scmp.eq.s32.totalorder %s746, 0
        %p748 = pneg %p747
        // Predicated region
        $region427: #{tpu_custom_call.1} parent=414 // pred_check
          _
        $region428: #{tpu_custom_call.1} parent=414 // pred_check_branch
          %750 = sbr.rel (%p747) target = $region430
        $region429: #{tpu_custom_call.1} parent=414 // pred_region
          %s751 = sand.u32 1, 7
          %s752 = ssub.s32 1, %s751
          %s753 = scalar_lea.vmem %s724, %s752
          %s754 = ssub.s32 1, %s751
          %s755 = scalar_lea.vmem %s725, %s754 [#allocation2]
          %s756 = sshll.u32 1, %s751
          %s757 = ssub.s32 %s756, 1
          loop: start=0, step=1, limit=1
          $region431: #{tpu_custom_call.1} parent=429 // loop_pre_header
            _
          $region432: #{tpu_custom_call.1} parent=429 // loop_header
            %s759 = sphi 0, %s763
            %p760 = scmp.ge.s32.totalorder %s759, 1
            %s764 = sphi %s753, %s753
            %s765 = sphi %s755, %s755
          $region433: #{tpu_custom_call.1} parent=429 // loop_header_branch
            %762 = sbr.rel (%p760) target = $region437
          $region434: #{tpu_custom_call.1} parent=429 // loop_body
            %v766 = vld [vmem:[%s764] sm:%s757]
            %767 = vst [vmem:[%s765] sm:%s757] %v766
          $region435: #{tpu_custom_call.1} parent=429 // loop_footer
            %s763 = sadd.s32 1, %s759
          $region436: #{tpu_custom_call.1} parent=429 // loop_footer_branch
            %758 = sbr.rel target = $region432
          $region437: #{tpu_custom_call.1} parent=429 // loop_exit
            _
        $region430: #{tpu_custom_call.1} parent=414 // pred_fallthru
          _
      $region415: #{tpu_custom_call.1} parent=20 // pred_fallthru
        _
      // Predicated region
      $region416: #{tpu_custom_call.1} parent=20 // pred_check
        %p731 = pneg %p727
      $region417: #{tpu_custom_call.1} parent=20 // pred_check_branch
        %733 = sbr.rel (%p731) target = $region419
      $region418: #{tpu_custom_call.1} parent=20 // pred_region
        %s734 = sshll.u32 1, 1
        %s735 = ssub.s32 %s734, 1
        loop: start=0, step=1, limit=1
        $region420: #{tpu_custom_call.1} parent=418 // loop_pre_header
          _
        $region421: #{tpu_custom_call.1} parent=418 // loop_header
          %s737 = sphi 0, %s741
          %p738 = scmp.ge.s32.totalorder %s737, 1
          %s742 = sphi %s724, %s724
          %s743 = sphi %s725, %s725
        $region422: #{tpu_custom_call.1} parent=418 // loop_header_branch
          %740 = sbr.rel (%p738) target = $region426
        $region423: #{tpu_custom_call.1} parent=418 // loop_body
          %v744 = vld [vmem:[%s742] sm:%s735]
          %745 = vst [vmem:[%s743] sm:%s735] %v744
        $region424: #{tpu_custom_call.1} parent=418 // loop_footer
          %s741 = sadd.s32 1, %s737
        $region425: #{tpu_custom_call.1} parent=418 // loop_footer_branch
          %736 = sbr.rel target = $region421
        $region426: #{tpu_custom_call.1} parent=418 // loop_exit
          _
      $region419: #{tpu_custom_call.1} parent=20 // pred_fallthru
        _
      // Predicated region
      $region438: #{tpu_custom_call.1} parent=20 // pred_check
        _
      $region439: #{tpu_custom_call.1} parent=20 // pred_check_branch
        %770 = sbr.rel (0) target = $region441
      $region440: #{tpu_custom_call.1} parent=20 // pred_region
        %771 = vsyncadd [#allocation3], 16
      $region441: #{tpu_custom_call.1} parent=20 // pred_fallthru
        _
      %s772 = sld [smem:[#allocation8 + $0x301]]
      %p773 = scmp.gt.s32.totalorder %s772, 0
      %s774 = scalar_select %p773, %s772, 0
      %p775 = scmp.lt.s32.totalorder %s774, 511
      %s776 = scalar_select %p775, %s774, 511
      %s777 = scalar_lea.vmem %s1, %s776
      %s778 = scalar_lea.vmem [#allocation2], 14
      %p780 = scmp.lt.u32.totalorder 1, 8
      %p781 = pneg %p780
      // Predicated region
      $region442: #{tpu_custom_call.1} parent=20 // pred_check
        _
      $region443: #{tpu_custom_call.1} parent=20 // pred_check_branch
        %783 = sbr.rel (%p780) target = $region445
      $region444: #{tpu_custom_call.1} parent=20 // pred_region
        %s799 = sand.u32 1, 7
        %p800 = scmp.eq.s32.totalorder %s799, 0
        %p801 = pneg %p800
        // Predicated region
        $region457: #{tpu_custom_call.1} parent=444 // pred_check
          _
        $region458: #{tpu_custom_call.1} parent=444 // pred_check_branch
          %803 = sbr.rel (%p800) target = $region460
        $region459: #{tpu_custom_call.1} parent=444 // pred_region
          %s804 = sand.u32 1, 7
          %s805 = ssub.s32 1, %s804
          %s806 = scalar_lea.vmem %s777, %s805
          %s807 = ssub.s32 1, %s804
          %s808 = scalar_lea.vmem %s778, %s807 [#allocation2]
          %s809 = sshll.u32 1, %s804
          %s810 = ssub.s32 %s809, 1
          loop: start=0, step=1, limit=1
          $region461: #{tpu_custom_call.1} parent=459 // loop_pre_header
            _
          $region462: #{tpu_custom_call.1} parent=459 // loop_header
            %s812 = sphi 0, %s816
            %p813 = scmp.ge.s32.totalorder %s812, 1
            %s817 = sphi %s806, %s806
            %s818 = sphi %s808, %s808
          $region463: #{tpu_custom_call.1} parent=459 // loop_header_branch
            %815 = sbr.rel (%p813) target = $region467
          $region464: #{tpu_custom_call.1} parent=459 // loop_body
            %v819 = vld [vmem:[%s817] sm:%s810]
            %820 = vst [vmem:[%s818] sm:%s810] %v819
          $region465: #{tpu_custom_call.1} parent=459 // loop_footer
            %s816 = sadd.s32 1, %s812
          $region466: #{tpu_custom_call.1} parent=459 // loop_footer_branch
            %811 = sbr.rel target = $region462
          $region467: #{tpu_custom_call.1} parent=459 // loop_exit
            _
        $region460: #{tpu_custom_call.1} parent=444 // pred_fallthru
          _
      $region445: #{tpu_custom_call.1} parent=20 // pred_fallthru
        _
      // Predicated region
      $region446: #{tpu_custom_call.1} parent=20 // pred_check
        %p784 = pneg %p780
      $region447: #{tpu_custom_call.1} parent=20 // pred_check_branch
        %786 = sbr.rel (%p784) target = $region449
      $region448: #{tpu_custom_call.1} parent=20 // pred_region
        %s787 = sshll.u32 1, 1
        %s788 = ssub.s32 %s787, 1
        loop: start=0, step=1, limit=1
        $region450: #{tpu_custom_call.1} parent=448 // loop_pre_header
          _
        $region451: #{tpu_custom_call.1} parent=448 // loop_header
          %s790 = sphi 0, %s794
          %p791 = scmp.ge.s32.totalorder %s790, 1
          %s795 = sphi %s777, %s777
          %s796 = sphi %s778, %s778
        $region452: #{tpu_custom_call.1} parent=448 // loop_header_branch
          %793 = sbr.rel (%p791) target = $region456
        $region453: #{tpu_custom_call.1} parent=448 // loop_body
          %v797 = vld [vmem:[%s795] sm:%s788]
          %798 = vst [vmem:[%s796] sm:%s788] %v797
        $region454: #{tpu_custom_call.1} parent=448 // loop_footer
          %s794 = sadd.s32 1, %s790
        $region455: #{tpu_custom_call.1} parent=448 // loop_footer_branch
          %789 = sbr.rel target = $region451
        $region456: #{tpu_custom_call.1} parent=448 // loop_exit
          _
      $region449: #{tpu_custom_call.1} parent=20 // pred_fallthru
        _
      // Predicated region
      $region468: #{tpu_custom_call.1} parent=20 // pred_check
        _
      $region469: #{tpu_custom_call.1} parent=20 // pred_check_branch
        %823 = sbr.rel (0) target = $region471
      $region470: #{tpu_custom_call.1} parent=20 // pred_region
        %824 = vsyncadd [#allocation3], 16
      $region471: #{tpu_custom_call.1} parent=20 // pred_fallthru
        _
      %s825 = sld [smem:[#allocation8 + $0x381]]
      %p826 = scmp.gt.s32.totalorder %s825, 0
      %s827 = scalar_select %p826, %s825, 0
      %p828 = scmp.lt.s32.totalorder %s827, 511
      %s829 = scalar_select %p828, %s827, 511
      %s830 = scalar_lea.vmem %s1, %s829
      %s831 = scalar_lea.vmem [#allocation2], 15
      %p833 = scmp.lt.u32.totalorder 1, 8
      %p834 = pneg %p833
      // Predicated region
      $region472: #{tpu_custom_call.1} parent=20 // pred_check
        _
      $region473: #{tpu_custom_call.1} parent=20 // pred_check_branch
        %836 = sbr.rel (%p833) target = $region475
      $region474: #{tpu_custom_call.1} parent=20 // pred_region
        %s852 = sand.u32 1, 7
        %p853 = scmp.eq.s32.totalorder %s852, 0
        %p854 = pneg %p853
        // Predicated region
        $region487: #{tpu_custom_call.1} parent=474 // pred_check
          _
        $region488: #{tpu_custom_call.1} parent=474 // pred_check_branch
          %856 = sbr.rel (%p853) target = $region490
        $region489: #{tpu_custom_call.1} parent=474 // pred_region
          %s857 = sand.u32 1, 7
          %s858 = ssub.s32 1, %s857
          %s859 = scalar_lea.vmem %s830, %s858
          %s860 = ssub.s32 1, %s857
          %s861 = scalar_lea.vmem %s831, %s860 [#allocation2]
          %s862 = sshll.u32 1, %s857
          %s863 = ssub.s32 %s862, 1
          loop: start=0, step=1, limit=1
          $region491: #{tpu_custom_call.1} parent=489 // loop_pre_header
            _
          $region492: #{tpu_custom_call.1} parent=489 // loop_header
            %s865 = sphi 0, %s869
            %p866 = scmp.ge.s32.totalorder %s865, 1
            %s870 = sphi %s859, %s859
            %s871 = sphi %s861, %s861
          $region493: #{tpu_custom_call.1} parent=489 // loop_header_branch
            %868 = sbr.rel (%p866) target = $region497
          $region494: #{tpu_custom_call.1} parent=489 // loop_body
            %v872 = vld [vmem:[%s870] sm:%s863]
            %873 = vst [vmem:[%s871] sm:%s863] %v872
          $region495: #{tpu_custom_call.1} parent=489 // loop_footer
            %s869 = sadd.s32 1, %s865
          $region496: #{tpu_custom_call.1} parent=489 // loop_footer_branch
            %864 = sbr.rel target = $region492
          $region497: #{tpu_custom_call.1} parent=489 // loop_exit
            _
        $region490: #{tpu_custom_call.1} parent=474 // pred_fallthru
          _
      $region475: #{tpu_custom_call.1} parent=20 // pred_fallthru
        _
      // Predicated region
      $region476: #{tpu_custom_call.1} parent=20 // pred_check
        %p837 = pneg %p833
      $region477: #{tpu_custom_call.1} parent=20 // pred_check_branch
        %839 = sbr.rel (%p837) target = $region479
      $region478: #{tpu_custom_call.1} parent=20 // pred_region
        %s840 = sshll.u32 1, 1
        %s841 = ssub.s32 %s840, 1
        loop: start=0, step=1, limit=1
        $region480: #{tpu_custom_call.1} parent=478 // loop_pre_header
          _
        $region481: #{tpu_custom_call.1} parent=478 // loop_header
          %s843 = sphi 0, %s847
          %p844 = scmp.ge.s32.totalorder %s843, 1
          %s848 = sphi %s830, %s830
          %s849 = sphi %s831, %s831
        $region482: #{tpu_custom_call.1} parent=478 // loop_header_branch
          %846 = sbr.rel (%p844) target = $region486
        $region483: #{tpu_custom_call.1} parent=478 // loop_body
          %v850 = vld [vmem:[%s848] sm:%s841]
          %851 = vst [vmem:[%s849] sm:%s841] %v850
        $region484: #{tpu_custom_call.1} parent=478 // loop_footer
          %s847 = sadd.s32 1, %s843
        $region485: #{tpu_custom_call.1} parent=478 // loop_footer_branch
          %842 = sbr.rel target = $region481
        $region486: #{tpu_custom_call.1} parent=478 // loop_exit
          _
      $region479: #{tpu_custom_call.1} parent=20 // pred_fallthru
        _
      // Predicated region
      $region498: #{tpu_custom_call.1} parent=20 // pred_check
        _
      $region499: #{tpu_custom_call.1} parent=20 // pred_check_branch
        %876 = sbr.rel (0) target = $region501
      $region500: #{tpu_custom_call.1} parent=20 // pred_region
        %877 = vsyncadd [#allocation3], 16
      $region501: #{tpu_custom_call.1} parent=20 // pred_fallthru
        _
      %s878 = sld [smem:[#allocation8 + $0x2]]
      %p879 = scmp.gt.s32.totalorder %s878, 0
      %s880 = scalar_select %p879, %s878, 0
      %p881 = scmp.lt.s32.totalorder %s880, 511
      %s882 = scalar_select %p881, %s880, 511
      %s883 = scalar_lea.vmem %s1, %s882
      %s884 = scalar_lea.vmem [#allocation2], 16
      %p886 = scmp.lt.u32.totalorder 1, 8
      %p887 = pneg %p886
      // Predicated region
      $region502: #{tpu_custom_call.1} parent=20 // pred_check
        _
      $region503: #{tpu_custom_call.1} parent=20 // pred_check_branch
        %889 = sbr.rel (%p886) target = $region505
      $region504: #{tpu_custom_call.1} parent=20 // pred_region
        %s905 = sand.u32 1, 7
        %p906 = scmp.eq.s32.totalorder %s905, 0
        %p907 = pneg %p906
        // Predicated region
        $region517: #{tpu_custom_call.1} parent=504 // pred_check
          _
        $region518: #{tpu_custom_call.1} parent=504 // pred_check_branch
          %909 = sbr.rel (%p906) target = $region520
        $region519: #{tpu_custom_call.1} parent=504 // pred_region
          %s910 = sand.u32 1, 7
          %s911 = ssub.s32 1, %s910
          %s912 = scalar_lea.vmem %s883, %s911
          %s913 = ssub.s32 1, %s910
          %s914 = scalar_lea.vmem %s884, %s913 [#allocation2]
          %s915 = sshll.u32 1, %s910
          %s916 = ssub.s32 %s915, 1
          loop: start=0, step=1, limit=1
          $region521: #{tpu_custom_call.1} parent=519 // loop_pre_header
            _
          $region522: #{tpu_custom_call.1} parent=519 // loop_header
            %s918 = sphi 0, %s922
            %p919 = scmp.ge.s32.totalorder %s918, 1
            %s923 = sphi %s912, %s912
            %s924 = sphi %s914, %s914
          $region523: #{tpu_custom_call.1} parent=519 // loop_header_branch
            %921 = sbr.rel (%p919) target = $region527
          $region524: #{tpu_custom_call.1} parent=519 // loop_body
            %v925 = vld [vmem:[%s923] sm:%s916]
            %926 = vst [vmem:[%s924] sm:%s916] %v925
          $region525: #{tpu_custom_call.1} parent=519 // loop_footer
            %s922 = sadd.s32 1, %s918
          $region526: #{tpu_custom_call.1} parent=519 // loop_footer_branch
            %917 = sbr.rel target = $region522
          $region527: #{tpu_custom_call.1} parent=519 // loop_exit
            _
        $region520: #{tpu_custom_call.1} parent=504 // pred_fallthru
          _
      $region505: #{tpu_custom_call.1} parent=20 // pred_fallthru
        _
      // Predicated region
      $region506: #{tpu_custom_call.1} parent=20 // pred_check
        %p890 = pneg %p886
      $region507: #{tpu_custom_call.1} parent=20 // pred_check_branch
        %892 = sbr.rel (%p890) target = $region509
      $region508: #{tpu_custom_call.1} parent=20 // pred_region
        %s893 = sshll.u32 1, 1
        %s894 = ssub.s32 %s893, 1
        loop: start=0, step=1, limit=1
        $region510: #{tpu_custom_call.1} parent=508 // loop_pre_header
          _
        $region511: #{tpu_custom_call.1} parent=508 // loop_header
          %s896 = sphi 0, %s900
          %p897 = scmp.ge.s32.totalorder %s896, 1
          %s901 = sphi %s883, %s883
          %s902 = sphi %s884, %s884
        $region512: #{tpu_custom_call.1} parent=508 // loop_header_branch
          %899 = sbr.rel (%p897) target = $region516
        $region513: #{tpu_custom_call.1} parent=508 // loop_body
          %v903 = vld [vmem:[%s901] sm:%s894]
          %904 = vst [vmem:[%s902] sm:%s894] %v903
        $region514: #{tpu_custom_call.1} parent=508 // loop_footer
          %s900 = sadd.s32 1, %s896
        $region515: #{tpu_custom_call.1} parent=508 // loop_footer_branch
          %895 = sbr.rel target = $region511
        $region516: #{tpu_custom_call.1} parent=508 // loop_exit
          _
      $region509: #{tpu_custom_call.1} parent=20 // pred_fallthru
        _
      // Predicated region
      $region528: #{tpu_custom_call.1} parent=20 // pred_check
        _
      $region529: #{tpu_custom_call.1} parent=20 // pred_check_branch
        %929 = sbr.rel (0) target = $region531
      $region530: #{tpu_custom_call.1} parent=20 // pred_region
        %930 = vsyncadd [#allocation3], 16
      $region531: #{tpu_custom_call.1} parent=20 // pred_fallthru
        _
      %s931 = sld [smem:[#allocation8 + $0x82]]
      %p932 = scmp.gt.s32.totalorder %s931, 0
      %s933 = scalar_select %p932, %s931, 0
      %p934 = scmp.lt.s32.totalorder %s933, 511
      %s935 = scalar_select %p934, %s933, 511
      %s936 = scalar_lea.vmem %s1, %s935
      %s937 = scalar_lea.vmem [#allocation2], 17
      %p939 = scmp.lt.u32.totalorder 1, 8
      %p940 = pneg %p939
      // Predicated region
      $region532: #{tpu_custom_call.1} parent=20 // pred_check
        _
      $region533: #{tpu_custom_call.1} parent=20 // pred_check_branch
        %942 = sbr.rel (%p939) target = $region535
      $region534: #{tpu_custom_call.1} parent=20 // pred_region
        %s958 = sand.u32 1, 7
        %p959 = scmp.eq.s32.totalorder %s958, 0
        %p960 = pneg %p959
        // Predicated region
        $region547: #{tpu_custom_call.1} parent=534 // pred_check
          _
        $region548: #{tpu_custom_call.1} parent=534 // pred_check_branch
          %962 = sbr.rel (%p959) target = $region550
        $region549: #{tpu_custom_call.1} parent=534 // pred_region
          %s963 = sand.u32 1, 7
          %s964 = ssub.s32 1, %s963
          %s965 = scalar_lea.vmem %s936, %s964
          %s966 = ssub.s32 1, %s963
          %s967 = scalar_lea.vmem %s937, %s966 [#allocation2]
          %s968 = sshll.u32 1, %s963
          %s969 = ssub.s32 %s968, 1
          loop: start=0, step=1, limit=1
          $region551: #{tpu_custom_call.1} parent=549 // loop_pre_header
            _
          $region552: #{tpu_custom_call.1} parent=549 // loop_header
            %s971 = sphi 0, %s975
            %p972 = scmp.ge.s32.totalorder %s971, 1
            %s976 = sphi %s965, %s965
            %s977 = sphi %s967, %s967
          $region553: #{tpu_custom_call.1} parent=549 // loop_header_branch
            %974 = sbr.rel (%p972) target = $region557
          $region554: #{tpu_custom_call.1} parent=549 // loop_body
            %v978 = vld [vmem:[%s976] sm:%s969]
            %979 = vst [vmem:[%s977] sm:%s969] %v978
          $region555: #{tpu_custom_call.1} parent=549 // loop_footer
            %s975 = sadd.s32 1, %s971
          $region556: #{tpu_custom_call.1} parent=549 // loop_footer_branch
            %970 = sbr.rel target = $region552
          $region557: #{tpu_custom_call.1} parent=549 // loop_exit
            _
        $region550: #{tpu_custom_call.1} parent=534 // pred_fallthru
          _
      $region535: #{tpu_custom_call.1} parent=20 // pred_fallthru
        _
      // Predicated region
      $region536: #{tpu_custom_call.1} parent=20 // pred_check
        %p943 = pneg %p939
      $region537: #{tpu_custom_call.1} parent=20 // pred_check_branch
        %945 = sbr.rel (%p943) target = $region539
      $region538: #{tpu_custom_call.1} parent=20 // pred_region
        %s946 = sshll.u32 1, 1
        %s947 = ssub.s32 %s946, 1
        loop: start=0, step=1, limit=1
        $region540: #{tpu_custom_call.1} parent=538 // loop_pre_header
          _
        $region541: #{tpu_custom_call.1} parent=538 // loop_header
          %s949 = sphi 0, %s953
          %p950 = scmp.ge.s32.totalorder %s949, 1
          %s954 = sphi %s936, %s936
          %s955 = sphi %s937, %s937
        $region542: #{tpu_custom_call.1} parent=538 // loop_header_branch
          %952 = sbr.rel (%p950) target = $region546
        $region543: #{tpu_custom_call.1} parent=538 // loop_body
          %v956 = vld [vmem:[%s954] sm:%s947]
          %957 = vst [vmem:[%s955] sm:%s947] %v956
        $region544: #{tpu_custom_call.1} parent=538 // loop_footer
          %s953 = sadd.s32 1, %s949
        $region545: #{tpu_custom_call.1} parent=538 // loop_footer_branch
          %948 = sbr.rel target = $region541
        $region546: #{tpu_custom_call.1} parent=538 // loop_exit
          _
      $region539: #{tpu_custom_call.1} parent=20 // pred_fallthru
        _
      // Predicated region
      $region558: #{tpu_custom_call.1} parent=20 // pred_check
        _
      $region559: #{tpu_custom_call.1} parent=20 // pred_check_branch
        %982 = sbr.rel (0) target = $region561
      $region560: #{tpu_custom_call.1} parent=20 // pred_region
        %983 = vsyncadd [#allocation3], 16
      $region561: #{tpu_custom_call.1} parent=20 // pred_fallthru
        _
      %s984 = sld [smem:[#allocation8 + $0x102]]
      %p985 = scmp.gt.s32.totalorder %s984, 0
      %s986 = scalar_select %p985, %s984, 0
      %p987 = scmp.lt.s32.totalorder %s986, 511
      %s988 = scalar_select %p987, %s986, 511
      %s989 = scalar_lea.vmem %s1, %s988
      %s990 = scalar_lea.vmem [#allocation2], 18
      %p992 = scmp.lt.u32.totalorder 1, 8
      %p993 = pneg %p992
      // Predicated region
      $region562: #{tpu_custom_call.1} parent=20 // pred_check
        _
      $region563: #{tpu_custom_call.1} parent=20 // pred_check_branch
        %995 = sbr.rel (%p992) target = $region565
      $region564: #{tpu_custom_call.1} parent=20 // pred_region
        %s1011 = sand.u32 1, 7
        %p1012 = scmp.eq.s32.totalorder %s1011, 0
        %p1013 = pneg %p1012
        // Predicated region
        $region577: #{tpu_custom_call.1} parent=564 // pred_check
          _
        $region578: #{tpu_custom_call.1} parent=564 // pred_check_branch
          %1015 = sbr.rel (%p1012) target = $region580
        $region579: #{tpu_custom_call.1} parent=564 // pred_region
          %s1016 = sand.u32 1, 7
          %s1017 = ssub.s32 1, %s1016
          %s1018 = scalar_lea.vmem %s989, %s1017
          %s1019 = ssub.s32 1, %s1016
          %s1020 = scalar_lea.vmem %s990, %s1019 [#allocation2]
          %s1021 = sshll.u32 1, %s1016
          %s1022 = ssub.s32 %s1021, 1
          loop: start=0, step=1, limit=1
          $region581: #{tpu_custom_call.1} parent=579 // loop_pre_header
            _
          $region582: #{tpu_custom_call.1} parent=579 // loop_header
            %s1024 = sphi 0, %s1028
            %p1025 = scmp.ge.s32.totalorder %s1024, 1
            %s1029 = sphi %s1018, %s1018
            %s1030 = sphi %s1020, %s1020
          $region583: #{tpu_custom_call.1} parent=579 // loop_header_branch
            %1027 = sbr.rel (%p1025) target = $region587
          $region584: #{tpu_custom_call.1} parent=579 // loop_body
            %v1031 = vld [vmem:[%s1029] sm:%s1022]
            %1032 = vst [vmem:[%s1030] sm:%s1022] %v1031
          $region585: #{tpu_custom_call.1} parent=579 // loop_footer
            %s1028 = sadd.s32 1, %s1024
          $region586: #{tpu_custom_call.1} parent=579 // loop_footer_branch
            %1023 = sbr.rel target = $region582
          $region587: #{tpu_custom_call.1} parent=579 // loop_exit
            _
        $region580: #{tpu_custom_call.1} parent=564 // pred_fallthru
          _
      $region565: #{tpu_custom_call.1} parent=20 // pred_fallthru
        _
      // Predicated region
      $region566: #{tpu_custom_call.1} parent=20 // pred_check
        %p996 = pneg %p992
      $region567: #{tpu_custom_call.1} parent=20 // pred_check_branch
        %998 = sbr.rel (%p996) target = $region569
      $region568: #{tpu_custom_call.1} parent=20 // pred_region
        %s999 = sshll.u32 1, 1
        %s1000 = ssub.s32 %s999, 1
        loop: start=0, step=1, limit=1
        $region570: #{tpu_custom_call.1} parent=568 // loop_pre_header
          _
        $region571: #{tpu_custom_call.1} parent=568 // loop_header
          %s1002 = sphi 0, %s1006
          %p1003 = scmp.ge.s32.totalorder %s1002, 1
          %s1007 = sphi %s989, %s989
          %s1008 = sphi %s990, %s990
        $region572: #{tpu_custom_call.1} parent=568 // loop_header_branch
          %1005 = sbr.rel (%p1003) target = $region576
        $region573: #{tpu_custom_call.1} parent=568 // loop_body
          %v1009 = vld [vmem:[%s1007] sm:%s1000]
          %1010 = vst [vmem:[%s1008] sm:%s1000] %v1009
        $region574: #{tpu_custom_call.1} parent=568 // loop_footer
          %s1006 = sadd.s32 1, %s1002
        $region575: #{tpu_custom_call.1} parent=568 // loop_footer_branch
          %1001 = sbr.rel target = $region571
        $region576: #{tpu_custom_call.1} parent=568 // loop_exit
          _
      $region569: #{tpu_custom_call.1} parent=20 // pred_fallthru
        _
      // Predicated region
      $region588: #{tpu_custom_call.1} parent=20 // pred_check
        _
      $region589: #{tpu_custom_call.1} parent=20 // pred_check_branch
        %1035 = sbr.rel (0) target = $region591
      $region590: #{tpu_custom_call.1} parent=20 // pred_region
        %1036 = vsyncadd [#allocation3], 16
      $region591: #{tpu_custom_call.1} parent=20 // pred_fallthru
        _
      %s1037 = sld [smem:[#allocation8 + $0x182]]
      %p1038 = scmp.gt.s32.totalorder %s1037, 0
      %s1039 = scalar_select %p1038, %s1037, 0
      %p1040 = scmp.lt.s32.totalorder %s1039, 511
      %s1041 = scalar_select %p1040, %s1039, 511
      %s1042 = scalar_lea.vmem %s1, %s1041
      %s1043 = scalar_lea.vmem [#allocation2], 19
      %p1045 = scmp.lt.u32.totalorder 1, 8
      %p1046 = pneg %p1045
      // Predicated region
      $region592: #{tpu_custom_call.1} parent=20 // pred_check
        _
      $region593: #{tpu_custom_call.1} parent=20 // pred_check_branch
        %1048 = sbr.rel (%p1045) target = $region595
      $region594: #{tpu_custom_call.1} parent=20 // pred_region
        %s1064 = sand.u32 1, 7
        %p1065 = scmp.eq.s32.totalorder %s1064, 0
        %p1066 = pneg %p1065
        // Predicated region
        $region607: #{tpu_custom_call.1} parent=594 // pred_check
          _
        $region608: #{tpu_custom_call.1} parent=594 // pred_check_branch
          %1068 = sbr.rel (%p1065) target = $region610
        $region609: #{tpu_custom_call.1} parent=594 // pred_region
          %s1069 = sand.u32 1, 7
          %s1070 = ssub.s32 1, %s1069
          %s1071 = scalar_lea.vmem %s1042, %s1070
          %s1072 = ssub.s32 1, %s1069
          %s1073 = scalar_lea.vmem %s1043, %s1072 [#allocation2]
          %s1074 = sshll.u32 1, %s1069
          %s1075 = ssub.s32 %s1074, 1
          loop: start=0, step=1, limit=1
          $region611: #{tpu_custom_call.1} parent=609 // loop_pre_header
            _
          $region612: #{tpu_custom_call.1} parent=609 // loop_header
            %s1077 = sphi 0, %s1081
            %p1078 = scmp.ge.s32.totalorder %s1077, 1
            %s1082 = sphi %s1071, %s1071
            %s1083 = sphi %s1073, %s1073
          $region613: #{tpu_custom_call.1} parent=609 // loop_header_branch
            %1080 = sbr.rel (%p1078) target = $region617
          $region614: #{tpu_custom_call.1} parent=609 // loop_body
            %v1084 = vld [vmem:[%s1082] sm:%s1075]
            %1085 = vst [vmem:[%s1083] sm:%s1075] %v1084
          $region615: #{tpu_custom_call.1} parent=609 // loop_footer
            %s1081 = sadd.s32 1, %s1077
          $region616: #{tpu_custom_call.1} parent=609 // loop_footer_branch
            %1076 = sbr.rel target = $region612
          $region617: #{tpu_custom_call.1} parent=609 // loop_exit
            _
        $region610: #{tpu_custom_call.1} parent=594 // pred_fallthru
          _
      $region595: #{tpu_custom_call.1} parent=20 // pred_fallthru
        _
      // Predicated region
      $region596: #{tpu_custom_call.1} parent=20 // pred_check
        %p1049 = pneg %p1045
      $region597: #{tpu_custom_call.1} parent=20 // pred_check_branch
        %1051 = sbr.rel (%p1049) target = $region599
      $region598: #{tpu_custom_call.1} parent=20 // pred_region
        %s1052 = sshll.u32 1, 1
        %s1053 = ssub.s32 %s1052, 1
        loop: start=0, step=1, limit=1
        $region600: #{tpu_custom_call.1} parent=598 // loop_pre_header
          _
        $region601: #{tpu_custom_call.1} parent=598 // loop_header
          %s1055 = sphi 0, %s1059
          %p1056 = scmp.ge.s32.totalorder %s1055, 1
          %s1060 = sphi %s1042, %s1042
          %s1061 = sphi %s1043, %s1043
        $region602: #{tpu_custom_call.1} parent=598 // loop_header_branch
          %1058 = sbr.rel (%p1056) target = $region606
        $region603: #{tpu_custom_call.1} parent=598 // loop_body
          %v1062 = vld [vmem:[%s1060] sm:%s1053]
          %1063 = vst [vmem:[%s1061] sm:%s1053] %v1062
        $region604: #{tpu_custom_call.1} parent=598 // loop_footer
          %s1059 = sadd.s32 1, %s1055
        $region605: #{tpu_custom_call.1} parent=598 // loop_footer_branch
          %1054 = sbr.rel target = $region601
        $region606: #{tpu_custom_call.1} parent=598 // loop_exit
          _
      $region599: #{tpu_custom_call.1} parent=20 // pred_fallthru
        _
      // Predicated region
      $region618: #{tpu_custom_call.1} parent=20 // pred_check
        _
      $region619: #{tpu_custom_call.1} parent=20 // pred_check_branch
        %1088 = sbr.rel (0) target = $region621
      $region620: #{tpu_custom_call.1} parent=20 // pred_region
        %1089 = vsyncadd [#allocation3], 16
      $region621: #{tpu_custom_call.1} parent=20 // pred_fallthru
        _
      %s1090 = sld [smem:[#allocation8 + $0x202]]
      %p1091 = scmp.gt.s32.totalorder %s1090, 0
      %s1092 = scalar_select %p1091, %s1090, 0
      %p1093 = scmp.lt.s32.totalorder %s1092, 511
      %s1094 = scalar_select %p1093, %s1092, 511
      %s1095 = scalar_lea.vmem %s1, %s1094
      %s1096 = scalar_lea.vmem [#allocation2], 20
      %p1098 = scmp.lt.u32.totalorder 1, 8
      %p1099 = pneg %p1098
      // Predicated region
      $region622: #{tpu_custom_call.1} parent=20 // pred_check
        _
      $region623: #{tpu_custom_call.1} parent=20 // pred_check_branch
        %1101 = sbr.rel (%p1098) target = $region625
      $region624: #{tpu_custom_call.1} parent=20 // pred_region
        %s1117 = sand.u32 1, 7
        %p1118 = scmp.eq.s32.totalorder %s1117, 0
        %p1119 = pneg %p1118
        // Predicated region
        $region637: #{tpu_custom_call.1} parent=624 // pred_check
          _
        $region638: #{tpu_custom_call.1} parent=624 // pred_check_branch
          %1121 = sbr.rel (%p1118) target = $region640
        $region639: #{tpu_custom_call.1} parent=624 // pred_region
          %s1122 = sand.u32 1, 7
          %s1123 = ssub.s32 1, %s1122
          %s1124 = scalar_lea.vmem %s1095, %s1123
          %s1125 = ssub.s32 1, %s1122
          %s1126 = scalar_lea.vmem %s1096, %s1125 [#allocation2]
          %s1127 = sshll.u32 1, %s1122
          %s1128 = ssub.s32 %s1127, 1
          loop: start=0, step=1, limit=1
          $region641: #{tpu_custom_call.1} parent=639 // loop_pre_header
            _
          $region642: #{tpu_custom_call.1} parent=639 // loop_header
            %s1130 = sphi 0, %s1134
            %p1131 = scmp.ge.s32.totalorder %s1130, 1
            %s1135 = sphi %s1124, %s1124
            %s1136 = sphi %s1126, %s1126
          $region643: #{tpu_custom_call.1} parent=639 // loop_header_branch
            %1133 = sbr.rel (%p1131) target = $region647
          $region644: #{tpu_custom_call.1} parent=639 // loop_body
            %v1137 = vld [vmem:[%s1135] sm:%s1128]
            %1138 = vst [vmem:[%s1136] sm:%s1128] %v1137
          $region645: #{tpu_custom_call.1} parent=639 // loop_footer
            %s1134 = sadd.s32 1, %s1130
          $region646: #{tpu_custom_call.1} parent=639 // loop_footer_branch
            %1129 = sbr.rel target = $region642
          $region647: #{tpu_custom_call.1} parent=639 // loop_exit
            _
        $region640: #{tpu_custom_call.1} parent=624 // pred_fallthru
          _
      $region625: #{tpu_custom_call.1} parent=20 // pred_fallthru
        _
      // Predicated region
      $region626: #{tpu_custom_call.1} parent=20 // pred_check
        %p1102 = pneg %p1098
      $region627: #{tpu_custom_call.1} parent=20 // pred_check_branch
        %1104 = sbr.rel (%p1102) target = $region629
      $region628: #{tpu_custom_call.1} parent=20 // pred_region
        %s1105 = sshll.u32 1, 1
        %s1106 = ssub.s32 %s1105, 1
        loop: start=0, step=1, limit=1
        $region630: #{tpu_custom_call.1} parent=628 // loop_pre_header
          _
        $region631: #{tpu_custom_call.1} parent=628 // loop_header
          %s1108 = sphi 0, %s1112
          %p1109 = scmp.ge.s32.totalorder %s1108, 1
          %s1113 = sphi %s1095, %s1095
          %s1114 = sphi %s1096, %s1096
        $region632: #{tpu_custom_call.1} parent=628 // loop_header_branch
          %1111 = sbr.rel (%p1109) target = $region636
        $region633: #{tpu_custom_call.1} parent=628 // loop_body
          %v1115 = vld [vmem:[%s1113] sm:%s1106]
          %1116 = vst [vmem:[%s1114] sm:%s1106] %v1115
        $region634: #{tpu_custom_call.1} parent=628 // loop_footer
          %s1112 = sadd.s32 1, %s1108
        $region635: #{tpu_custom_call.1} parent=628 // loop_footer_branch
          %1107 = sbr.rel target = $region631
        $region636: #{tpu_custom_call.1} parent=628 // loop_exit
          _
      $region629: #{tpu_custom_call.1} parent=20 // pred_fallthru
        _
      // Predicated region
      $region648: #{tpu_custom_call.1} parent=20 // pred_check
        _
      $region649: #{tpu_custom_call.1} parent=20 // pred_check_branch
        %1141 = sbr.rel (0) target = $region651
      $region650: #{tpu_custom_call.1} parent=20 // pred_region
        %1142 = vsyncadd [#allocation3], 16
      $region651: #{tpu_custom_call.1} parent=20 // pred_fallthru
        _
      %s1143 = sld [smem:[#allocation8 + $0x282]]
      %p1144 = scmp.gt.s32.totalorder %s1143, 0
      %s1145 = scalar_select %p1144, %s1143, 0
      %p1146 = scmp.lt.s32.totalorder %s1145, 511
      %s1147 = scalar_select %p1146, %s1145, 511
      %s1148 = scalar_lea.vmem %s1, %s1147
      %s1149 = scalar_lea.vmem [#allocation2], 21
      %p1151 = scmp.lt.u32.totalorder 1, 8
      %p1152 = pneg %p1151
      // Predicated region
      $region652: #{tpu_custom_call.1} parent=20 // pred_check
        _
      $region653: #{tpu_custom_call.1} parent=20 // pred_check_branch
        %1154 = sbr.rel (%p1151) target = $region655
      $region654: #{tpu_custom_call.1} parent=20 // pred_region
        %s1170 = sand.u32 1, 7
        %p1171 = scmp.eq.s32.totalorder %s1170, 0
        %p1172 = pneg %p1171
        // Predicated region
        $region667: #{tpu_custom_call.1} parent=654 // pred_check
          _
        $region668: #{tpu_custom_call.1} parent=654 // pred_check_branch
          %1174 = sbr.rel (%p1171) target = $region670
        $region669: #{tpu_custom_call.1} parent=654 // pred_region
          %s1175 = sand.u32 1, 7
          %s1176 = ssub.s32 1, %s1175
          %s1177 = scalar_lea.vmem %s1148, %s1176
          %s1178 = ssub.s32 1, %s1175
          %s1179 = scalar_lea.vmem %s1149, %s1178 [#allocation2]
          %s1180 = sshll.u32 1, %s1175
          %s1181 = ssub.s32 %s1180, 1
          loop: start=0, step=1, limit=1
          $region671: #{tpu_custom_call.1} parent=669 // loop_pre_header
            _
          $region672: #{tpu_custom_call.1} parent=669 // loop_header
            %s1183 = sphi 0, %s1187
            %p1184 = scmp.ge.s32.totalorder %s1183, 1
            %s1188 = sphi %s1177, %s1177
            %s1189 = sphi %s1179, %s1179
          $region673: #{tpu_custom_call.1} parent=669 // loop_header_branch
            %1186 = sbr.rel (%p1184) target = $region677
          $region674: #{tpu_custom_call.1} parent=669 // loop_body
            %v1190 = vld [vmem:[%s1188] sm:%s1181]
            %1191 = vst [vmem:[%s1189] sm:%s1181] %v1190
          $region675: #{tpu_custom_call.1} parent=669 // loop_footer
            %s1187 = sadd.s32 1, %s1183
          $region676: #{tpu_custom_call.1} parent=669 // loop_footer_branch
            %1182 = sbr.rel target = $region672
          $region677: #{tpu_custom_call.1} parent=669 // loop_exit
            _
        $region670: #{tpu_custom_call.1} parent=654 // pred_fallthru
          _
      $region655: #{tpu_custom_call.1} parent=20 // pred_fallthru
        _
      // Predicated region
      $region656: #{tpu_custom_call.1} parent=20 // pred_check
        %p1155 = pneg %p1151
      $region657: #{tpu_custom_call.1} parent=20 // pred_check_branch
        %1157 = sbr.rel (%p1155) target = $region659
      $region658: #{tpu_custom_call.1} parent=20 // pred_region
        %s1158 = sshll.u32 1, 1
        %s1159 = ssub.s32 %s1158, 1
        loop: start=0, step=1, limit=1
        $region660: #{tpu_custom_call.1} parent=658 // loop_pre_header
          _
        $region661: #{tpu_custom_call.1} parent=658 // loop_header
          %s1161 = sphi 0, %s1165
          %p1162 = scmp.ge.s32.totalorder %s1161, 1
          %s1166 = sphi %s1148, %s1148
          %s1167 = sphi %s1149, %s1149
        $region662: #{tpu_custom_call.1} parent=658 // loop_header_branch
          %1164 = sbr.rel (%p1162) target = $region666
        $region663: #{tpu_custom_call.1} parent=658 // loop_body
          %v1168 = vld [vmem:[%s1166] sm:%s1159]
          %1169 = vst [vmem:[%s1167] sm:%s1159] %v1168
        $region664: #{tpu_custom_call.1} parent=658 // loop_footer
          %s1165 = sadd.s32 1, %s1161
        $region665: #{tpu_custom_call.1} parent=658 // loop_footer_branch
          %1160 = sbr.rel target = $region661
        $region666: #{tpu_custom_call.1} parent=658 // loop_exit
          _
      $region659: #{tpu_custom_call.1} parent=20 // pred_fallthru
        _
      // Predicated region
      $region678: #{tpu_custom_call.1} parent=20 // pred_check
        _
      $region679: #{tpu_custom_call.1} parent=20 // pred_check_branch
        %1194 = sbr.rel (0) target = $region681
      $region680: #{tpu_custom_call.1} parent=20 // pred_region
        %1195 = vsyncadd [#allocation3], 16
      $region681: #{tpu_custom_call.1} parent=20 // pred_fallthru
        _
      %s1196 = sld [smem:[#allocation8 + $0x302]]
      %p1197 = scmp.gt.s32.totalorder %s1196, 0
      %s1198 = scalar_select %p1197, %s1196, 0
      %p1199 = scmp.lt.s32.totalorder %s1198, 511
      %s1200 = scalar_select %p1199, %s1198, 511
      %s1201 = scalar_lea.vmem %s1, %s1200
      %s1202 = scalar_lea.vmem [#allocation2], 22
      %p1204 = scmp.lt.u32.totalorder 1, 8
      %p1205 = pneg %p1204
      // Predicated region
      $region682: #{tpu_custom_call.1} parent=20 // pred_check
        _
      $region683: #{tpu_custom_call.1} parent=20 // pred_check_branch
        %1207 = sbr.rel (%p1204) target = $region685
      $region684: #{tpu_custom_call.1} parent=20 // pred_region
        %s1223 = sand.u32 1, 7
        %p1224 = scmp.eq.s32.totalorder %s1223, 0
        %p1225 = pneg %p1224
        // Predicated region
        $region697: #{tpu_custom_call.1} parent=684 // pred_check
          _
        $region698: #{tpu_custom_call.1} parent=684 // pred_check_branch
          %1227 = sbr.rel (%p1224) target = $region700
        $region699: #{tpu_custom_call.1} parent=684 // pred_region
          %s1228 = sand.u32 1, 7
          %s1229 = ssub.s32 1, %s1228
          %s1230 = scalar_lea.vmem %s1201, %s1229
          %s1231 = ssub.s32 1, %s1228
          %s1232 = scalar_lea.vmem %s1202, %s1231 [#allocation2]
          %s1233 = sshll.u32 1, %s1228
          %s1234 = ssub.s32 %s1233, 1
          loop: start=0, step=1, limit=1
          $region701: #{tpu_custom_call.1} parent=699 // loop_pre_header
            _
          $region702: #{tpu_custom_call.1} parent=699 // loop_header
            %s1236 = sphi 0, %s1240
            %p1237 = scmp.ge.s32.totalorder %s1236, 1
            %s1241 = sphi %s1230, %s1230
            %s1242 = sphi %s1232, %s1232
          $region703: #{tpu_custom_call.1} parent=699 // loop_header_branch
            %1239 = sbr.rel (%p1237) target = $region707
          $region704: #{tpu_custom_call.1} parent=699 // loop_body
            %v1243 = vld [vmem:[%s1241] sm:%s1234]
            %1244 = vst [vmem:[%s1242] sm:%s1234] %v1243
          $region705: #{tpu_custom_call.1} parent=699 // loop_footer
            %s1240 = sadd.s32 1, %s1236
          $region706: #{tpu_custom_call.1} parent=699 // loop_footer_branch
            %1235 = sbr.rel target = $region702
          $region707: #{tpu_custom_call.1} parent=699 // loop_exit
            _
        $region700: #{tpu_custom_call.1} parent=684 // pred_fallthru
          _
      $region685: #{tpu_custom_call.1} parent=20 // pred_fallthru
        _
      // Predicated region
      $region686: #{tpu_custom_call.1} parent=20 // pred_check
        %p1208 = pneg %p1204
      $region687: #{tpu_custom_call.1} parent=20 // pred_check_branch
        %1210 = sbr.rel (%p1208) target = $region689
      $region688: #{tpu_custom_call.1} parent=20 // pred_region
        %s1211 = sshll.u32 1, 1
        %s1212 = ssub.s32 %s1211, 1
        loop: start=0, step=1, limit=1
        $region690: #{tpu_custom_call.1} parent=688 // loop_pre_header
          _
        $region691: #{tpu_custom_call.1} parent=688 // loop_header
          %s1214 = sphi 0, %s1218
          %p1215 = scmp.ge.s32.totalorder %s1214, 1
          %s1219 = sphi %s1201, %s1201
          %s1220 = sphi %s1202, %s1202
        $region692: #{tpu_custom_call.1} parent=688 // loop_header_branch
          %1217 = sbr.rel (%p1215) target = $region696
        $region693: #{tpu_custom_call.1} parent=688 // loop_body
          %v1221 = vld [vmem:[%s1219] sm:%s1212]
          %1222 = vst [vmem:[%s1220] sm:%s1212] %v1221
        $region694: #{tpu_custom_call.1} parent=688 // loop_footer
          %s1218 = sadd.s32 1, %s1214
        $region695: #{tpu_custom_call.1} parent=688 // loop_footer_branch
          %1213 = sbr.rel target = $region691
        $region696: #{tpu_custom_call.1} parent=688 // loop_exit
          _
      $region689: #{tpu_custom_call.1} parent=20 // pred_fallthru
        _
      // Predicated region
      $region708: #{tpu_custom_call.1} parent=20 // pred_check
        _
      $region709: #{tpu_custom_call.1} parent=20 // pred_check_branch
        %1247 = sbr.rel (0) target = $region711
      $region710: #{tpu_custom_call.1} parent=20 // pred_region
        %1248 = vsyncadd [#allocation3], 16
      $region711: #{tpu_custom_call.1} parent=20 // pred_fallthru
        _
      %s1249 = sld [smem:[#allocation8 + $0x382]]
      %p1250 = scmp.gt.s32.totalorder %s1249, 0
      %s1251 = scalar_select %p1250, %s1249, 0
      %p1252 = scmp.lt.s32.totalorder %s1251, 511
      %s1253 = scalar_select %p1252, %s1251, 511
      %s1254 = scalar_lea.vmem %s1, %s1253
      %s1255 = scalar_lea.vmem [#allocation2], 23
      %p1257 = scmp.lt.u32.totalorder 1, 8
      %p1258 = pneg %p1257
      // Predicated region
      $region712: #{tpu_custom_call.1} parent=20 // pred_check
        _
      $region713: #{tpu_custom_call.1} parent=20 // pred_check_branch
        %1260 = sbr.rel (%p1257) target = $region715
      $region714: #{tpu_custom_call.1} parent=20 // pred_region
        %s1276 = sand.u32 1, 7
        %p1277 = scmp.eq.s32.totalorder %s1276, 0
        %p1278 = pneg %p1277
        // Predicated region
        $region727: #{tpu_custom_call.1} parent=714 // pred_check
          _
        $region728: #{tpu_custom_call.1} parent=714 // pred_check_branch
          %1280 = sbr.rel (%p1277) target = $region730
        $region729: #{tpu_custom_call.1} parent=714 // pred_region
          %s1281 = sand.u32 1, 7
          %s1282 = ssub.s32 1, %s1281
          %s1283 = scalar_lea.vmem %s1254, %s1282
          %s1284 = ssub.s32 1, %s1281
          %s1285 = scalar_lea.vmem %s1255, %s1284 [#allocation2]
          %s1286 = sshll.u32 1, %s1281
          %s1287 = ssub.s32 %s1286, 1
          loop: start=0, step=1, limit=1
          $region731: #{tpu_custom_call.1} parent=729 // loop_pre_header
            _
          $region732: #{tpu_custom_call.1} parent=729 // loop_header
            %s1289 = sphi 0, %s1293
            %p1290 = scmp.ge.s32.totalorder %s1289, 1
            %s1294 = sphi %s1283, %s1283
            %s1295 = sphi %s1285, %s1285
          $region733: #{tpu_custom_call.1} parent=729 // loop_header_branch
            %1292 = sbr.rel (%p1290) target = $region737
          $region734: #{tpu_custom_call.1} parent=729 // loop_body
            %v1296 = vld [vmem:[%s1294] sm:%s1287]
            %1297 = vst [vmem:[%s1295] sm:%s1287] %v1296
          $region735: #{tpu_custom_call.1} parent=729 // loop_footer
            %s1293 = sadd.s32 1, %s1289
          $region736: #{tpu_custom_call.1} parent=729 // loop_footer_branch
            %1288 = sbr.rel target = $region732
          $region737: #{tpu_custom_call.1} parent=729 // loop_exit
            _
        $region730: #{tpu_custom_call.1} parent=714 // pred_fallthru
          _
      $region715: #{tpu_custom_call.1} parent=20 // pred_fallthru
        _
      // Predicated region
      $region716: #{tpu_custom_call.1} parent=20 // pred_check
        %p1261 = pneg %p1257
      $region717: #{tpu_custom_call.1} parent=20 // pred_check_branch
        %1263 = sbr.rel (%p1261) target = $region719
      $region718: #{tpu_custom_call.1} parent=20 // pred_region
        %s1264 = sshll.u32 1, 1
        %s1265 = ssub.s32 %s1264, 1
        loop: start=0, step=1, limit=1
        $region720: #{tpu_custom_call.1} parent=718 // loop_pre_header
          _
        $region721: #{tpu_custom_call.1} parent=718 // loop_header
          %s1267 = sphi 0, %s1271
          %p1268 = scmp.ge.s32.totalorder %s1267, 1
          %s1272 = sphi %s1254, %s1254
          %s1273 = sphi %s1255, %s1255
        $region722: #{tpu_custom_call.1} parent=718 // loop_header_branch
          %1270 = sbr.rel (%p1268) target = $region726
        $region723: #{tpu_custom_call.1} parent=718 // loop_body
          %v1274 = vld [vmem:[%s1272] sm:%s1265]
          %1275 = vst [vmem:[%s1273] sm:%s1265] %v1274
        $region724: #{tpu_custom_call.1} parent=718 // loop_footer
          %s1271 = sadd.s32 1, %s1267
        $region725: #{tpu_custom_call.1} parent=718 // loop_footer_branch
          %1266 = sbr.rel target = $region721
        $region726: #{tpu_custom_call.1} parent=718 // loop_exit
          _
      $region719: #{tpu_custom_call.1} parent=20 // pred_fallthru
        _
      // Predicated region
      $region738: #{tpu_custom_call.1} parent=20 // pred_check
        _
      $region739: #{tpu_custom_call.1} parent=20 // pred_check_branch
        %1300 = sbr.rel (0) target = $region741
      $region740: #{tpu_custom_call.1} parent=20 // pred_region
        %1301 = vsyncadd [#allocation3], 16
      $region741: #{tpu_custom_call.1} parent=20 // pred_fallthru
        _
      %s1302 = sld [smem:[#allocation8 + $0x3]]
      %p1303 = scmp.gt.s32.totalorder %s1302, 0
      %s1304 = scalar_select %p1303, %s1302, 0
      %p1305 = scmp.lt.s32.totalorder %s1304, 511
      %s1306 = scalar_select %p1305, %s1304, 511
      %s1307 = scalar_lea.vmem %s1, %s1306
      %s1308 = scalar_lea.vmem [#allocation2], 24
      %p1310 = scmp.lt.u32.totalorder 1, 8
      %p1311 = pneg %p1310
      // Predicated region
      $region742: #{tpu_custom_call.1} parent=20 // pred_check
        _
      $region743: #{tpu_custom_call.1} parent=20 // pred_check_branch
        %1313 = sbr.rel (%p1310) target = $region745
      $region744: #{tpu_custom_call.1} parent=20 // pred_region
        %s1329 = sand.u32 1, 7
        %p1330 = scmp.eq.s32.totalorder %s1329, 0
        %p1331 = pneg %p1330
        // Predicated region
        $region757: #{tpu_custom_call.1} parent=744 // pred_check
          _
        $region758: #{tpu_custom_call.1} parent=744 // pred_check_branch
          %1333 = sbr.rel (%p1330) target = $region760
        $region759: #{tpu_custom_call.1} parent=744 // pred_region
          %s1334 = sand.u32 1, 7
          %s1335 = ssub.s32 1, %s1334
          %s1336 = scalar_lea.vmem %s1307, %s1335
          %s1337 = ssub.s32 1, %s1334
          %s1338 = scalar_lea.vmem %s1308, %s1337 [#allocation2]
          %s1339 = sshll.u32 1, %s1334
          %s1340 = ssub.s32 %s1339, 1
          loop: start=0, step=1, limit=1
          $region761: #{tpu_custom_call.1} parent=759 // loop_pre_header
            _
          $region762: #{tpu_custom_call.1} parent=759 // loop_header
            %s1342 = sphi 0, %s1346
            %p1343 = scmp.ge.s32.totalorder %s1342, 1
            %s1347 = sphi %s1336, %s1336
            %s1348 = sphi %s1338, %s1338
          $region763: #{tpu_custom_call.1} parent=759 // loop_header_branch
            %1345 = sbr.rel (%p1343) target = $region767
          $region764: #{tpu_custom_call.1} parent=759 // loop_body
            %v1349 = vld [vmem:[%s1347] sm:%s1340]
            %1350 = vst [vmem:[%s1348] sm:%s1340] %v1349
          $region765: #{tpu_custom_call.1} parent=759 // loop_footer
            %s1346 = sadd.s32 1, %s1342
          $region766: #{tpu_custom_call.1} parent=759 // loop_footer_branch
            %1341 = sbr.rel target = $region762
          $region767: #{tpu_custom_call.1} parent=759 // loop_exit
            _
        $region760: #{tpu_custom_call.1} parent=744 // pred_fallthru
          _
      $region745: #{tpu_custom_call.1} parent=20 // pred_fallthru
        _
      // Predicated region
      $region746: #{tpu_custom_call.1} parent=20 // pred_check
        %p1314 = pneg %p1310
      $region747: #{tpu_custom_call.1} parent=20 // pred_check_branch
        %1316 = sbr.rel (%p1314) target = $region749
      $region748: #{tpu_custom_call.1} parent=20 // pred_region
        %s1317 = sshll.u32 1, 1
        %s1318 = ssub.s32 %s1317, 1
        loop: start=0, step=1, limit=1
        $region750: #{tpu_custom_call.1} parent=748 // loop_pre_header
          _
        $region751: #{tpu_custom_call.1} parent=748 // loop_header
          %s1320 = sphi 0, %s1324
          %p1321 = scmp.ge.s32.totalorder %s1320, 1
          %s1325 = sphi %s1307, %s1307
          %s1326 = sphi %s1308, %s1308
        $region752: #{tpu_custom_call.1} parent=748 // loop_header_branch
          %1323 = sbr.rel (%p1321) target = $region756
        $region753: #{tpu_custom_call.1} parent=748 // loop_body
          %v1327 = vld [vmem:[%s1325] sm:%s1318]
          %1328 = vst [vmem:[%s1326] sm:%s1318] %v1327
        $region754: #{tpu_custom_call.1} parent=748 // loop_footer
          %s1324 = sadd.s32 1, %s1320
        $region755: #{tpu_custom_call.1} parent=748 // loop_footer_branch
          %1319 = sbr.rel target = $region751
        $region756: #{tpu_custom_call.1} parent=748 // loop_exit
          _
      $region749: #{tpu_custom_call.1} parent=20 // pred_fallthru
        _
      // Predicated region
      $region768: #{tpu_custom_call.1} parent=20 // pred_check
        _
      $region769: #{tpu_custom_call.1} parent=20 // pred_check_branch
        %1353 = sbr.rel (0) target = $region771
      $region770: #{tpu_custom_call.1} parent=20 // pred_region
        %1354 = vsyncadd [#allocation3], 16
      $region771: #{tpu_custom_call.1} parent=20 // pred_fallthru
        _
      %s1355 = sld [smem:[#allocation8 + $0x83]]
      %p1356 = scmp.gt.s32.totalorder %s1355, 0
      %s1357 = scalar_select %p1356, %s1355, 0
      %p1358 = scmp.lt.s32.totalorder %s1357, 511
      %s1359 = scalar_select %p1358, %s1357, 511
      %s1360 = scalar_lea.vmem %s1, %s1359
      %s1361 = scalar_lea.vmem [#allocation2], 25
      %p1363 = scmp.lt.u32.totalorder 1, 8
      %p1364 = pneg %p1363
      // Predicated region
      $region772: #{tpu_custom_call.1} parent=20 // pred_check
        _
      $region773: #{tpu_custom_call.1} parent=20 // pred_check_branch
        %1366 = sbr.rel (%p1363) target = $region775
      $region774: #{tpu_custom_call.1} parent=20 // pred_region
        %s1382 = sand.u32 1, 7
        %p1383 = scmp.eq.s32.totalorder %s1382, 0
        %p1384 = pneg %p1383
        // Predicated region
        $region787: #{tpu_custom_call.1} parent=774 // pred_check
          _
        $region788: #{tpu_custom_call.1} parent=774 // pred_check_branch
          %1386 = sbr.rel (%p1383) target = $region790
        $region789: #{tpu_custom_call.1} parent=774 // pred_region
          %s1387 = sand.u32 1, 7
          %s1388 = ssub.s32 1, %s1387
          %s1389 = scalar_lea.vmem %s1360, %s1388
          %s1390 = ssub.s32 1, %s1387
          %s1391 = scalar_lea.vmem %s1361, %s1390 [#allocation2]
          %s1392 = sshll.u32 1, %s1387
          %s1393 = ssub.s32 %s1392, 1
          loop: start=0, step=1, limit=1
          $region791: #{tpu_custom_call.1} parent=789 // loop_pre_header
            _
          $region792: #{tpu_custom_call.1} parent=789 // loop_header
            %s1395 = sphi 0, %s1399
            %p1396 = scmp.ge.s32.totalorder %s1395, 1
            %s1400 = sphi %s1389, %s1389
            %s1401 = sphi %s1391, %s1391
          $region793: #{tpu_custom_call.1} parent=789 // loop_header_branch
            %1398 = sbr.rel (%p1396) target = $region797
          $region794: #{tpu_custom_call.1} parent=789 // loop_body
            %v1402 = vld [vmem:[%s1400] sm:%s1393]
            %1403 = vst [vmem:[%s1401] sm:%s1393] %v1402
          $region795: #{tpu_custom_call.1} parent=789 // loop_footer
            %s1399 = sadd.s32 1, %s1395
          $region796: #{tpu_custom_call.1} parent=789 // loop_footer_branch
            %1394 = sbr.rel target = $region792
          $region797: #{tpu_custom_call.1} parent=789 // loop_exit
            _
        $region790: #{tpu_custom_call.1} parent=774 // pred_fallthru
          _
      $region775: #{tpu_custom_call.1} parent=20 // pred_fallthru
        _
      // Predicated region
      $region776: #{tpu_custom_call.1} parent=20 // pred_check
        %p1367 = pneg %p1363
      $region777: #{tpu_custom_call.1} parent=20 // pred_check_branch
        %1369 = sbr.rel (%p1367) target = $region779
      $region778: #{tpu_custom_call.1} parent=20 // pred_region
        %s1370 = sshll.u32 1, 1
        %s1371 = ssub.s32 %s1370, 1
        loop: start=0, step=1, limit=1
        $region780: #{tpu_custom_call.1} parent=778 // loop_pre_header
          _
        $region781: #{tpu_custom_call.1} parent=778 // loop_header
          %s1373 = sphi 0, %s1377
          %p1374 = scmp.ge.s32.totalorder %s1373, 1
          %s1378 = sphi %s1360, %s1360
          %s1379 = sphi %s1361, %s1361
        $region782: #{tpu_custom_call.1} parent=778 // loop_header_branch
          %1376 = sbr.rel (%p1374) target = $region786
        $region783: #{tpu_custom_call.1} parent=778 // loop_body
          %v1380 = vld [vmem:[%s1378] sm:%s1371]
          %1381 = vst [vmem:[%s1379] sm:%s1371] %v1380
        $region784: #{tpu_custom_call.1} parent=778 // loop_footer
          %s1377 = sadd.s32 1, %s1373
        $region785: #{tpu_custom_call.1} parent=778 // loop_footer_branch
          %1372 = sbr.rel target = $region781
        $region786: #{tpu_custom_call.1} parent=778 // loop_exit
          _
      $region779: #{tpu_custom_call.1} parent=20 // pred_fallthru
        _
      // Predicated region
      $region798: #{tpu_custom_call.1} parent=20 // pred_check
        _
      $region799: #{tpu_custom_call.1} parent=20 // pred_check_branch
        %1406 = sbr.rel (0) target = $region801
      $region800: #{tpu_custom_call.1} parent=20 // pred_region
        %1407 = vsyncadd [#allocation3], 16
      $region801: #{tpu_custom_call.1} parent=20 // pred_fallthru
        _
      %s1408 = sld [smem:[#allocation8 + $0x103]]
      %p1409 = scmp.gt.s32.totalorder %s1408, 0
      %s1410 = scalar_select %p1409, %s1408, 0
      %p1411 = scmp.lt.s32.totalorder %s1410, 511
      %s1412 = scalar_select %p1411, %s1410, 511
      %s1413 = scalar_lea.vmem %s1, %s1412
      %s1414 = scalar_lea.vmem [#allocation2], 26
      %p1416 = scmp.lt.u32.totalorder 1, 8
      %p1417 = pneg %p1416
      // Predicated region
      $region802: #{tpu_custom_call.1} parent=20 // pred_check
        _
      $region803: #{tpu_custom_call.1} parent=20 // pred_check_branch
        %1419 = sbr.rel (%p1416) target = $region805
      $region804: #{tpu_custom_call.1} parent=20 // pred_region
        %s1435 = sand.u32 1, 7
        %p1436 = scmp.eq.s32.totalorder %s1435, 0
        %p1437 = pneg %p1436
        // Predicated region
        $region817: #{tpu_custom_call.1} parent=804 // pred_check
          _
        $region818: #{tpu_custom_call.1} parent=804 // pred_check_branch
          %1439 = sbr.rel (%p1436) target = $region820
        $region819: #{tpu_custom_call.1} parent=804 // pred_region
          %s1440 = sand.u32 1, 7
          %s1441 = ssub.s32 1, %s1440
          %s1442 = scalar_lea.vmem %s1413, %s1441
          %s1443 = ssub.s32 1, %s1440
          %s1444 = scalar_lea.vmem %s1414, %s1443 [#allocation2]
          %s1445 = sshll.u32 1, %s1440
          %s1446 = ssub.s32 %s1445, 1
          loop: start=0, step=1, limit=1
          $region821: #{tpu_custom_call.1} parent=819 // loop_pre_header
            _
          $region822: #{tpu_custom_call.1} parent=819 // loop_header
            %s1448 = sphi 0, %s1452
            %p1449 = scmp.ge.s32.totalorder %s1448, 1
            %s1453 = sphi %s1442, %s1442
            %s1454 = sphi %s1444, %s1444
          $region823: #{tpu_custom_call.1} parent=819 // loop_header_branch
            %1451 = sbr.rel (%p1449) target = $region827
          $region824: #{tpu_custom_call.1} parent=819 // loop_body
            %v1455 = vld [vmem:[%s1453] sm:%s1446]
            %1456 = vst [vmem:[%s1454] sm:%s1446] %v1455
          $region825: #{tpu_custom_call.1} parent=819 // loop_footer
            %s1452 = sadd.s32 1, %s1448
          $region826: #{tpu_custom_call.1} parent=819 // loop_footer_branch
            %1447 = sbr.rel target = $region822
          $region827: #{tpu_custom_call.1} parent=819 // loop_exit
            _
        $region820: #{tpu_custom_call.1} parent=804 // pred_fallthru
          _
      $region805: #{tpu_custom_call.1} parent=20 // pred_fallthru
        _
      // Predicated region
      $region806: #{tpu_custom_call.1} parent=20 // pred_check
        %p1420 = pneg %p1416
      $region807: #{tpu_custom_call.1} parent=20 // pred_check_branch
        %1422 = sbr.rel (%p1420) target = $region809
      $region808: #{tpu_custom_call.1} parent=20 // pred_region
        %s1423 = sshll.u32 1, 1
        %s1424 = ssub.s32 %s1423, 1
        loop: start=0, step=1, limit=1
        $region810: #{tpu_custom_call.1} parent=808 // loop_pre_header
          _
        $region811: #{tpu_custom_call.1} parent=808 // loop_header
          %s1426 = sphi 0, %s1430
          %p1427 = scmp.ge.s32.totalorder %s1426, 1
          %s1431 = sphi %s1413, %s1413
          %s1432 = sphi %s1414, %s1414
        $region812: #{tpu_custom_call.1} parent=808 // loop_header_branch
          %1429 = sbr.rel (%p1427) target = $region816
        $region813: #{tpu_custom_call.1} parent=808 // loop_body
          %v1433 = vld [vmem:[%s1431] sm:%s1424]
          %1434 = vst [vmem:[%s1432] sm:%s1424] %v1433
        $region814: #{tpu_custom_call.1} parent=808 // loop_footer
          %s1430 = sadd.s32 1, %s1426
        $region815: #{tpu_custom_call.1} parent=808 // loop_footer_branch
          %1425 = sbr.rel target = $region811
        $region816: #{tpu_custom_call.1} parent=808 // loop_exit
          _
      $region809: #{tpu_custom_call.1} parent=20 // pred_fallthru
        _
      // Predicated region
      $region828: #{tpu_custom_call.1} parent=20 // pred_check
        _
      $region829: #{tpu_custom_call.1} parent=20 // pred_check_branch
        %1459 = sbr.rel (0) target = $region831
      $region830: #{tpu_custom_call.1} parent=20 // pred_region
        %1460 = vsyncadd [#allocation3], 16
      $region831: #{tpu_custom_call.1} parent=20 // pred_fallthru
        _
      %s1461 = sld [smem:[#allocation8 + $0x183]]
      %p1462 = scmp.gt.s32.totalorder %s1461, 0
      %s1463 = scalar_select %p1462, %s1461, 0
      %p1464 = scmp.lt.s32.totalorder %s1463, 511
      %s1465 = scalar_select %p1464, %s1463, 511
      %s1466 = scalar_lea.vmem %s1, %s1465
      %s1467 = scalar_lea.vmem [#allocation2], 27
      %p1469 = scmp.lt.u32.totalorder 1, 8
      %p1470 = pneg %p1469
      // Predicated region
      $region832: #{tpu_custom_call.1} parent=20 // pred_check
        _
      $region833: #{tpu_custom_call.1} parent=20 // pred_check_branch
        %1472 = sbr.rel (%p1469) target = $region835
      $region834: #{tpu_custom_call.1} parent=20 // pred_region
        %s1488 = sand.u32 1, 7
        %p1489 = scmp.eq.s32.totalorder %s1488, 0
        %p1490 = pneg %p1489
        // Predicated region
        $region847: #{tpu_custom_call.1} parent=834 // pred_check
          _
        $region848: #{tpu_custom_call.1} parent=834 // pred_check_branch
          %1492 = sbr.rel (%p1489) target = $region850
        $region849: #{tpu_custom_call.1} parent=834 // pred_region
          %s1493 = sand.u32 1, 7
          %s1494 = ssub.s32 1, %s1493
          %s1495 = scalar_lea.vmem %s1466, %s1494
          %s1496 = ssub.s32 1, %s1493
          %s1497 = scalar_lea.vmem %s1467, %s1496 [#allocation2]
          %s1498 = sshll.u32 1, %s1493
          %s1499 = ssub.s32 %s1498, 1
          loop: start=0, step=1, limit=1
          $region851: #{tpu_custom_call.1} parent=849 // loop_pre_header
            _
          $region852: #{tpu_custom_call.1} parent=849 // loop_header
            %s1501 = sphi 0, %s1505
            %p1502 = scmp.ge.s32.totalorder %s1501, 1
            %s1506 = sphi %s1495, %s1495
            %s1507 = sphi %s1497, %s1497
          $region853: #{tpu_custom_call.1} parent=849 // loop_header_branch
            %1504 = sbr.rel (%p1502) target = $region857
          $region854: #{tpu_custom_call.1} parent=849 // loop_body
            %v1508 = vld [vmem:[%s1506] sm:%s1499]
            %1509 = vst [vmem:[%s1507] sm:%s1499] %v1508
          $region855: #{tpu_custom_call.1} parent=849 // loop_footer
            %s1505 = sadd.s32 1, %s1501
          $region856: #{tpu_custom_call.1} parent=849 // loop_footer_branch
            %1500 = sbr.rel target = $region852
          $region857: #{tpu_custom_call.1} parent=849 // loop_exit
            _
        $region850: #{tpu_custom_call.1} parent=834 // pred_fallthru
          _
      $region835: #{tpu_custom_call.1} parent=20 // pred_fallthru
        _
      // Predicated region
      $region836: #{tpu_custom_call.1} parent=20 // pred_check
        %p1473 = pneg %p1469
      $region837: #{tpu_custom_call.1} parent=20 // pred_check_branch
        %1475 = sbr.rel (%p1473) target = $region839
      $region838: #{tpu_custom_call.1} parent=20 // pred_region
        %s1476 = sshll.u32 1, 1
        %s1477 = ssub.s32 %s1476, 1
        loop: start=0, step=1, limit=1
        $region840: #{tpu_custom_call.1} parent=838 // loop_pre_header
          _
        $region841: #{tpu_custom_call.1} parent=838 // loop_header
          %s1479 = sphi 0, %s1483
          %p1480 = scmp.ge.s32.totalorder %s1479, 1
          %s1484 = sphi %s1466, %s1466
          %s1485 = sphi %s1467, %s1467
        $region842: #{tpu_custom_call.1} parent=838 // loop_header_branch
          %1482 = sbr.rel (%p1480) target = $region846
        $region843: #{tpu_custom_call.1} parent=838 // loop_body
          %v1486 = vld [vmem:[%s1484] sm:%s1477]
          %1487 = vst [vmem:[%s1485] sm:%s1477] %v1486
        $region844: #{tpu_custom_call.1} parent=838 // loop_footer
          %s1483 = sadd.s32 1, %s1479
        $region845: #{tpu_custom_call.1} parent=838 // loop_footer_branch
          %1478 = sbr.rel target = $region841
        $region846: #{tpu_custom_call.1} parent=838 // loop_exit
          _
      $region839: #{tpu_custom_call.1} parent=20 // pred_fallthru
        _
      // Predicated region
      $region858: #{tpu_custom_call.1} parent=20 // pred_check
        _
      $region859: #{tpu_custom_call.1} parent=20 // pred_check_branch
        %1512 = sbr.rel (0) target = $region861
      $region860: #{tpu_custom_call.1} parent=20 // pred_region
        %1513 = vsyncadd [#allocation3], 16
      $region861: #{tpu_custom_call.1} parent=20 // pred_fallthru
        _
      %s1514 = sld [smem:[#allocation8 + $0x203]]
      %p1515 = scmp.gt.s32.totalorder %s1514, 0
      %s1516 = scalar_select %p1515, %s1514, 0
      %p1517 = scmp.lt.s32.totalorder %s1516, 511
      %s1518 = scalar_select %p1517, %s1516, 511
      %s1519 = scalar_lea.vmem %s1, %s1518
      %s1520 = scalar_lea.vmem [#allocation2], 28
      %p1522 = scmp.lt.u32.totalorder 1, 8
      %p1523 = pneg %p1522
      // Predicated region
      $region862: #{tpu_custom_call.1} parent=20 // pred_check
        _
      $region863: #{tpu_custom_call.1} parent=20 // pred_check_branch
        %1525 = sbr.rel (%p1522) target = $region865
      $region864: #{tpu_custom_call.1} parent=20 // pred_region
        %s1541 = sand.u32 1, 7
        %p1542 = scmp.eq.s32.totalorder %s1541, 0
        %p1543 = pneg %p1542
        // Predicated region
        $region877: #{tpu_custom_call.1} parent=864 // pred_check
          _
        $region878: #{tpu_custom_call.1} parent=864 // pred_check_branch
          %1545 = sbr.rel (%p1542) target = $region880
        $region879: #{tpu_custom_call.1} parent=864 // pred_region
          %s1546 = sand.u32 1, 7
          %s1547 = ssub.s32 1, %s1546
          %s1548 = scalar_lea.vmem %s1519, %s1547
          %s1549 = ssub.s32 1, %s1546
          %s1550 = scalar_lea.vmem %s1520, %s1549 [#allocation2]
          %s1551 = sshll.u32 1, %s1546
          %s1552 = ssub.s32 %s1551, 1
          loop: start=0, step=1, limit=1
          $region881: #{tpu_custom_call.1} parent=879 // loop_pre_header
            _
          $region882: #{tpu_custom_call.1} parent=879 // loop_header
            %s1554 = sphi 0, %s1558
            %p1555 = scmp.ge.s32.totalorder %s1554, 1
            %s1559 = sphi %s1548, %s1548
            %s1560 = sphi %s1550, %s1550
          $region883: #{tpu_custom_call.1} parent=879 // loop_header_branch
            %1557 = sbr.rel (%p1555) target = $region887
          $region884: #{tpu_custom_call.1} parent=879 // loop_body
            %v1561 = vld [vmem:[%s1559] sm:%s1552]
            %1562 = vst [vmem:[%s1560] sm:%s1552] %v1561
          $region885: #{tpu_custom_call.1} parent=879 // loop_footer
            %s1558 = sadd.s32 1, %s1554
          $region886: #{tpu_custom_call.1} parent=879 // loop_footer_branch
            %1553 = sbr.rel target = $region882
          $region887: #{tpu_custom_call.1} parent=879 // loop_exit
            _
        $region880: #{tpu_custom_call.1} parent=864 // pred_fallthru
          _
      $region865: #{tpu_custom_call.1} parent=20 // pred_fallthru
        _
      // Predicated region
      $region866: #{tpu_custom_call.1} parent=20 // pred_check
        %p1526 = pneg %p1522
      $region867: #{tpu_custom_call.1} parent=20 // pred_check_branch
        %1528 = sbr.rel (%p1526) target = $region869
      $region868: #{tpu_custom_call.1} parent=20 // pred_region
        %s1529 = sshll.u32 1, 1
        %s1530 = ssub.s32 %s1529, 1
        loop: start=0, step=1, limit=1
        $region870: #{tpu_custom_call.1} parent=868 // loop_pre_header
          _
        $region871: #{tpu_custom_call.1} parent=868 // loop_header
          %s1532 = sphi 0, %s1536
          %p1533 = scmp.ge.s32.totalorder %s1532, 1
          %s1537 = sphi %s1519, %s1519
          %s1538 = sphi %s1520, %s1520
        $region872: #{tpu_custom_call.1} parent=868 // loop_header_branch
          %1535 = sbr.rel (%p1533) target = $region876
        $region873: #{tpu_custom_call.1} parent=868 // loop_body
          %v1539 = vld [vmem:[%s1537] sm:%s1530]
          %1540 = vst [vmem:[%s1538] sm:%s1530] %v1539
        $region874: #{tpu_custom_call.1} parent=868 // loop_footer
          %s1536 = sadd.s32 1, %s1532
        $region875: #{tpu_custom_call.1} parent=868 // loop_footer_branch
          %1531 = sbr.rel target = $region871
        $region876: #{tpu_custom_call.1} parent=868 // loop_exit
          _
      $region869: #{tpu_custom_call.1} parent=20 // pred_fallthru
        _
      // Predicated region
      $region888: #{tpu_custom_call.1} parent=20 // pred_check
        _
      $region889: #{tpu_custom_call.1} parent=20 // pred_check_branch
        %1565 = sbr.rel (0) target = $region891
      $region890: #{tpu_custom_call.1} parent=20 // pred_region
        %1566 = vsyncadd [#allocation3], 16
      $region891: #{tpu_custom_call.1} parent=20 // pred_fallthru
        _
      %s1567 = sld [smem:[#allocation8 + $0x283]]
      %p1568 = scmp.gt.s32.totalorder %s1567, 0
      %s1569 = scalar_select %p1568, %s1567, 0
      %p1570 = scmp.lt.s32.totalorder %s1569, 511
      %s1571 = scalar_select %p1570, %s1569, 511
      %s1572 = scalar_lea.vmem %s1, %s1571
      %s1573 = scalar_lea.vmem [#allocation2], 29
      %p1575 = scmp.lt.u32.totalorder 1, 8
      %p1576 = pneg %p1575
      // Predicated region
      $region892: #{tpu_custom_call.1} parent=20 // pred_check
        _
      $region893: #{tpu_custom_call.1} parent=20 // pred_check_branch
        %1578 = sbr.rel (%p1575) target = $region895
      $region894: #{tpu_custom_call.1} parent=20 // pred_region
        %s1594 = sand.u32 1, 7
        %p1595 = scmp.eq.s32.totalorder %s1594, 0
        %p1596 = pneg %p1595
        // Predicated region
        $region907: #{tpu_custom_call.1} parent=894 // pred_check
          _
        $region908: #{tpu_custom_call.1} parent=894 // pred_check_branch
          %1598 = sbr.rel (%p1595) target = $region910
        $region909: #{tpu_custom_call.1} parent=894 // pred_region
          %s1599 = sand.u32 1, 7
          %s1600 = ssub.s32 1, %s1599
          %s1601 = scalar_lea.vmem %s1572, %s1600
          %s1602 = ssub.s32 1, %s1599
          %s1603 = scalar_lea.vmem %s1573, %s1602 [#allocation2]
          %s1604 = sshll.u32 1, %s1599
          %s1605 = ssub.s32 %s1604, 1
          loop: start=0, step=1, limit=1
          $region911: #{tpu_custom_call.1} parent=909 // loop_pre_header
            _
          $region912: #{tpu_custom_call.1} parent=909 // loop_header
            %s1607 = sphi 0, %s1611
            %p1608 = scmp.ge.s32.totalorder %s1607, 1
            %s1612 = sphi %s1601, %s1601
            %s1613 = sphi %s1603, %s1603
          $region913: #{tpu_custom_call.1} parent=909 // loop_header_branch
            %1610 = sbr.rel (%p1608) target = $region917
          $region914: #{tpu_custom_call.1} parent=909 // loop_body
            %v1614 = vld [vmem:[%s1612] sm:%s1605]
            %1615 = vst [vmem:[%s1613] sm:%s1605] %v1614
          $region915: #{tpu_custom_call.1} parent=909 // loop_footer
            %s1611 = sadd.s32 1, %s1607
          $region916: #{tpu_custom_call.1} parent=909 // loop_footer_branch
            %1606 = sbr.rel target = $region912
          $region917: #{tpu_custom_call.1} parent=909 // loop_exit
            _
        $region910: #{tpu_custom_call.1} parent=894 // pred_fallthru
          _
      $region895: #{tpu_custom_call.1} parent=20 // pred_fallthru
        _
      // Predicated region
      $region896: #{tpu_custom_call.1} parent=20 // pred_check
        %p1579 = pneg %p1575
      $region897: #{tpu_custom_call.1} parent=20 // pred_check_branch
        %1581 = sbr.rel (%p1579) target = $region899
      $region898: #{tpu_custom_call.1} parent=20 // pred_region
        %s1582 = sshll.u32 1, 1
        %s1583 = ssub.s32 %s1582, 1
        loop: start=0, step=1, limit=1
        $region900: #{tpu_custom_call.1} parent=898 // loop_pre_header
          _
        $region901: #{tpu_custom_call.1} parent=898 // loop_header
          %s1585 = sphi 0, %s1589
          %p1586 = scmp.ge.s32.totalorder %s1585, 1
          %s1590 = sphi %s1572, %s1572
          %s1591 = sphi %s1573, %s1573
        $region902: #{tpu_custom_call.1} parent=898 // loop_header_branch
          %1588 = sbr.rel (%p1586) target = $region906
        $region903: #{tpu_custom_call.1} parent=898 // loop_body
          %v1592 = vld [vmem:[%s1590] sm:%s1583]
          %1593 = vst [vmem:[%s1591] sm:%s1583] %v1592
        $region904: #{tpu_custom_call.1} parent=898 // loop_footer
          %s1589 = sadd.s32 1, %s1585
        $region905: #{tpu_custom_call.1} parent=898 // loop_footer_branch
          %1584 = sbr.rel target = $region901
        $region906: #{tpu_custom_call.1} parent=898 // loop_exit
          _
      $region899: #{tpu_custom_call.1} parent=20 // pred_fallthru
        _
      // Predicated region
      $region918: #{tpu_custom_call.1} parent=20 // pred_check
        _
      $region919: #{tpu_custom_call.1} parent=20 // pred_check_branch
        %1618 = sbr.rel (0) target = $region921
      $region920: #{tpu_custom_call.1} parent=20 // pred_region
        %1619 = vsyncadd [#allocation3], 16
      $region921: #{tpu_custom_call.1} parent=20 // pred_fallthru
        _
      %s1620 = sld [smem:[#allocation8 + $0x303]]
      %p1621 = scmp.gt.s32.totalorder %s1620, 0
      %s1622 = scalar_select %p1621, %s1620, 0
      %p1623 = scmp.lt.s32.totalorder %s1622, 511
      %s1624 = scalar_select %p1623, %s1622, 511
      %s1625 = scalar_lea.vmem %s1, %s1624
      %s1626 = scalar_lea.vmem [#allocation2], 30
      %p1628 = scmp.lt.u32.totalorder 1, 8
      %p1629 = pneg %p1628
      // Predicated region
      $region922: #{tpu_custom_call.1} parent=20 // pred_check
        _
      $region923: #{tpu_custom_call.1} parent=20 // pred_check_branch
        %1631 = sbr.rel (%p1628) target = $region925
      $region924: #{tpu_custom_call.1} parent=20 // pred_region
        %s1647 = sand.u32 1, 7
        %p1648 = scmp.eq.s32.totalorder %s1647, 0
        %p1649 = pneg %p1648
        // Predicated region
        $region937: #{tpu_custom_call.1} parent=924 // pred_check
          _
        $region938: #{tpu_custom_call.1} parent=924 // pred_check_branch
          %1651 = sbr.rel (%p1648) target = $region940
        $region939: #{tpu_custom_call.1} parent=924 // pred_region
          %s1652 = sand.u32 1, 7
          %s1653 = ssub.s32 1, %s1652
          %s1654 = scalar_lea.vmem %s1625, %s1653
          %s1655 = ssub.s32 1, %s1652
          %s1656 = scalar_lea.vmem %s1626, %s1655 [#allocation2]
          %s1657 = sshll.u32 1, %s1652
          %s1658 = ssub.s32 %s1657, 1
          loop: start=0, step=1, limit=1
          $region941: #{tpu_custom_call.1} parent=939 // loop_pre_header
            _
          $region942: #{tpu_custom_call.1} parent=939 // loop_header
            %s1660 = sphi 0, %s1664
            %p1661 = scmp.ge.s32.totalorder %s1660, 1
            %s1665 = sphi %s1654, %s1654
            %s1666 = sphi %s1656, %s1656
          $region943: #{tpu_custom_call.1} parent=939 // loop_header_branch
            %1663 = sbr.rel (%p1661) target = $region947
          $region944: #{tpu_custom_call.1} parent=939 // loop_body
            %v1667 = vld [vmem:[%s1665] sm:%s1658]
            %1668 = vst [vmem:[%s1666] sm:%s1658] %v1667
          $region945: #{tpu_custom_call.1} parent=939 // loop_footer
            %s1664 = sadd.s32 1, %s1660
          $region946: #{tpu_custom_call.1} parent=939 // loop_footer_branch
            %1659 = sbr.rel target = $region942
          $region947: #{tpu_custom_call.1} parent=939 // loop_exit
            _
        $region940: #{tpu_custom_call.1} parent=924 // pred_fallthru
          _
      $region925: #{tpu_custom_call.1} parent=20 // pred_fallthru
        _
      // Predicated region
      $region926: #{tpu_custom_call.1} parent=20 // pred_check
        %p1632 = pneg %p1628
      $region927: #{tpu_custom_call.1} parent=20 // pred_check_branch
        %1634 = sbr.rel (%p1632) target = $region929
      $region928: #{tpu_custom_call.1} parent=20 // pred_region
        %s1635 = sshll.u32 1, 1
        %s1636 = ssub.s32 %s1635, 1
        loop: start=0, step=1, limit=1
        $region930: #{tpu_custom_call.1} parent=928 // loop_pre_header
          _
        $region931: #{tpu_custom_call.1} parent=928 // loop_header
          %s1638 = sphi 0, %s1642
          %p1639 = scmp.ge.s32.totalorder %s1638, 1
          %s1643 = sphi %s1625, %s1625
          %s1644 = sphi %s1626, %s1626
        $region932: #{tpu_custom_call.1} parent=928 // loop_header_branch
          %1641 = sbr.rel (%p1639) target = $region936
        $region933: #{tpu_custom_call.1} parent=928 // loop_body
          %v1645 = vld [vmem:[%s1643] sm:%s1636]
          %1646 = vst [vmem:[%s1644] sm:%s1636] %v1645
        $region934: #{tpu_custom_call.1} parent=928 // loop_footer
          %s1642 = sadd.s32 1, %s1638
        $region935: #{tpu_custom_call.1} parent=928 // loop_footer_branch
          %1637 = sbr.rel target = $region931
        $region936: #{tpu_custom_call.1} parent=928 // loop_exit
          _
      $region929: #{tpu_custom_call.1} parent=20 // pred_fallthru
        _
      // Predicated region
      $region948: #{tpu_custom_call.1} parent=20 // pred_check
        _
      $region949: #{tpu_custom_call.1} parent=20 // pred_check_branch
        %1671 = sbr.rel (0) target = $region951
      $region950: #{tpu_custom_call.1} parent=20 // pred_region
        %1672 = vsyncadd [#allocation3], 16
      $region951: #{tpu_custom_call.1} parent=20 // pred_fallthru
        _
      %s1673 = sld [smem:[#allocation8 + $0x383]]
      %p1674 = scmp.gt.s32.totalorder %s1673, 0
      %s1675 = scalar_select %p1674, %s1673, 0
      %p1676 = scmp.lt.s32.totalorder %s1675, 511
      %s1677 = scalar_select %p1676, %s1675, 511
      %s1678 = scalar_lea.vmem %s1, %s1677
      %s1679 = scalar_lea.vmem [#allocation2], 31
      %p1681 = scmp.lt.u32.totalorder 1, 8
      %p1682 = pneg %p1681
      // Predicated region
      $region952: #{tpu_custom_call.1} parent=20 // pred_check
        _
      $region953: #{tpu_custom_call.1} parent=20 // pred_check_branch
        %1684 = sbr.rel (%p1681) target = $region955
      $region954: #{tpu_custom_call.1} parent=20 // pred_region
        %s1700 = sand.u32 1, 7
        %p1701 = scmp.eq.s32.totalorder %s1700, 0
        %p1702 = pneg %p1701
        // Predicated region
        $region967: #{tpu_custom_call.1} parent=954 // pred_check
          _
        $region968: #{tpu_custom_call.1} parent=954 // pred_check_branch
          %1704 = sbr.rel (%p1701) target = $region970
        $region969: #{tpu_custom_call.1} parent=954 // pred_region
          %s1705 = sand.u32 1, 7
          %s1706 = ssub.s32 1, %s1705
          %s1707 = scalar_lea.vmem %s1678, %s1706
          %s1708 = ssub.s32 1, %s1705
          %s1709 = scalar_lea.vmem %s1679, %s1708 [#allocation2]
          %s1710 = sshll.u32 1, %s1705
          %s1711 = ssub.s32 %s1710, 1
          loop: start=0, step=1, limit=1
          $region971: #{tpu_custom_call.1} parent=969 // loop_pre_header
            _
          $region972: #{tpu_custom_call.1} parent=969 // loop_header
            %s1713 = sphi 0, %s1717
            %p1714 = scmp.ge.s32.totalorder %s1713, 1
            %s1718 = sphi %s1707, %s1707
            %s1719 = sphi %s1709, %s1709
          $region973: #{tpu_custom_call.1} parent=969 // loop_header_branch
            %1716 = sbr.rel (%p1714) target = $region977
          $region974: #{tpu_custom_call.1} parent=969 // loop_body
            %v1720 = vld [vmem:[%s1718] sm:%s1711]
            %1721 = vst [vmem:[%s1719] sm:%s1711] %v1720
          $region975: #{tpu_custom_call.1} parent=969 // loop_footer
            %s1717 = sadd.s32 1, %s1713
          $region976: #{tpu_custom_call.1} parent=969 // loop_footer_branch
            %1712 = sbr.rel target = $region972
          $region977: #{tpu_custom_call.1} parent=969 // loop_exit
            _
        $region970: #{tpu_custom_call.1} parent=954 // pred_fallthru
          _
      $region955: #{tpu_custom_call.1} parent=20 // pred_fallthru
        _
      // Predicated region
      $region956: #{tpu_custom_call.1} parent=20 // pred_check
        %p1685 = pneg %p1681
      $region957: #{tpu_custom_call.1} parent=20 // pred_check_branch
        %1687 = sbr.rel (%p1685) target = $region959
      $region958: #{tpu_custom_call.1} parent=20 // pred_region
        %s1688 = sshll.u32 1, 1
        %s1689 = ssub.s32 %s1688, 1
        loop: start=0, step=1, limit=1
        $region960: #{tpu_custom_call.1} parent=958 // loop_pre_header
          _
        $region961: #{tpu_custom_call.1} parent=958 // loop_header
          %s1691 = sphi 0, %s1695
          %p1692 = scmp.ge.s32.totalorder %s1691, 1
          %s1696 = sphi %s1678, %s1678
          %s1697 = sphi %s1679, %s1679
        $region962: #{tpu_custom_call.1} parent=958 // loop_header_branch
          %1694 = sbr.rel (%p1692) target = $region966
        $region963: #{tpu_custom_call.1} parent=958 // loop_body
          %v1698 = vld [vmem:[%s1696] sm:%s1689]
          %1699 = vst [vmem:[%s1697] sm:%s1689] %v1698
        $region964: #{tpu_custom_call.1} parent=958 // loop_footer
          %s1695 = sadd.s32 1, %s1691
        $region965: #{tpu_custom_call.1} parent=958 // loop_footer_branch
          %1690 = sbr.rel target = $region961
        $region966: #{tpu_custom_call.1} parent=958 // loop_exit
          _
      $region959: #{tpu_custom_call.1} parent=20 // pred_fallthru
        _
      // Predicated region
      $region978: #{tpu_custom_call.1} parent=20 // pred_check
        _
      $region979: #{tpu_custom_call.1} parent=20 // pred_check_branch
        %1724 = sbr.rel (0) target = $region981
      $region980: #{tpu_custom_call.1} parent=20 // pred_region
        %1725 = vsyncadd [#allocation3], 16
      $region981: #{tpu_custom_call.1} parent=20 // pred_fallthru
        _
      %s1726 = smul.u32 1, 1
      %s1727 = sshll.u32 %s1726, 4
      %1728 = dma.done [#allocation3], %s1727
      %s1729 = sshll.u32 %s1726, 4
      %1730 = dma.done [#allocation3], %s1729
      %s1731 = sshll.u32 %s1726, 4
      %1732 = dma.done [#allocation3], %s1731
      %s1733 = sshll.u32 %s1726, 4
      %1734 = dma.done [#allocation3], %s1733
      %s1735 = sshll.u32 %s1726, 4
      %1736 = dma.done [#allocation3], %s1735
      %s1737 = sshll.u32 %s1726, 4
      %1738 = dma.done [#allocation3], %s1737
      %s1739 = sshll.u32 %s1726, 4
      %1740 = dma.done [#allocation3], %s1739
      %s1741 = sshll.u32 %s1726, 4
      %1742 = dma.done [#allocation3], %s1741
      %s1743 = sshll.u32 %s1726, 4
      %1744 = dma.done [#allocation3], %s1743
      %s1745 = sshll.u32 %s1726, 4
      %1746 = dma.done [#allocation3], %s1745
      %s1747 = sshll.u32 %s1726, 4
      %1748 = dma.done [#allocation3], %s1747
      %s1749 = sshll.u32 %s1726, 4
      %1750 = dma.done [#allocation3], %s1749
      %s1751 = sshll.u32 %s1726, 4
      %1752 = dma.done [#allocation3], %s1751
      %s1753 = sshll.u32 %s1726, 4
      %1754 = dma.done [#allocation3], %s1753
      %s1755 = sshll.u32 %s1726, 4
      %1756 = dma.done [#allocation3], %s1755
      %s1757 = sshll.u32 %s1726, 4
      %1758 = dma.done [#allocation3], %s1757
      %s1759 = sshll.u32 %s1726, 4
      %1760 = dma.done [#allocation3], %s1759
      %s1761 = sshll.u32 %s1726, 4
      %1762 = dma.done [#allocation3], %s1761
      %s1763 = sshll.u32 %s1726, 4
      %1764 = dma.done [#allocation3], %s1763
      %s1765 = sshll.u32 %s1726, 4
      %1766 = dma.done [#allocation3], %s1765
      %s1767 = sshll.u32 %s1726, 4
      %1768 = dma.done [#allocation3], %s1767
      %s1769 = sshll.u32 %s1726, 4
      %1770 = dma.done [#allocation3], %s1769
      %s1771 = sshll.u32 %s1726, 4
      %1772 = dma.done [#allocation3], %s1771
      %s1773 = sshll.u32 %s1726, 4
      %1774 = dma.done [#allocation3], %s1773
      %s1775 = sshll.u32 %s1726, 4
      %1776 = dma.done [#allocation3], %s1775
      %s1777 = sshll.u32 %s1726, 4
      %1778 = dma.done [#allocation3], %s1777
      %s1779 = sshll.u32 %s1726, 4
      %1780 = dma.done [#allocation3], %s1779
      %s1781 = sshll.u32 %s1726, 4
      %1782 = dma.done [#allocation3], %s1781
      %s1783 = sshll.u32 %s1726, 4
      %1784 = dma.done [#allocation3], %s1783
      %s1785 = sshll.u32 %s1726, 4
      %1786 = dma.done [#allocation3], %s1785
      %s1787 = sshll.u32 %s1726, 4
      %1788 = dma.done [#allocation3], %s1787
      %s1789 = sshll.u32 %s1726, 4
      %1790 = dma.done [#allocation3], %s1789
      %v1791 = vld [vmem:[%s3] sm:$0x1]
      %v1793 = vlaneseq
      %v1794 = vshrl.u32 %v1793, 7
      %v1795 = vsub.s32 0, %v1794
      %v1796 = vrot.slane %v1791, %v1795
      %v1798 = vadd.f32 %v1796, 0.0
      %v1799 = vld [vmem:[#allocation2] sm:$0xff]
      %v1800 = vpack.c.bf16 %v1799, %v1799
      %v1801 = vld [vmem:[%s2] sm:$0xf]
      %v1802 = vld [vmem:[%s2 + $0x4] sm:$0xf]
      %v1803 = vld [vmem:[%s2 + $0x8] sm:$0xf]
      %v1804 = vld [vmem:[%s2 + $0xc] sm:$0xf]
      %v1809 = vunpack.c.l.b16 %v1801
      %v1810 = vunpack.c.l.b16 %v1802
      %v1811 = vunpack.c.l.b16 %v1803
      %v1812 = vunpack.c.l.b16 %v1804
      %v1813 = vpack.c.b16 %v1810, %v1809
      %v1814 = vpack.c.b16 %v1812, %v1811
      %vm1817 = vcmask 261120
      %v1819 = vsel %vm1817, %v1800, 0
      %1821 = vmatprep.subr.bf16.mxu0 0
      %1822 = vmatpush1.bf16.msra.mxu0 0
      %1823 = vmatprep.subr.bf16.mxu0 0
      %1824 = vmatpush1.bf16.msra.mxu0 0
      %1825 = vmatprep.subr.bf16.mxu0 0
      %1826 = vmatpush1.bf16.msra.mxu0 0
      %1827 = vmatprep.subr.bf16.mxu0 0
      %1828 = vmatpush1.bf16.msra.mxu0 0
      %1829 = vmatprep.subr.bf16.mxu0 0
      %1830 = vmatpush1.bf16.msra.mxu0 0
      %1831 = vmatprep.subr.bf16.mxu0 0
      %1832 = vmatpush1.bf16.msra.mxu0 0
      %1833 = vmatprep.subr.bf16.mxu0 0
      %1834 = vmatpush1.bf16.msra.mxu0 %v1814
      %1835 = vmatprep.subr.bf16.mxu0 0
      %1836 = vmatpush1.bf16.msra.mxu0 %v1813
      %1837 = vmatprep.subr.bf16.mxu0 0
      %1838 = vmatpush2.bf16.msra.mxu0 0
      %1839 = vmatprep.subr.bf16.mxu0 0
      %1840 = vmatpush2.bf16.msra.mxu0 0
      %1841 = vmatprep.subr.bf16.mxu0 0
      %1842 = vmatpush2.bf16.msra.mxu0 0
      %1843 = vmatprep.subr.bf16.mxu0 0
      %1844 = vmatpush2.bf16.msra.mxu0 0
      %1845 = vmatprep.subr.bf16.mxu0 0
      %1846 = vmatpush2.bf16.msra.mxu0 0
      %1847 = vmatprep.subr.bf16.mxu0 0
      %1848 = vmatpush2.bf16.msra.mxu0 0
      %1849 = vmatprep.subr.bf16.mxu0 0
      %1850 = vmatpush2.bf16.msra.mxu0 0
      %1851 = vmatprep.subr.bf16.mxu0 0
      %1852 = vmatpush2.bf16.msra.mxu0 0
      %1853 = vmatprep.mubr.bf16.mxu0 0
      %1854 = vmatmul.mubr.bf16.gmra.mxu0 %v1819
      %v1855 = vpop.f32.mrf.mxu0
      %v1856 = vadd.f32 0.0, %v1855
      %v1857 = vpop.f32.mrf.mxu0
      %v1858 = vpop.f32.mrf.mxu0
      %v1859 = vpop.f32.mrf.mxu0
      %1860 = vdwg.mxu0
      %v1861 = vadd.f32 %v1798, %v1856
      %v1862 = vld [vmem:[#allocation2 + $0x8] sm:$0xff]
      %v1863 = vpack.c.bf16 %v1862, %v1862
      %v1864 = vld [vmem:[%s2 + $0x10] sm:$0xf]
      %v1865 = vld [vmem:[%s2 + $0x14] sm:$0xf]
      %v1866 = vld [vmem:[%s2 + $0x18] sm:$0xf]
      %v1867 = vld [vmem:[%s2 + $0x1c] sm:$0xf]
      %v1872 = vunpack.c.l.b16 %v1864
      %v1873 = vunpack.c.l.b16 %v1865
      %v1874 = vunpack.c.l.b16 %v1866
      %v1875 = vunpack.c.l.b16 %v1867
      %v1876 = vpack.c.b16 %v1873, %v1872
      %v1877 = vpack.c.b16 %v1875, %v1874
      %v1881 = vsel %vm1817, %v1863, 0
      %1883 = vmatprep.subr.bf16.mxu0 0
      %1884 = vmatpush1.bf16.msra.mxu0 0
      %1885 = vmatprep.subr.bf16.mxu0 0
      %1886 = vmatpush1.bf16.msra.mxu0 0
      %1887 = vmatprep.subr.bf16.mxu0 0
      %1888 = vmatpush1.bf16.msra.mxu0 0
      %1889 = vmatprep.subr.bf16.mxu0 0
      %1890 = vmatpush1.bf16.msra.mxu0 0
      %1891 = vmatprep.subr.bf16.mxu0 0
      %1892 = vmatpush1.bf16.msra.mxu0 0
      %1893 = vmatprep.subr.bf16.mxu0 0
      %1894 = vmatpush1.bf16.msra.mxu0 0
      %1895 = vmatprep.subr.bf16.mxu0 0
      %1896 = vmatpush1.bf16.msra.mxu0 %v1877
      %1897 = vmatprep.subr.bf16.mxu0 0
      %1898 = vmatpush1.bf16.msra.mxu0 %v1876
      %1899 = vmatprep.subr.bf16.mxu0 0
      %1900 = vmatpush2.bf16.msra.mxu0 0
      %1901 = vmatprep.subr.bf16.mxu0 0
      %1902 = vmatpush2.bf16.msra.mxu0 0
      %1903 = vmatprep.subr.bf16.mxu0 0
      %1904 = vmatpush2.bf16.msra.mxu0 0
      %1905 = vmatprep.subr.bf16.mxu0 0
      %1906 = vmatpush2.bf16.msra.mxu0 0
      %1907 = vmatprep.subr.bf16.mxu0 0
      %1908 = vmatpush2.bf16.msra.mxu0 0
      %1909 = vmatprep.subr.bf16.mxu0 0
      %1910 = vmatpush2.bf16.msra.mxu0 0
      %1911 = vmatprep.subr.bf16.mxu0 0
      %1912 = vmatpush2.bf16.msra.mxu0 0
      %1913 = vmatprep.subr.bf16.mxu0 0
      %1914 = vmatpush2.bf16.msra.mxu0 0
      %1915 = vmatprep.mubr.bf16.mxu0 0
      %1916 = vmatmul.mubr.bf16.gmra.mxu0 %v1881
      %v1917 = vpop.f32.mrf.mxu0
      %v1918 = vadd.f32 0.0, %v1917
      %v1919 = vpop.f32.mrf.mxu0
      %v1920 = vpop.f32.mrf.mxu0
      %v1921 = vpop.f32.mrf.mxu0
      %1922 = vdwg.mxu0
      %v1923 = vadd.f32 %v1861, %v1918
      %v1924 = vld [vmem:[#allocation2 + $0x10] sm:$0xff]
      %v1925 = vpack.c.bf16 %v1924, %v1924
      %v1926 = vld [vmem:[%s2 + $0x20] sm:$0xf]
      %v1927 = vld [vmem:[%s2 + $0x24] sm:$0xf]
      %v1928 = vld [vmem:[%s2 + $0x28] sm:$0xf]
      %v1929 = vld [vmem:[%s2 + $0x2c] sm:$0xf]
      %v1934 = vunpack.c.l.b16 %v1926
      %v1935 = vunpack.c.l.b16 %v1927
      %v1936 = vunpack.c.l.b16 %v1928
      %v1937 = vunpack.c.l.b16 %v1929
      %v1938 = vpack.c.b16 %v1935, %v1934
      %v1939 = vpack.c.b16 %v1937, %v1936
      %v1943 = vsel %vm1817, %v1925, 0
      %1945 = vmatprep.subr.bf16.mxu0 0
      %1946 = vmatpush1.bf16.msra.mxu0 0
      %1947 = vmatprep.subr.bf16.mxu0 0
      %1948 = vmatpush1.bf16.msra.mxu0 0
      %1949 = vmatprep.subr.bf16.mxu0 0
      %1950 = vmatpush1.bf16.msra.mxu0 0
      %1951 = vmatprep.subr.bf16.mxu0 0
      %1952 = vmatpush1.bf16.msra.mxu0 0
      %1953 = vmatprep.subr.bf16.mxu0 0
      %1954 = vmatpush1.bf16.msra.mxu0 0
      %1955 = vmatprep.subr.bf16.mxu0 0
      %1956 = vmatpush1.bf16.msra.mxu0 0
      %1957 = vmatprep.subr.bf16.mxu0 0
      %1958 = vmatpush1.bf16.msra.mxu0 %v1939
      %1959 = vmatprep.subr.bf16.mxu0 0
      %1960 = vmatpush1.bf16.msra.mxu0 %v1938
      %1961 = vmatprep.subr.bf16.mxu0 0
      %1962 = vmatpush2.bf16.msra.mxu0 0
      %1963 = vmatprep.subr.bf16.mxu0 0
      %1964 = vmatpush2.bf16.msra.mxu0 0
      %1965 = vmatprep.subr.bf16.mxu0 0
      %1966 = vmatpush2.bf16.msra.mxu0 0
      %1967 = vmatprep.subr.bf16.mxu0 0
      %1968 = vmatpush2.bf16.msra.mxu0 0
      %1969 = vmatprep.subr.bf16.mxu0 0
      %1970 = vmatpush2.bf16.msra.mxu0 0
      %1971 = vmatprep.subr.bf16.mxu0 0
      %1972 = vmatpush2.bf16.msra.mxu0 0
      %1973 = vmatprep.subr.bf16.mxu0 0
      %1974 = vmatpush2.bf16.msra.mxu0 0
      %1975 = vmatprep.subr.bf16.mxu0 0
      %1976 = vmatpush2.bf16.msra.mxu0 0
      %1977 = vmatprep.mubr.bf16.mxu0 0
      %1978 = vmatmul.mubr.bf16.gmra.mxu0 %v1943
      %v1979 = vpop.f32.mrf.mxu0
      %v1980 = vadd.f32 0.0, %v1979
      %v1981 = vpop.f32.mrf.mxu0
      %v1982 = vpop.f32.mrf.mxu0
      %v1983 = vpop.f32.mrf.mxu0
      %1984 = vdwg.mxu0
      %v1985 = vadd.f32 %v1923, %v1980
      %v1986 = vld [vmem:[#allocation2 + $0x18] sm:$0xff]
      %v1987 = vpack.c.bf16 %v1986, %v1986
      %v1988 = vld [vmem:[%s2 + $0x30] sm:$0xf]
      %v1989 = vld [vmem:[%s2 + $0x34] sm:$0xf]
      %v1990 = vld [vmem:[%s2 + $0x38] sm:$0xf]
      %v1991 = vld [vmem:[%s2 + $0x3c] sm:$0xf]
      %v1996 = vunpack.c.l.b16 %v1988
      %v1997 = vunpack.c.l.b16 %v1989
      %v1998 = vunpack.c.l.b16 %v1990
      %v1999 = vunpack.c.l.b16 %v1991
      %v2000 = vpack.c.b16 %v1997, %v1996
      %v2001 = vpack.c.b16 %v1999, %v1998
      %v2005 = vsel %vm1817, %v1987, 0
      %2007 = vmatprep.subr.bf16.mxu0 0
      %2008 = vmatpush1.bf16.msra.mxu0 0
      %2009 = vmatprep.subr.bf16.mxu0 0
      %2010 = vmatpush1.bf16.msra.mxu0 0
      %2011 = vmatprep.subr.bf16.mxu0 0
      %2012 = vmatpush1.bf16.msra.mxu0 0
      %2013 = vmatprep.subr.bf16.mxu0 0
      %2014 = vmatpush1.bf16.msra.mxu0 0
      %2015 = vmatprep.subr.bf16.mxu0 0
      %2016 = vmatpush1.bf16.msra.mxu0 0
      %2017 = vmatprep.subr.bf16.mxu0 0
      %2018 = vmatpush1.bf16.msra.mxu0 0
      %2019 = vmatprep.subr.bf16.mxu0 0
      %2020 = vmatpush1.bf16.msra.mxu0 %v2001
      %2021 = vmatprep.subr.bf16.mxu0 0
      %2022 = vmatpush1.bf16.msra.mxu0 %v2000
      %2023 = vmatprep.subr.bf16.mxu0 0
      %2024 = vmatpush2.bf16.msra.mxu0 0
      %2025 = vmatprep.subr.bf16.mxu0 0
      %2026 = vmatpush2.bf16.msra.mxu0 0
      %2027 = vmatprep.subr.bf16.mxu0 0
      %2028 = vmatpush2.bf16.msra.mxu0 0
      %2029 = vmatprep.subr.bf16.mxu0 0
      %2030 = vmatpush2.bf16.msra.mxu0 0
      %2031 = vmatprep.subr.bf16.mxu0 0
      %2032 = vmatpush2.bf16.msra.mxu0 0
      %2033 = vmatprep.subr.bf16.mxu0 0
      %2034 = vmatpush2.bf16.msra.mxu0 0
      %2035 = vmatprep.subr.bf16.mxu0 0
      %2036 = vmatpush2.bf16.msra.mxu0 0
      %2037 = vmatprep.subr.bf16.mxu0 0
      %2038 = vmatpush2.bf16.msra.mxu0 0
      %2039 = vmatprep.mubr.bf16.mxu0 0
      %2040 = vmatmul.mubr.bf16.gmra.mxu0 %v2005
      %v2041 = vpop.f32.mrf.mxu0
      %v2042 = vadd.f32 0.0, %v2041
      %v2043 = vpop.f32.mrf.mxu0
      %v2044 = vpop.f32.mrf.mxu0
      %v2045 = vpop.f32.mrf.mxu0
      %2046 = vdwg.mxu0
      %v2047 = vadd.f32 %v1985, %v2042
      %v2048 = vmax.f32 %v2047, 0.0
      %v2049 = vpack.c.bf16 %v2048, %v2048
      %2050 = vst [vmem:[#allocation4] sm:$0xf] %v2049
      %vm2051 = vcmask 7168
      %2052 = vst.msk [vmem:[#allocation5] sm:$0xff] %vm2051, -inf
      %2053 = vst.msk [vmem:[#allocation6] sm:$0xff] %vm2051, 0.0
    $region21: #{tpu_custom_call.1} parent=1 // pred_fallthru
      _
    %v2054 = vld [vmem:[#allocation4] sm:$0xf]
    %v2055 = vld [vmem:[%s4] sm:$0xff]
    %v2056 = vld [vmem:[%s4 + $0x8] sm:$0xff]
    %v2057 = vld [vmem:[%s4 + $0x10] sm:$0xff]
    %v2058 = vld [vmem:[%s4 + $0x18] sm:$0xff]
    %v2059 = vld [vmem:[%s4 + $0x20] sm:$0xff]
    %v2060 = vld [vmem:[%s4 + $0x28] sm:$0xff]
    %v2061 = vld [vmem:[%s4 + $0x30] sm:$0xff]
    %v2062 = vld [vmem:[%s4 + $0x38] sm:$0xff]
    %v2063 = vld [vmem:[%s4 + $0x40] sm:$0xff]
    %v2064 = vld [vmem:[%s4 + $0x48] sm:$0xff]
    %v2065 = vld [vmem:[%s4 + $0x50] sm:$0xff]
    %v2066 = vld [vmem:[%s4 + $0x58] sm:$0xff]
    %v2067 = vld [vmem:[%s4 + $0x60] sm:$0xff]
    %v2068 = vld [vmem:[%s4 + $0x68] sm:$0xff]
    %v2069 = vld [vmem:[%s4 + $0x70] sm:$0xff]
    %v2070 = vld [vmem:[%s4 + $0x78] sm:$0xff]
    %v2071 = vld [vmem:[%s4 + $0x80] sm:$0xff]
    %v2072 = vld [vmem:[%s4 + $0x88] sm:$0xff]
    %v2073 = vld [vmem:[%s4 + $0x90] sm:$0xff]
    %v2074 = vld [vmem:[%s4 + $0x98] sm:$0xff]
    %v2075 = vld [vmem:[%s4 + $0xa0] sm:$0xff]
    %v2076 = vld [vmem:[%s4 + $0xa8] sm:$0xff]
    %v2077 = vld [vmem:[%s4 + $0xb0] sm:$0xff]
    %v2078 = vld [vmem:[%s4 + $0xb8] sm:$0xff]
    %v2079 = vld [vmem:[%s4 + $0xc0] sm:$0xff]
    %v2080 = vld [vmem:[%s4 + $0xc8] sm:$0xff]
    %v2081 = vld [vmem:[%s4 + $0xd0] sm:$0xff]
    %v2082 = vld [vmem:[%s4 + $0xd8] sm:$0xff]
    %v2083 = vld [vmem:[%s4 + $0xe0] sm:$0xff]
    %v2084 = vld [vmem:[%s4 + $0xe8] sm:$0xff]
    %v2085 = vld [vmem:[%s4 + $0xf0] sm:$0xff]
    %v2086 = vld [vmem:[%s4 + $0xf8] sm:$0xff]
    %v2087 = vld [vmem:[%s5] sm:$0xf]
    %v2089 = vlaneseq
    %v2090 = vshrl.u32 %v2089, 7
    %v2091 = vsub.s32 0, %v2090
    %v2092 = vrot.slane %v2087, %v2091
    %v2093 = vlaneseq
    %v2094 = vshrl.u32 %v2093, 7
    %v2095 = vsub.s32 1, %v2094
    %v2096 = vrot.slane %v2087, %v2095
    %v2097 = vlaneseq
    %v2098 = vshrl.u32 %v2097, 7
    %v2099 = vsub.s32 2, %v2098
    %v2100 = vrot.slane %v2087, %v2099
    %v2101 = vlaneseq
    %v2102 = vshrl.u32 %v2101, 7
    %v2103 = vsub.s32 3, %v2102
    %v2104 = vrot.slane %v2087, %v2103
    %v2141 = vunpack.c.l.b16 %v2055
    %v2142 = vunpack.c.h.b16 %v2055
    %v2143 = vunpack.c.l.b16 %v2056
    %v2144 = vunpack.c.h.b16 %v2056
    %v2145 = vunpack.c.l.b16 %v2057
    %v2146 = vunpack.c.h.b16 %v2057
    %v2147 = vunpack.c.l.b16 %v2058
    %v2148 = vunpack.c.h.b16 %v2058
    %v2149 = vunpack.c.l.b16 %v2059
    %v2150 = vunpack.c.h.b16 %v2059
    %v2151 = vunpack.c.l.b16 %v2060
    %v2152 = vunpack.c.h.b16 %v2060
    %v2153 = vunpack.c.l.b16 %v2061
    %v2154 = vunpack.c.h.b16 %v2061
    %v2155 = vunpack.c.l.b16 %v2062
    %v2156 = vunpack.c.h.b16 %v2062
    %v2157 = vunpack.c.l.b16 %v2063
    %v2158 = vunpack.c.h.b16 %v2063
    %v2159 = vunpack.c.l.b16 %v2064
    %v2160 = vunpack.c.h.b16 %v2064
    %v2161 = vunpack.c.l.b16 %v2065
    %v2162 = vunpack.c.h.b16 %v2065
    %v2163 = vunpack.c.l.b16 %v2066
    %v2164 = vunpack.c.h.b16 %v2066
    %v2165 = vunpack.c.l.b16 %v2067
    %v2166 = vunpack.c.h.b16 %v2067
    %v2167 = vunpack.c.l.b16 %v2068
    %v2168 = vunpack.c.h.b16 %v2068
    %v2169 = vunpack.c.l.b16 %v2069
    %v2170 = vunpack.c.h.b16 %v2069
    %v2171 = vunpack.c.l.b16 %v2070
    %v2172 = vunpack.c.h.b16 %v2070
    %v2173 = vunpack.c.l.b16 %v2071
    %v2174 = vunpack.c.h.b16 %v2071
    %v2175 = vunpack.c.l.b16 %v2072
    %v2176 = vunpack.c.h.b16 %v2072
    %v2177 = vunpack.c.l.b16 %v2073
    %v2178 = vunpack.c.h.b16 %v2073
    %v2179 = vunpack.c.l.b16 %v2074
    %v2180 = vunpack.c.h.b16 %v2074
    %v2181 = vunpack.c.l.b16 %v2075
    %v2182 = vunpack.c.h.b16 %v2075
    %v2183 = vunpack.c.l.b16 %v2076
    %v2184 = vunpack.c.h.b16 %v2076
    %v2185 = vunpack.c.l.b16 %v2077
    %v2186 = vunpack.c.h.b16 %v2077
    %v2187 = vunpack.c.l.b16 %v2078
    %v2188 = vunpack.c.h.b16 %v2078
    %v2189 = vunpack.c.l.b16 %v2079
    %v2190 = vunpack.c.h.b16 %v2079
    %v2191 = vunpack.c.l.b16 %v2080
    %v2192 = vunpack.c.h.b16 %v2080
    %v2193 = vunpack.c.l.b16 %v2081
    %v2194 = vunpack.c.h.b16 %v2081
    %v2195 = vunpack.c.l.b16 %v2082
    %v2196 = vunpack.c.h.b16 %v2082
    %v2197 = vunpack.c.l.b16 %v2083
    %v2198 = vunpack.c.h.b16 %v2083
    %v2199 = vunpack.c.l.b16 %v2084
    %v2200 = vunpack.c.h.b16 %v2084
    %v2201 = vunpack.c.l.b16 %v2085
    %v2202 = vunpack.c.h.b16 %v2085
    %v2203 = vunpack.c.l.b16 %v2086
    %v2204 = vunpack.c.h.b16 %v2086
    %v2205 = vpack.c.b16 %v2145, %v2141
    %v2206 = vpack.c.b16 %v2146, %v2142
    %v2207 = vpack.c.b16 %v2147, %v2143
    %v2208 = vpack.c.b16 %v2148, %v2144
    %v2209 = vpack.c.b16 %v2153, %v2149
    %v2210 = vpack.c.b16 %v2154, %v2150
    %v2211 = vpack.c.b16 %v2155, %v2151
    %v2212 = vpack.c.b16 %v2156, %v2152
    %v2213 = vpack.c.b16 %v2161, %v2157
    %v2214 = vpack.c.b16 %v2162, %v2158
    %v2215 = vpack.c.b16 %v2163, %v2159
    %v2216 = vpack.c.b16 %v2164, %v2160
    %v2217 = vpack.c.b16 %v2169, %v2165
    %v2218 = vpack.c.b16 %v2170, %v2166
    %v2219 = vpack.c.b16 %v2171, %v2167
    %v2220 = vpack.c.b16 %v2172, %v2168
    %v2221 = vpack.c.b16 %v2177, %v2173
    %v2222 = vpack.c.b16 %v2178, %v2174
    %v2223 = vpack.c.b16 %v2179, %v2175
    %v2224 = vpack.c.b16 %v2180, %v2176
    %v2225 = vpack.c.b16 %v2185, %v2181
    %v2226 = vpack.c.b16 %v2186, %v2182
    %v2227 = vpack.c.b16 %v2187, %v2183
    %v2228 = vpack.c.b16 %v2188, %v2184
    %v2229 = vpack.c.b16 %v2193, %v2189
    %v2230 = vpack.c.b16 %v2194, %v2190
    %v2231 = vpack.c.b16 %v2195, %v2191
    %v2232 = vpack.c.b16 %v2196, %v2192
    %v2233 = vpack.c.b16 %v2201, %v2197
    %v2234 = vpack.c.b16 %v2202, %v2198
    %v2235 = vpack.c.b16 %v2203, %v2199
    %v2236 = vpack.c.b16 %v2204, %v2200
    %2269 = vmatprep.subr.bf16.mxu0 %v2234
    %2270 = vmatpush1.bf16.msra.mxu0 %v2233
    %2271 = vmatprep.subr.bf16.mxu0 %v2230
    %2272 = vmatpush1.bf16.msra.mxu0 %v2229
    %2273 = vmatprep.subr.bf16.mxu0 %v2226
    %2274 = vmatpush1.bf16.msra.mxu0 %v2225
    %2275 = vmatprep.subr.bf16.mxu0 %v2222
    %2276 = vmatpush1.bf16.msra.mxu0 %v2221
    %2277 = vmatprep.subr.bf16.mxu0 %v2218
    %2278 = vmatpush1.bf16.msra.mxu0 %v2217
    %2279 = vmatprep.subr.bf16.mxu0 %v2214
    %2280 = vmatpush1.bf16.msra.mxu0 %v2213
    %2281 = vmatprep.subr.bf16.mxu0 %v2210
    %2282 = vmatpush1.bf16.msra.mxu0 %v2209
    %2283 = vmatprep.subr.bf16.mxu0 %v2206
    %2284 = vmatpush1.bf16.msra.mxu0 %v2205
    %2285 = vmatprep.subr.bf16.mxu0 0
    %2286 = vmatpush2.bf16.msra.mxu0 0
    %2287 = vmatprep.subr.bf16.mxu0 0
    %2288 = vmatpush2.bf16.msra.mxu0 0
    %2289 = vmatprep.subr.bf16.mxu0 0
    %2290 = vmatpush2.bf16.msra.mxu0 0
    %2291 = vmatprep.subr.bf16.mxu0 0
    %2292 = vmatpush2.bf16.msra.mxu0 0
    %2293 = vmatprep.subr.bf16.mxu0 0
    %2294 = vmatpush2.bf16.msra.mxu0 0
    %2295 = vmatprep.subr.bf16.mxu0 0
    %2296 = vmatpush2.bf16.msra.mxu0 0
    %2297 = vmatprep.subr.bf16.mxu0 0
    %2298 = vmatpush2.bf16.msra.mxu0 0
    %2299 = vmatprep.subr.bf16.mxu0 0
    %2300 = vmatpush2.bf16.msra.mxu0 0
    %2301 = vmatprep.mubr.bf16.mxu0 0
    %2302 = vmatmul.mubr.bf16.gmra.mxu0 %v2054
    %v2303 = vpop.f32.mrf.mxu0
    %v2304 = vadd.f32 %v2092, %v2303
    %v2305 = vpop.f32.mrf.mxu0
    %v2306 = vadd.f32 %v2096, %v2305
    %v2307 = vpop.f32.mrf.mxu0
    %v2308 = vpop.f32.mrf.mxu0
    %2309 = vdwg.mxu0
    %2310 = vmatprep.subr.bf16.mxu0 %v2236
    %2311 = vmatpush1.bf16.msra.mxu0 %v2235
    %2312 = vmatprep.subr.bf16.mxu0 %v2232
    %2313 = vmatpush1.bf16.msra.mxu0 %v2231
    %2314 = vmatprep.subr.bf16.mxu0 %v2228
    %2315 = vmatpush1.bf16.msra.mxu0 %v2227
    %2316 = vmatprep.subr.bf16.mxu0 %v2224
    %2317 = vmatpush1.bf16.msra.mxu0 %v2223
    %2318 = vmatprep.subr.bf16.mxu0 %v2220
    %2319 = vmatpush1.bf16.msra.mxu0 %v2219
    %2320 = vmatprep.subr.bf16.mxu0 %v2216
    %2321 = vmatpush1.bf16.msra.mxu0 %v2215
    %2322 = vmatprep.subr.bf16.mxu0 %v2212
    %2323 = vmatpush1.bf16.msra.mxu0 %v2211
    %2324 = vmatprep.subr.bf16.mxu0 %v2208
    %2325 = vmatpush1.bf16.msra.mxu0 %v2207
    %2326 = vmatprep.subr.bf16.mxu0 0
    %2327 = vmatpush2.bf16.msra.mxu0 0
    %2328 = vmatprep.subr.bf16.mxu0 0
    %2329 = vmatpush2.bf16.msra.mxu0 0
    %2330 = vmatprep.subr.bf16.mxu0 0
    %2331 = vmatpush2.bf16.msra.mxu0 0
    %2332 = vmatprep.subr.bf16.mxu0 0
    %2333 = vmatpush2.bf16.msra.mxu0 0
    %2334 = vmatprep.subr.bf16.mxu0 0
    %2335 = vmatpush2.bf16.msra.mxu0 0
    %2336 = vmatprep.subr.bf16.mxu0 0
    %2337 = vmatpush2.bf16.msra.mxu0 0
    %2338 = vmatprep.subr.bf16.mxu0 0
    %2339 = vmatpush2.bf16.msra.mxu0 0
    %2340 = vmatprep.subr.bf16.mxu0 0
    %2341 = vmatpush2.bf16.msra.mxu0 0
    %2342 = vmatprep.mubr.bf16.mxu0 0
    %2343 = vmatmul.mubr.bf16.gmra.mxu0 %v2054
    %v2344 = vpop.f32.mrf.mxu0
    %v2345 = vadd.f32 %v2100, %v2344
    %v2346 = vpop.f32.mrf.mxu0
    %v2347 = vadd.f32 %v2104, %v2346
    %v2348 = vpop.f32.mrf.mxu0
    %v2349 = vpop.f32.mrf.mxu0
    %2350 = vdwg.mxu0
    // Predicated region
    $region982: #{tpu_custom_call.1} parent=1 // pred_check
      %p2351 = pneg %p27
    $region983: #{tpu_custom_call.1} parent=1 // pred_check_branch
      %2353 = sbr.rel (%p2351) target = $region985
    $region984: #{tpu_custom_call.1} parent=1 // pred_region
      %2354 = vst [vmem:[#allocation9] sm:$0xff] %v2304
      %2355 = vst [vmem:[#allocation9 + $0x8] sm:$0xff] %v2306
      %2356 = vst [vmem:[#allocation9 + $0x10] sm:$0xff] %v2345
      %2357 = vst [vmem:[#allocation9 + $0x18] sm:$0xff] %v2347
    $region985: #{tpu_custom_call.1} parent=1 // pred_fallthru
      _
    %v2358 = vld [vmem:[#allocation5] sm:$0xff]
    %v2359 = vmax.f32 %v2304, %v2306
    %v2360 = vmax.f32 %v2345, %v2347
    %v2361 = vmax.f32 %v2359, %v2360
    %2362 = vmax.xlane.f32.xlu0 %v2361
    %v2363 = vpop.xlane.xlu0 %2362
    %v2364 = vmax.f32 %v2358, %v2363
    %v2365 = vld [vmem:[#allocation6] sm:$0xff]
    %v2366 = vsub.f32 %v2358, %v2364
    %v2367 = vmul.f32 %v2366, 1.442695
    %v2368 = vpow.pop %v2367
    %v2369 = vmul.f32 %v2365, %v2368
    %2371 = vset.pattern.permute.xlu0 0
    %2372 = vperm.xlu0 %2371, %v2364
    %v2373 = vpop.permute.xlu0 %2372
    %v2375 = vsub.f32 %v2304, %v2373
    %v2376 = vsub.f32 %v2306, %v2373
    %v2377 = vsub.f32 %v2345, %v2373
    %v2378 = vsub.f32 %v2347, %v2373
    %v2379 = vmul.f32 %v2375, 1.442695
    %v2380 = vpow.pop %v2379
    %v2381 = vmul.f32 %v2376, 1.442695
    %v2382 = vpow.pop %v2381
    %v2383 = vmul.f32 %v2377, 1.442695
    %v2384 = vpow.pop %v2383
    %v2385 = vmul.f32 %v2378, 1.442695
    %v2386 = vpow.pop %v2385
    %v2387 = vadd.f32 %v2380, %v2382
    %v2388 = vadd.f32 %v2387, %v2384
    %v2389 = vadd.f32 %v2388, %v2386
    %2390 = vadd.xlane.f32.xlu0 %v2389
    %v2391 = vpop.xlane.xlu0 %2390
    %v2392 = vadd.f32 %v2369, %v2391
    %vm2393 = vcmask 7168
    %2394 = vst.msk [vmem:[#allocation6] sm:$0xff] %vm2393, %v2392
    %2395 = vst.msk [vmem:[#allocation5] sm:$0xff] %vm2393, %v2364
    // Predicated region
    $region986: #{tpu_custom_call.1} parent=1 // pred_check
      %p2396 = pneg %p27
    $region987: #{tpu_custom_call.1} parent=1 // pred_check_branch
      %2398 = sbr.rel (%p2396) target = $region989
    $region988: #{tpu_custom_call.1} parent=1 // pred_region
      %v2399 = vld [vmem:[#allocation5] sm:$0xff]
      %v2400 = vld [vmem:[#allocation6] sm:$0xff]
      %v2401 = vlog2.pop %v2400
      %v2402 = vmul.f32 %v2401, 0.6931472
      %v2403 = vadd.f32 %v2399, %v2402
      %v2404 = vld [vmem:[#allocation9] sm:$0xff]
      %v2405 = vld [vmem:[#allocation9 + $0x8] sm:$0xff]
      %v2406 = vld [vmem:[#allocation9 + $0x10] sm:$0xff]
      %v2407 = vld [vmem:[#allocation9 + $0x18] sm:$0xff]
      %2409 = vset.pattern.permute.xlu0 0
      %2410 = vperm.xlu0 %2409, %v2403
      %v2411 = vpop.permute.xlu0 %2410
      %v2413 = vsub.f32 %v2404, %v2411
      %v2414 = vsub.f32 %v2405, %v2411
      %v2415 = vsub.f32 %v2406, %v2411
      %v2416 = vsub.f32 %v2407, %v2411
      %2417 = vst [vmem:[#allocation9] sm:$0xff] %v2413
      %2418 = vst [vmem:[#allocation9 + $0x8] sm:$0xff] %v2414
      %2419 = vst [vmem:[#allocation9 + $0x10] sm:$0xff] %v2415
      %2420 = vst [vmem:[#allocation9 + $0x18] sm:$0xff] %v2416
    $region989: #{tpu_custom_call.1} parent=1 // pred_fallthru
      _
    // Predicated region
    $region990: #{tpu_custom_call.1} parent=1 // pred_check
      _
    $region991: #{tpu_custom_call.1} parent=1 // pred_check_branch
      %2422 = sbr.rel (0) target = $region993
    $region992: #{tpu_custom_call.1} parent=1 // pred_region
      %s2424 = ssub.s32 512, 512
      %2425 = vsyncadd [#allocation10], %s2424
      %s2427 = sshll.u32 [#allocation9], 4
      %s2428 = int_to_ptr.vmem [resolvable:$true] %s2427
      %2430 = dma.vmem_to_hbm [thread:$0]  %s2428, 512, %s6, [#allocation10]
    $region993: #{tpu_custom_call.1} parent=1 // pred_fallthru
      _
    // Predicated region
    $region994: #{tpu_custom_call.1} parent=1 // pred_check
      _
    $region995: #{tpu_custom_call.1} parent=1 // pred_check_branch
      %2432 = sbr.rel (0) target = $region997
    $region996: #{tpu_custom_call.1} parent=1 // pred_region
      %2433 = dma.done [#allocation10], 512
    $region997: #{tpu_custom_call.1} parent=1 // pred_fallthru
      _
    %2434 = vsyncpa [#allocation10], 1
  %2435 = vsyncmov [#allocation3]
  %s2436 = vpop.sfrf %2435
  %p2437 = scmp.eq.s32.totalorder %s2436, 0
  %p2438 = pneg %p2437
  %2440 = shalt.err (%p2438)

</llo_original>
